<compile_context>
chip_gen: v7x
topology: tpu7x:2x2x1
jax: 0.10.0
libtpu: 0.0.40
codegen_flags: <defaults>
</compile_context>

<pallas_src>
import math

import jax
import jax.numpy as jnp
from jax import lax
from jax.experimental import pallas as pl
from jax.experimental.pallas import tpu as pltpu

BN_EPS = 1e-5      # nn.BatchNorm1d default eps
NORM_EPS = 1e-8    # f_norm = f.norm(2, dim=1, keepdim=True) + 1e-08

INPUT_DIM = 1024       # densenet121 feature channels
NUM_BOTTLENECK = 512   # ClassBlock num_bottleneck
CLASS_NUM = 128        # small synthetic class count

VMEM_LIMIT_BYTES = 40 * 1024 * 1024    # explicit scoped-VMEM request
INPUT_VMEM_BUDGET = 24 * 1024 * 1024   # budget for double-buffered input blocks


def ft_net_dense_head_kernel(x_ref, w1_ref, b1_ref, w2_ref, b2_ref,
                             logits_ref, f_ref):
    """Fused avgpool + ClassBlock. BN and 1/(H*W) are pre-folded into w1/b1.

    x_ref:      (tb, H*W, C) bf16  backbone feature maps, lane-dense in C
    w1_ref:     (C, NB)      bf16  Linear(1024,512) weight * gamma/sqrt(var+eps) / (H*W)
    b1_ref:     (1, NB)      f32   Linear bias with BN folded in
    w2_ref:     (NB, NC)     bf16  Linear(512,class_num) weight, (in,out)
    b2_ref:     (1, NC)      f32
    logits_ref: (tb, NC)     f32   classifier logits
    f_ref:      (tb, NB)     f32   L2-normalized bottleneck features
    """
    # AdaptiveAvgPool2d((1,1)) as a sublane-axis sum accumulated in f32
    # (the 1/(H*W) divisor lives in w1).
    pooled = jnp.sum(x_ref[...].astype(jnp.float32), axis=1)              # (tb, C)

    # add_block: Linear(1024,512) + BatchNorm1d(512) (folded). bf16 MXU
    # operands, f32 accumulation.
    h = jnp.dot(pooled.astype(jnp.bfloat16), w1_ref[...],
                preferred_element_type=jnp.float32) + b1_ref[...]         # (tb, NB)

    # feature branch: f = h / (||h||_2 + 1e-8); rsqrt on the EUP, eps^2 keeps
    # all-zero rows finite (matches the +1e-8 semantics in that case).
    sq = jnp.sum(h * h, axis=1, keepdims=True)                            # (tb, 1)
    f_ref[...] = h * lax.rsqrt(sq + NORM_EPS * NORM_EPS)

    # classifier: Dropout(0.5) is identity in eval; Linear(512, class_num).
    logits_ref[...] = jnp.dot(h.astype(jnp.bfloat16), w2_ref[...],
                              preferred_element_type=jnp.float32) + b2_ref[...]


def fold_and_cast_params(params, hw, running_mean=None, running_var=None):
    """Fold eval BatchNorm1d + the 1/(H*W) pooling divisor into Linear(1024,512).

    w1' = w1 * (gamma / sqrt(var + eps)) / (H*W)
    b1' = (b1 - mean) * gamma / sqrt(var + eps) + beta
    """
    w1, b1, gamma, beta, w2, b2 = params
    nb = w1.shape[1]
    if running_mean is None:
        running_mean = jnp.zeros((nb,), jnp.float32)
    if running_var is None:
        running_var = jnp.ones((nb,), jnp.float32)
    scale = gamma.reshape(-1) / jnp.sqrt(running_var + BN_EPS)            # (NB,)
    w1f = (w1 * (scale[None, :] / float(hw))).astype(jnp.bfloat16)        # (C, NB)
    b1f = ((b1.reshape(-1) - running_mean) * scale
           + beta.reshape(-1)).reshape(1, nb).astype(jnp.float32)         # (1, NB)
    w2c = w2.astype(jnp.bfloat16)                                         # (NB, NC)
    b2c = b2.reshape(1, -1).astype(jnp.float32)                           # (1, NC)
    return w1f, b1f, w2c, b2c


def _round_up(x, m):
    return ((x + m - 1) // m) * m


def _choose_batch_tile(b, hw, c, in_itemsize, *, max_tile, input_vmem_budget):
    """Pick the batch tile from H*W and the VMEM budget (double-buffered input)."""
    hw_pad = _round_up(hw, 16)      # bf16 sublane packing granularity
    c_pad = _round_up(c, 128)       # lane granularity
    bytes_per_batch_row = hw_pad * c_pad * in_itemsize
    tb = (input_vmem_budget // (2 * bytes_per_batch_row)) // 8 * 8
    tb = max(8, min(tb, max_tile))
    # Ensure >= 2 grid steps for mid-size batches so v7x's two TensorCores
    # both get work ("parallel" semantics shards the grid).
    if b >= 16 and pl.cdiv(b, tb) < 2:
        tb = _round_up(pl.cdiv(b, 2), 8)
    if b < tb:
        tb = b if b <= 8 else _round_up(b, 8)
    return tb


def ft_net_dense_head(x_feat, folded_params, *, max_batch_tile=128,
                      input_vmem_budget=INPUT_VMEM_BUDGET,
                      vmem_limit_bytes=VMEM_LIMIT_BYTES):
    """x_feat: (B, H, W, C) NHWC backbone feature maps (TPU-native layout).

    Returns (logits, f) as float32. Accepting NHWC avoids any standalone
    HBM transpose of the largest tensor; (B,H,W,C) -> (B,H*W,C) is free.
    """
    b, h, w, c = x_feat.shape
    hw = h * w
    x3 = x_feat.reshape(b, hw, c).astype(jnp.bfloat16)   # free reshape, bf16 stream

    w1, b1, w2, b2 = folded_params
    nb = w1.shape[1]
    nc = w2.shape[1]

    tb = _choose_batch_tile(b, hw, c, x3.dtype.itemsize,
                            max_tile=max_batch_tile,
                            input_vmem_budget=input_vmem_budget)
    grid = (pl.cdiv(b, tb),)   # cdiv grid: ragged batches never force a whole-batch block

    x_spec = pl.BlockSpec((tb, hw, c), lambda i: (i, 0, 0))
    out_specs = (pl.BlockSpec((tb, nc), lambda i: (i, 0)),
                 pl.BlockSpec((tb, nb), lambda i: (i, 0)))
    out_shape = (jax.ShapeDtypeStruct((b, nc), jnp.float32),
                 jax.ShapeDtypeStruct((b, nb), jnp.float32))
    cparams = pltpu.CompilerParams(dimension_semantics=("parallel",),
                                   vmem_limit_bytes=vmem_limit_bytes)

    def const_spec(shape, single_buffered):
        idx = lambda i: (0, 0)
        if single_buffered:
            # Constant-index weights: no second buffer needed.
            return pl.BlockSpec(shape, idx, pipeline_mode=pl.Buffered(1))
        return pl.BlockSpec(shape, idx)

    def run(single_buffer_weights):
        return pl.pallas_call(
            ft_net_dense_head_kernel,
            grid=grid,
            in_specs=[
                x_spec,
                const_spec((c, nb), single_buffer_weights),
                const_spec((1, nb), single_buffer_weights),
                const_spec((nb, nc), single_buffer_weights),
                const_spec((1, nc), single_buffer_weights),
            ],
            out_specs=out_specs,
            out_shape=out_shape,
            compiler_params=cparams,
        )(x3, w1, b1, w2, b2)

    try:
        logits, f = run(True)
    except Exception:
        # pipeline_mode=pl.Buffered(1) not supported on this JAX version;
        # fall back to default double-buffered weights (~1 MiB extra VMEM).
        logits, f = run(False)
    return logits, f


def init_params(key, input_dim=INPUT_DIM, num_bottleneck=NUM_BOTTLENECK,
                class_num=CLASS_NUM):
    """Deterministic synthetic init mirroring weights_init_kaiming/classifier."""
    k1, k2, k3 = jax.random.split(key, 3)
    # Linear(1024, 512): kaiming_normal_, mode='fan_out' -> std = sqrt(2/out)
    w1 = (jax.random.normal(k1, (input_dim, num_bottleneck), jnp.float32)
          * math.sqrt(2.0 / num_bottleneck))
    b1 = jnp.zeros((1, num_bottleneck), jnp.float32)
    # BatchNorm1d(512): weight ~ N(1.0, 0.02), bias = 0
    gamma = 1.0 + 0.02 * jax.random.normal(k2, (1, num_bottleneck), jnp.float32)
    beta = jnp.zeros((1, num_bottleneck), jnp.float32)
    # Linear(512, class_num): weight ~ N(0, 0.001), bias = 0
    w2 = 0.001 * jax.random.normal(k3, (num_bottleneck, class_num), jnp.float32)
    b2 = jnp.zeros((1, class_num), jnp.float32)
    return (w1, b1, gamma, beta, w2, b2)


def reference_head(x_feat, params, running_mean=None, running_var=None):
    """Pure-JAX f32 reference of the PyTorch head (eval mode), NHWC input."""
    w1, b1, gamma, beta, w2, b2 = params
    nb = w1.shape[1]
    if running_mean is None:
        running_mean = jnp.zeros((nb,), jnp.float32)
    if running_var is None:
        running_var = jnp.ones((nb,), jnp.float32)
    feats = jnp.mean(x_feat.astype(jnp.float32), axis=(1, 2))             # (B, C)
    h = feats @ w1 + b1.reshape(-1)                                       # (B, NB)
    hbn = (gamma.reshape(-1) * (h - running_mean)
           / jnp.sqrt(running_var + BN_EPS) + beta.reshape(-1))           # BN eval
    norm = jnp.linalg.norm(hbn, axis=1, keepdims=True) + NORM_EPS
    f = hbn / norm
    logits = hbn @ w2 + b2.reshape(-1)
    return logits, f


if __name__ == "__main__":
    key = jax.random.PRNGKey(0)
    k_x, k_p, k_m, k_v = jax.random.split(key, 4)

    # Synthetic densenet121 feature-map output, TPU-native NHWC bf16:
    # (B, H, W, C) = (2, 4, 4, 1024).
    B, H, W = 2, 4, 4
    x_feat = jax.random.normal(
        k_x, (B, H, W, INPUT_DIM), jnp.float32).astype(jnp.bfloat16)
    params = init_params(k_p)
    # Non-trivial eval-mode BatchNorm running stats (exercises the full fold).
    running_mean = 0.1 * jax.random.normal(k_m, (NUM_BOTTLENECK,), jnp.float32)
    running_var = 1.0 + 0.2 * jax.random.uniform(k_v, (NUM_BOTTLENECK,),
                                                 jnp.float32)
    folded = fold_and_cast_params(params, H * W, running_mean, running_var)

    logits, f = ft_net_dense_head(x_feat, folded)
    jax.block_until_ready(logits)
    jax.block_until_ready(f)

    assert logits.shape == (B, CLASS_NUM)
    assert f.shape == (B, NUM_BOTTLENECK)

    # f rows are (approximately) unit L2 norm
    norms = jnp.linalg.norm(f, axis=1)
    assert bool(jnp.all(jnp.abs(norms - 1.0) < 5e-3)), norms

    # Match the f32 reference within bf16 input/weight tolerance
    logits_ref, f_ref = reference_head(x_feat, params, running_mean, running_var)
    assert bool(jnp.max(jnp.abs(f - f_ref)) < 1e-2)
    assert bool(jnp.max(jnp.abs(logits - logits_ref)) < 5e-3)

    print("KERNEL_OK")
</pallas_src>

<mosaic_0001>
module attributes {stable_mosaic.version = 11 : i64} {
  func.func @ft_net_dense_head_kernel(%arg0: i32, %arg1: memref<2x16x1024xbf16, #tpu.memory_space<vmem>>, %arg2: memref<1024x512xbf16, #tpu.memory_space<vmem>>, %arg3: memref<1x512xf32, #tpu.memory_space<vmem>>, %arg4: memref<512x128xbf16, #tpu.memory_space<vmem>>, %arg5: memref<1x128xf32, #tpu.memory_space<vmem>>, %arg6: memref<2x128xf32, #tpu.memory_space<vmem>>, %arg7: memref<2x512xf32, #tpu.memory_space<vmem>>) attributes {dimension_semantics = [#tpu.dimension_semantics<parallel>], iteration_bounds = array<i64: 1>, scalar_prefetch = 0 : i64, scratch_operands = 0 : i64, tpu.core_type = #tpu.core_type<tc>, window_params = [{transform_indices = @transform_0, window_bounds = array<i64: 2, 16, 1024>}, {pipeline_mode = #tpu.pipeline_mode<synchronous>, transform_indices = @transform_1, window_bounds = array<i64: 1024, 512>}, {pipeline_mode = #tpu.pipeline_mode<synchronous>, transform_indices = @transform_2, window_bounds = array<i64: 1, 512>}, {pipeline_mode = #tpu.pipeline_mode<synchronous>, transform_indices = @transform_3, window_bounds = array<i64: 512, 128>}, {pipeline_mode = #tpu.pipeline_mode<synchronous>, transform_indices = @transform_4, window_bounds = array<i64: 1, 128>}, {transform_indices = @transform_5, window_bounds = array<i64: 2, 128>}, {transform_indices = @transform_6, window_bounds = array<i64: 2, 512>}]} {
    %c0 = arith.constant 0 : index
    %c0_0 = arith.constant 0 : index
    %c0_1 = arith.constant 0 : index
    %0 = vector.load %arg1[%c0, %c0_0, %c0_1] : memref<2x16x1024xbf16, #tpu.memory_space<vmem>>, vector<2x16x1024xbf16>
    %1 = arith.extf %0 : vector<2x16x1024xbf16> to vector<2x16x1024xf32>
    %cst = arith.constant dense<0.000000e+00> : vector<2x1024xf32>
    %2 = vector.multi_reduction <add>, %1, %cst [1] : vector<2x16x1024xf32> to vector<2x1024xf32>
    %3 = arith.truncf %2 : vector<2x1024xf32> to vector<2x1024xbf16>
    %c0_2 = arith.constant 0 : index
    %c0_3 = arith.constant 0 : index
    %4 = vector.load %arg2[%c0_2, %c0_3] : memref<1024x512xbf16, #tpu.memory_space<vmem>>, vector<1024x512xbf16>
    %cst_4 = arith.constant dense<0.000000e+00> : vector<2x512xf32>
    %5 = tpu.matmul %3, %4, %cst_4 {dimension_numbers = #tpu.dot_dimension_numbers<[1], [0], [0], [1], [0, 0, 1, 1], [], []>} : vector<2x1024xbf16>, vector<1024x512xbf16>, vector<2x512xf32> -> vector<2x512xf32>
    %c0_5 = arith.constant 0 : index
    %c0_6 = arith.constant 0 : index
    %6 = vector.load %arg3[%c0_5, %c0_6] : memref<1x512xf32, #tpu.memory_space<vmem>>, vector<1x512xf32>
    %7 = vector.broadcast %6 : vector<1x512xf32> to vector<2x512xf32>
    %8 = arith.addf %5, %7 : vector<2x512xf32>
    %9 = arith.mulf %8, %8 : vector<2x512xf32>
    %cst_7 = arith.constant dense<0.000000e+00> : vector<2xf32>
    %10 = vector.multi_reduction <add>, %9, %cst_7 [1] : vector<2x512xf32> to vector<2xf32>
    %11 = vector.shape_cast %10 : vector<2xf32> to vector<2x1xf32>
    %cst_8 = arith.constant 1.000000e-16 : f32
    %12 = vector.broadcast %cst_8 : f32 to vector<2x1xf32>
    %13 = arith.addf %11, %12 : vector<2x1xf32>
    %14 = math.rsqrt %13 : vector<2x1xf32>
    %15 = vector.broadcast %14 : vector<2x1xf32> to vector<2x512xf32>
    %16 = arith.mulf %8, %15 : vector<2x512xf32>
    %c0_9 = arith.constant 0 : index
    %c0_10 = arith.constant 0 : index
    %17 = vector.load %arg7[%c0_9, %c0_10] : memref<2x512xf32, #tpu.memory_space<vmem>>, vector<2x512xf32>
    tpu.vector_store %arg7[%c0_9, %c0_10], %16 {strides = array<i32>} : memref<2x512xf32, #tpu.memory_space<vmem>>, vector<2x512xf32>,
    %18 = arith.truncf %8 : vector<2x512xf32> to vector<2x512xbf16>
    %c0_11 = arith.constant 0 : index
    %c0_12 = arith.constant 0 : index
    %19 = vector.load %arg4[%c0_11, %c0_12] : memref<512x128xbf16, #tpu.memory_space<vmem>>, vector<512x128xbf16>
    %cst_13 = arith.constant dense<0.000000e+00> : vector<2x128xf32>
    %20 = tpu.matmul %18, %19, %cst_13 {dimension_numbers = #tpu.dot_dimension_numbers<[1], [0], [0], [1], [0, 0, 1, 1], [], []>} : vector<2x512xbf16>, vector<512x128xbf16>, vector<2x128xf32> -> vector<2x128xf32>
    %c0_14 = arith.constant 0 : index
    %c0_15 = arith.constant 0 : index
    %21 = vector.load %arg5[%c0_14, %c0_15] : memref<1x128xf32, #tpu.memory_space<vmem>>, vector<1x128xf32>
    %22 = vector.broadcast %21 : vector<1x128xf32> to vector<2x128xf32>
    %23 = arith.addf %20, %22 : vector<2x128xf32>
    %c0_16 = arith.constant 0 : index
    %c0_17 = arith.constant 0 : index
    %24 = vector.load %arg6[%c0_16, %c0_17] : memref<2x128xf32, #tpu.memory_space<vmem>>, vector<2x128xf32>
    tpu.vector_store %arg6[%c0_16, %c0_17], %23 {strides = array<i32>} : memref<2x128xf32, #tpu.memory_space<vmem>>, vector<2x128xf32>,
    return
  }
  func.func @transform_0(%arg0: i32) -> (i32, i32, i32) {
    %c0_i32 = arith.constant 0 : i32
    %c0_i32_0 = arith.constant 0 : i32
    %c0_i32_1 = arith.constant 0 : i32
    return %arg0, %c0_i32, %c0_i32_0 : i32, i32, i32
  }
  func.func @transform_1(%arg0: i32) -> (i32, i32) {
    %c0_i32 = arith.constant 0 : i32
    %c0_i32_0 = arith.constant 0 : i32
    %c0_i32_1 = arith.constant 0 : i32
    return %c0_i32, %c0_i32_0 : i32, i32
  }
  func.func @transform_2(%arg0: i32) -> (i32, i32) {
    %c0_i32 = arith.constant 0 : i32
    %c0_i32_0 = arith.constant 0 : i32
    %c0_i32_1 = arith.constant 0 : i32
    return %c0_i32, %c0_i32_0 : i32, i32
  }
  func.func @transform_3(%arg0: i32) -> (i32, i32) {
    %c0_i32 = arith.constant 0 : i32
    %c0_i32_0 = arith.constant 0 : i32
    %c0_i32_1 = arith.constant 0 : i32
    return %c0_i32, %c0_i32_0 : i32, i32
  }
  func.func @transform_4(%arg0: i32) -> (i32, i32) {
    %c0_i32 = arith.constant 0 : i32
    %c0_i32_0 = arith.constant 0 : i32
    %c0_i32_1 = arith.constant 0 : i32
    return %c0_i32, %c0_i32_0 : i32, i32
  }
  func.func @transform_5(%arg0: i32) -> (i32, i32) {
    %c0_i32 = arith.constant 0 : i32
    %c0_i32_0 = arith.constant 0 : i32
    return %arg0, %c0_i32 : i32, i32
  }
  func.func @transform_6(%arg0: i32) -> (i32, i32) {
    %c0_i32 = arith.constant 0 : i32
    %c0_i32_0 = arith.constant 0 : i32
    return %arg0, %c0_i32 : i32, i32
  }
}

module attributes {stable_mosaic.version = 11 : i64} {
  func.func @ft_net_dense_head_kernel(%arg0: i32, %arg1: memref<2x16x1024xbf16, #tpu.memory_space<vmem>>, %arg2: memref<1024x512xbf16, #tpu.memory_space<vmem>>, %arg3: memref<1x512xf32, #tpu.memory_space<vmem>>, %arg4: memref<512x128xbf16, #tpu.memory_space<vmem>>, %arg5: memref<1x128xf32, #tpu.memory_space<vmem>>, %arg6: memref<2x128xf32, #tpu.memory_space<vmem>>, %arg7: memref<2x512xf32, #tpu.memory_space<vmem>>) attributes {dimension_semantics = [#tpu.dimension_semantics<parallel>], iteration_bounds = array<i64: 1>, scalar_prefetch = 0 : i64, scratch_operands = 0 : i64, tpu.core_type = #tpu.core_type<tc>, window_params = [{transform_indices = @transform_0, window_bounds = array<i64: 2, 16, 1024>}, {pipeline_mode = #tpu.pipeline_mode<synchronous>, transform_indices = @transform_1, window_bounds = array<i64: 1024, 512>}, {pipeline_mode = #tpu.pipeline_mode<synchronous>, transform_indices = @transform_2, window_bounds = array<i64: 1, 512>}, {pipeline_mode = #tpu.pipeline_mode<synchronous>, transform_indices = @transform_3, window_bounds = array<i64: 512, 128>}, {pipeline_mode = #tpu.pipeline_mode<synchronous>, transform_indices = @transform_4, window_bounds = array<i64: 1, 128>}, {transform_indices = @transform_5, window_bounds = array<i64: 2, 128>}, {transform_indices = @transform_6, window_bounds = array<i64: 2, 512>}]} {
    %c0 = arith.constant 0 : index
    %c0_0 = arith.constant 0 : index
    %c0_1 = arith.constant 0 : index
    %0 = vector.load %arg1[%c0, %c0_0, %c0_1] : memref<2x16x1024xbf16, #tpu.memory_space<vmem>>, vector<2x16x1024xbf16>
    %1 = arith.extf %0 : vector<2x16x1024xbf16> to vector<2x16x1024xf32>
    %cst = arith.constant dense<0.000000e+00> : vector<2x1024xf32>
    %2 = vector.multi_reduction <add>, %1, %cst [1] : vector<2x16x1024xf32> to vector<2x1024xf32>
    %3 = arith.truncf %2 : vector<2x1024xf32> to vector<2x1024xbf16>
    %c0_2 = arith.constant 0 : index
    %c0_3 = arith.constant 0 : index
    %4 = vector.load %arg2[%c0_2, %c0_3] : memref<1024x512xbf16, #tpu.memory_space<vmem>>, vector<1024x512xbf16>
    %cst_4 = arith.constant dense<0.000000e+00> : vector<2x512xf32>
    %5 = tpu.matmul %3, %4, %cst_4 {dimension_numbers = #tpu.dot_dimension_numbers<[1], [0], [0], [1], [0, 0, 1, 1], [], []>} : vector<2x1024xbf16>, vector<1024x512xbf16>, vector<2x512xf32> -> vector<2x512xf32>
    %c0_5 = arith.constant 0 : index
    %c0_6 = arith.constant 0 : index
    %6 = vector.load %arg3[%c0_5, %c0_6] : memref<1x512xf32, #tpu.memory_space<vmem>>, vector<1x512xf32>
    %7 = vector.broadcast %6 : vector<1x512xf32> to vector<2x512xf32>
    %8 = arith.addf %5, %7 : vector<2x512xf32>
    %9 = arith.mulf %8, %8 : vector<2x512xf32>
    %cst_7 = arith.constant dense<0.000000e+00> : vector<2xf32>
    %10 = vector.multi_reduction <add>, %9, %cst_7 [1] : vector<2x512xf32> to vector<2xf32>
    %11 = vector.shape_cast %10 : vector<2xf32> to vector<2x1xf32>
    %cst_8 = arith.constant 1.000000e-16 : f32
    %12 = vector.broadcast %cst_8 : f32 to vector<2x1xf32>
    %13 = arith.addf %11, %12 : vector<2x1xf32>
    %14 = math.rsqrt %13 : vector<2x1xf32>
    %15 = vector.broadcast %14 : vector<2x1xf32> to vector<2x512xf32>
    %16 = arith.mulf %8, %15 : vector<2x512xf32>
    %c0_9 = arith.constant 0 : index
    %c0_10 = arith.constant 0 : index
    %17 = vector.load %arg7[%c0_9, %c0_10] : memref<2x512xf32, #tpu.memory_space<vmem>>, vector<2x512xf32>
    tpu.vector_store %arg7[%c0_9, %c0_10], %16 {strides = array<i32>} : memref<2x512xf32, #tpu.memory_space<vmem>>, vector<2x512xf32>,
    %18 = arith.truncf %8 : vector<2x512xf32> to vector<2x512xbf16>
    %c0_11 = arith.constant 0 : index
    %c0_12 = arith.constant 0 : index
    %19 = vector.load %arg4[%c0_11, %c0_12] : memref<512x128xbf16, #tpu.memory_space<vmem>>, vector<512x128xbf16>
    %cst_13 = arith.constant dense<0.000000e+00> : vector<2x128xf32>
    %20 = tpu.matmul %18, %19, %cst_13 {dimension_numbers = #tpu.dot_dimension_numbers<[1], [0], [0], [1], [0, 0, 1, 1], [], []>} : vector<2x512xbf16>, vector<512x128xbf16>, vector<2x128xf32> -> vector<2x128xf32>
    %c0_14 = arith.constant 0 : index
    %c0_15 = arith.constant 0 : index
    %21 = vector.load %arg5[%c0_14, %c0_15] : memref<1x128xf32, #tpu.memory_space<vmem>>, vector<1x128xf32>
    %22 = vector.broadcast %21 : vector<1x128xf32> to vector<2x128xf32>
    %23 = arith.addf %20, %22 : vector<2x128xf32>
    %c0_16 = arith.constant 0 : index
    %c0_17 = arith.constant 0 : index
    %24 = vector.load %arg6[%c0_16, %c0_17] : memref<2x128xf32, #tpu.memory_space<vmem>>, vector<2x128xf32>
    tpu.vector_store %arg6[%c0_16, %c0_17], %23 {strides = array<i32>} : memref<2x128xf32, #tpu.memory_space<vmem>>, vector<2x128xf32>,
    return
  }
  func.func @transform_0(%arg0: i32) -> (i32, i32, i32) {
    %c0_i32 = arith.constant 0 : i32
    %c0_i32_0 = arith.constant 0 : i32
    %c0_i32_1 = arith.constant 0 : i32
    return %arg0, %c0_i32, %c0_i32_0 : i32, i32, i32
  }
  func.func @transform_1(%arg0: i32) -> (i32, i32) {
    %c0_i32 = arith.constant 0 : i32
    %c0_i32_0 = arith.constant 0 : i32
    %c0_i32_1 = arith.constant 0 : i32
    return %c0_i32, %c0_i32_0 : i32, i32
  }
  func.func @transform_2(%arg0: i32) -> (i32, i32) {
    %c0_i32 = arith.constant 0 : i32
    %c0_i32_0 = arith.constant 0 : i32
    %c0_i32_1 = arith.constant 0 : i32
    return %c0_i32, %c0_i32_0 : i32, i32
  }
  func.func @transform_3(%arg0: i32) -> (i32, i32) {
    %c0_i32 = arith.constant 0 : i32
    %c0_i32_0 = arith.constant 0 : i32
    %c0_i32_1 = arith.constant 0 : i32
    return %c0_i32, %c0_i32_0 : i32, i32
  }
  func.func @transform_4(%arg0: i32) -> (i32, i32) {
    %c0_i32 = arith.constant 0 : i32
    %c0_i32_0 = arith.constant 0 : i32
    %c0_i32_1 = arith.constant 0 : i32
    return %c0_i32, %c0_i32_0 : i32, i32
  }
  func.func @transform_5(%arg0: i32) -> (i32, i32) {
    %c0_i32 = arith.constant 0 : i32
    %c0_i32_0 = arith.constant 0 : i32
    return %arg0, %c0_i32 : i32, i32
  }
  func.func @transform_6(%arg0: i32) -> (i32, i32) {
    %c0_i32 = arith.constant 0 : i32
    %c0_i32_0 = arith.constant 0 : i32
    return %arg0, %c0_i32 : i32, i32
  }
}

</mosaic_0001>

<llo_original>
// kernel: tpu_custom_call.1
$region0: #{tpu_custom_call.1}
  #allocation0 [shape = 'u32[]', space=smem, size = 0x4, offset = 0x4, fixed_abs, tag = 'smem constant byte address 0x4 - core index']
  #allocation1 [shape = 'u32[144,128]{1,0:T(1,128)}', space=vmem, size = 0x12000, scoped, tag = 'internal scratch']
  %s0 = inlined_call_operand.hbm [shape: bf16[2,16,1024], index: 0, kind: input, shape index: {}]
  %s1 = inlined_call_operand.hbm [shape: bf16[1024,512], index: 1, kind: input, shape index: {}]
  %s2 = inlined_call_operand.vmem [shape: f32[1,512], index: 2, kind: input, shape index: {}]
  %s3 = inlined_call_operand.hbm [shape: bf16[512,128], index: 3, kind: input, shape index: {}]
  %s4 = inlined_call_operand.vmem [shape: f32[1,128], index: 4, kind: input, shape index: {}]
  %s5 = inlined_call_operand.hbm [shape: f32[2,128], index: 5, kind: output, shape index: {0}]
  %s6 = inlined_call_operand.hbm [shape: f32[2,512], index: 6, kind: output, shape index: {1}]
  %7 = xla_tuple %s5, %s6
  %s8 = sld [smem:[#allocation0]]
  $region50: #{tpu_custom_call.1} parent=0
    _
  %s10 = ssub.s32 1, %s8
  %s11 = scalar_select 0, %s10, %s8
  $region1: #{tpu_custom_call.1} parent=0
    #allocation2 [shape = 'u8[65536]{0}', space=vmem, size = 0x10000, scoped, tag = 'input window, operand 0, single buffered']
    #allocation3 [shape = 's32[1]{0}', space=sflag, size = 0x4, scoped, tag = 'scoped memory for tpu_custom_call.1']
    #allocation4 [shape = 's32[1]{0}', space=sflag, size = 0x4, scoped, tag = 'scoped memory for tpu_custom_call.1']
    #allocation5 [shape = 'u8[1048576]{0}', space=vmem, size = 0x100000, scoped, tag = 'input window, operand 1, single buffered']
    #allocation6 [shape = 's32[1]{0}', space=sflag, size = 0x4, scoped, tag = 'scoped memory for tpu_custom_call.1']
    #allocation7 [shape = 'u8[131072]{0}', space=vmem, size = 0x20000, scoped, tag = 'input window, operand 3, single buffered']
    #allocation8 [shape = 'u8[1024]{0}', space=vmem, size = 0x400, scoped, tag = 'output window, operand 0, single buffered']
    #allocation9 [shape = 'u8[4096]{0}', space=vmem, size = 0x1000, scoped, tag = 'output window, operand 1, single buffered']
    #allocation10 [shape = 's32[1]{0}', space=sflag, size = 0x4, scoped, tag = 'scoped memory for tpu_custom_call.1']
    %12 = vsyncpa [#allocation3], 0
    %13 = vsyncpa [#allocation6], 0
    %14 = vsyncpa [#allocation4], 0
    %15 = vsyncpa [#allocation10], 0
    // Predicated region
    $region2: #{tpu_custom_call.1} parent=1 // pred_check
      _
    $region3: #{tpu_custom_call.1} parent=1 // pred_check_branch
      %17 = sbr.rel (0) target = $region5
    $region4: #{tpu_custom_call.1} parent=1 // pred_region
      %s19 = ssub.s32 2048, 2048
      %20 = vsyncadd [#allocation3], %s19
      %s21 = sshll.u32 [#allocation2], 4
      %s22 = int_to_ptr.vmem [resolvable:$true] %s21
      %27 = dma.hbm_to_vmem [thread:$0]  %s0, 2048, %s22, [#allocation3], 512, 512, 32
    $region5: #{tpu_custom_call.1} parent=1 // pred_fallthru
      _
    // Predicated region
    $region6: #{tpu_custom_call.1} parent=1 // pred_check
      _
    $region7: #{tpu_custom_call.1} parent=1 // pred_check_branch
      %29 = sbr.rel (0) target = $region9
    $region8: #{tpu_custom_call.1} parent=1 // pred_region
      %s31 = ssub.s32 32768, 32768
      %32 = vsyncadd [#allocation6], %s31
      %s33 = sshll.u32 [#allocation5], 4
      %s34 = int_to_ptr.vmem [resolvable:$true] %s33
      %39 = dma.hbm_to_vmem [thread:$0]  %s1, 32768, %s34, [#allocation6], 256, 256, 16
    $region9: #{tpu_custom_call.1} parent=1 // pred_fallthru
      _
    // Predicated region
    $region10: #{tpu_custom_call.1} parent=1 // pred_check
      _
    $region11: #{tpu_custom_call.1} parent=1 // pred_check_branch
      %41 = sbr.rel (0) target = $region13
    $region12: #{tpu_custom_call.1} parent=1 // pred_region
      _
    $region13: #{tpu_custom_call.1} parent=1 // pred_fallthru
      _
    // Predicated region
    $region14: #{tpu_custom_call.1} parent=1 // pred_check
      _
    $region15: #{tpu_custom_call.1} parent=1 // pred_check_branch
      %43 = sbr.rel (0) target = $region17
    $region16: #{tpu_custom_call.1} parent=1 // pred_region
      %s45 = ssub.s32 4096, 4096
      %46 = vsyncadd [#allocation6], %s45
      %s47 = sshll.u32 [#allocation7], 4
      %s48 = int_to_ptr.vmem [resolvable:$true] %s47
      %53 = dma.hbm_to_vmem [thread:$0]  %s3, 4096, %s48, [#allocation6], 64, 64, 4
    $region17: #{tpu_custom_call.1} parent=1 // pred_fallthru
      _
    // Predicated region
    $region18: #{tpu_custom_call.1} parent=1 // pred_check
      _
    $region19: #{tpu_custom_call.1} parent=1 // pred_check_branch
      %55 = sbr.rel (0) target = $region21
    $region20: #{tpu_custom_call.1} parent=1 // pred_region
      _
    $region21: #{tpu_custom_call.1} parent=1 // pred_fallthru
      _
    // Predicated region
    $region22: #{tpu_custom_call.1} parent=1 // pred_check
      _
    $region23: #{tpu_custom_call.1} parent=1 // pred_check_branch
      %57 = sbr.rel (0) target = $region25
    $region24: #{tpu_custom_call.1} parent=1 // pred_region
      %58 = dma.done [#allocation3], 2048
    $region25: #{tpu_custom_call.1} parent=1 // pred_fallthru
      _
    // Predicated region
    $region26: #{tpu_custom_call.1} parent=1 // pred_check
      _
    $region27: #{tpu_custom_call.1} parent=1 // pred_check_branch
      %60 = sbr.rel (0) target = $region29
    $region28: #{tpu_custom_call.1} parent=1 // pred_region
      %61 = dma.done [#allocation6], 32768
    $region29: #{tpu_custom_call.1} parent=1 // pred_fallthru
      _
    // Predicated region
    $region30: #{tpu_custom_call.1} parent=1 // pred_check
      _
    $region31: #{tpu_custom_call.1} parent=1 // pred_check_branch
      %63 = sbr.rel (0) target = $region33
    $region32: #{tpu_custom_call.1} parent=1 // pred_region
      %64 = dma.done [#allocation6], 4096
    $region33: #{tpu_custom_call.1} parent=1 // pred_fallthru
      _
    %v66 = vld [vmem:[#allocation2] sm:$0xff]
    %v67 = vld [vmem:[#allocation2 + $0x8] sm:$0xff]
    %v68 = vld [vmem:[#allocation2 + $0x10] sm:$0xff]
    %v69 = vld [vmem:[#allocation2 + $0x18] sm:$0xff]
    %v70 = vld [vmem:[#allocation2 + $0x20] sm:$0xff]
    %v71 = vld [vmem:[#allocation2 + $0x28] sm:$0xff]
    %v72 = vld [vmem:[#allocation2 + $0x30] sm:$0xff]
    %v73 = vld [vmem:[#allocation2 + $0x38] sm:$0xff]
    %v74 = vld [vmem:[#allocation2 + $0x40] sm:$0xff]
    %v75 = vld [vmem:[#allocation2 + $0x48] sm:$0xff]
    %v76 = vld [vmem:[#allocation2 + $0x50] sm:$0xff]
    %v77 = vld [vmem:[#allocation2 + $0x58] sm:$0xff]
    %v78 = vld [vmem:[#allocation2 + $0x60] sm:$0xff]
    %v79 = vld [vmem:[#allocation2 + $0x68] sm:$0xff]
    %v80 = vld [vmem:[#allocation2 + $0x70] sm:$0xff]
    %v81 = vld [vmem:[#allocation2 + $0x78] sm:$0xff]
    %v82 = vunpack.c.l.bf16 %v66
    %v83 = vunpack.c.h.bf16 %v66
    %v84 = vunpack.c.l.bf16 %v67
    %v85 = vunpack.c.h.bf16 %v67
    %v86 = vunpack.c.l.bf16 %v68
    %v87 = vunpack.c.h.bf16 %v68
    %v88 = vunpack.c.l.bf16 %v69
    %v89 = vunpack.c.h.bf16 %v69
    %v90 = vunpack.c.l.bf16 %v70
    %v91 = vunpack.c.h.bf16 %v70
    %v92 = vunpack.c.l.bf16 %v71
    %v93 = vunpack.c.h.bf16 %v71
    %v94 = vunpack.c.l.bf16 %v72
    %v95 = vunpack.c.h.bf16 %v72
    %v96 = vunpack.c.l.bf16 %v73
    %v97 = vunpack.c.h.bf16 %v73
    %v98 = vunpack.c.l.bf16 %v74
    %v99 = vunpack.c.h.bf16 %v74
    %v100 = vunpack.c.l.bf16 %v75
    %v101 = vunpack.c.h.bf16 %v75
    %v102 = vunpack.c.l.bf16 %v76
    %v103 = vunpack.c.h.bf16 %v76
    %v104 = vunpack.c.l.bf16 %v77
    %v105 = vunpack.c.h.bf16 %v77
    %v106 = vunpack.c.l.bf16 %v78
    %v107 = vunpack.c.h.bf16 %v78
    %v108 = vunpack.c.l.bf16 %v79
    %v109 = vunpack.c.h.bf16 %v79
    %v110 = vunpack.c.l.bf16 %v80
    %v111 = vunpack.c.h.bf16 %v80
    %v112 = vunpack.c.l.bf16 %v81
    %v113 = vunpack.c.h.bf16 %v81
    %v114 = vadd.f32 %v82, %v90
    %v115 = vrot.slane %v114, 4
    %v116 = vadd.f32 %v114, %v115
    %v117 = vrot.slane %v116, 2
    %v118 = vadd.f32 %v116, %v117
    %v119 = vrot.slane %v118, 1
    %v120 = vadd.f32 %v118, %v119
    %v121 = vadd.f32 %v83, %v91
    %v122 = vrot.slane %v121, 4
    %v123 = vadd.f32 %v121, %v122
    %v124 = vrot.slane %v123, 2
    %v125 = vadd.f32 %v123, %v124
    %v126 = vrot.slane %v125, 1
    %v127 = vadd.f32 %v125, %v126
    %v128 = vadd.f32 %v84, %v92
    %v129 = vrot.slane %v128, 4
    %v130 = vadd.f32 %v128, %v129
    %v131 = vrot.slane %v130, 2
    %v132 = vadd.f32 %v130, %v131
    %v133 = vrot.slane %v132, 1
    %v134 = vadd.f32 %v132, %v133
    %v135 = vadd.f32 %v85, %v93
    %v136 = vrot.slane %v135, 4
    %v137 = vadd.f32 %v135, %v136
    %v138 = vrot.slane %v137, 2
    %v139 = vadd.f32 %v137, %v138
    %v140 = vrot.slane %v139, 1
    %v141 = vadd.f32 %v139, %v140
    %v142 = vadd.f32 %v86, %v94
    %v143 = vrot.slane %v142, 4
    %v144 = vadd.f32 %v142, %v143
    %v145 = vrot.slane %v144, 2
    %v146 = vadd.f32 %v144, %v145
    %v147 = vrot.slane %v146, 1
    %v148 = vadd.f32 %v146, %v147
    %v149 = vadd.f32 %v87, %v95
    %v150 = vrot.slane %v149, 4
    %v151 = vadd.f32 %v149, %v150
    %v152 = vrot.slane %v151, 2
    %v153 = vadd.f32 %v151, %v152
    %v154 = vrot.slane %v153, 1
    %v155 = vadd.f32 %v153, %v154
    %v156 = vadd.f32 %v88, %v96
    %v157 = vrot.slane %v156, 4
    %v158 = vadd.f32 %v156, %v157
    %v159 = vrot.slane %v158, 2
    %v160 = vadd.f32 %v158, %v159
    %v161 = vrot.slane %v160, 1
    %v162 = vadd.f32 %v160, %v161
    %v163 = vadd.f32 %v89, %v97
    %v164 = vrot.slane %v163, 4
    %v165 = vadd.f32 %v163, %v164
    %v166 = vrot.slane %v165, 2
    %v167 = vadd.f32 %v165, %v166
    %v168 = vrot.slane %v167, 1
    %v169 = vadd.f32 %v167, %v168
    %v170 = vadd.f32 %v98, %v106
    %v171 = vrot.slane %v170, 4
    %v172 = vadd.f32 %v170, %v171
    %v173 = vrot.slane %v172, 2
    %v174 = vadd.f32 %v172, %v173
    %v175 = vrot.slane %v174, 1
    %v176 = vadd.f32 %v174, %v175
    %v177 = vadd.f32 %v99, %v107
    %v178 = vrot.slane %v177, 4
    %v179 = vadd.f32 %v177, %v178
    %v180 = vrot.slane %v179, 2
    %v181 = vadd.f32 %v179, %v180
    %v182 = vrot.slane %v181, 1
    %v183 = vadd.f32 %v181, %v182
    %v184 = vadd.f32 %v100, %v108
    %v185 = vrot.slane %v184, 4
    %v186 = vadd.f32 %v184, %v185
    %v187 = vrot.slane %v186, 2
    %v188 = vadd.f32 %v186, %v187
    %v189 = vrot.slane %v188, 1
    %v190 = vadd.f32 %v188, %v189
    %v191 = vadd.f32 %v101, %v109
    %v192 = vrot.slane %v191, 4
    %v193 = vadd.f32 %v191, %v192
    %v194 = vrot.slane %v193, 2
    %v195 = vadd.f32 %v193, %v194
    %v196 = vrot.slane %v195, 1
    %v197 = vadd.f32 %v195, %v196
    %v198 = vadd.f32 %v102, %v110
    %v199 = vrot.slane %v198, 4
    %v200 = vadd.f32 %v198, %v199
    %v201 = vrot.slane %v200, 2
    %v202 = vadd.f32 %v200, %v201
    %v203 = vrot.slane %v202, 1
    %v204 = vadd.f32 %v202, %v203
    %v205 = vadd.f32 %v103, %v111
    %v206 = vrot.slane %v205, 4
    %v207 = vadd.f32 %v205, %v206
    %v208 = vrot.slane %v207, 2
    %v209 = vadd.f32 %v207, %v208
    %v210 = vrot.slane %v209, 1
    %v211 = vadd.f32 %v209, %v210
    %v212 = vadd.f32 %v104, %v112
    %v213 = vrot.slane %v212, 4
    %v214 = vadd.f32 %v212, %v213
    %v215 = vrot.slane %v214, 2
    %v216 = vadd.f32 %v214, %v215
    %v217 = vrot.slane %v216, 1
    %v218 = vadd.f32 %v216, %v217
    %v219 = vadd.f32 %v105, %v113
    %v220 = vrot.slane %v219, 4
    %v221 = vadd.f32 %v219, %v220
    %v222 = vrot.slane %v221, 2
    %v223 = vadd.f32 %v221, %v222
    %v224 = vrot.slane %v223, 1
    %v225 = vadd.f32 %v223, %v224
    %v226 = vpack.c.bf16 %v120, %v120
    %v227 = vpack.c.bf16 %v127, %v127
    %v228 = vpack.c.bf16 %v134, %v134
    %v229 = vpack.c.bf16 %v141, %v141
    %v230 = vpack.c.bf16 %v148, %v148
    %v231 = vpack.c.bf16 %v155, %v155
    %v232 = vpack.c.bf16 %v162, %v162
    %v233 = vpack.c.bf16 %v169, %v169
    %v234 = vpack.c.bf16 %v176, %v176
    %v235 = vpack.c.bf16 %v183, %v183
    %v236 = vpack.c.bf16 %v190, %v190
    %v237 = vpack.c.bf16 %v197, %v197
    %v238 = vpack.c.bf16 %v204, %v204
    %v239 = vpack.c.bf16 %v211, %v211
    %v240 = vpack.c.bf16 %v218, %v218
    %v241 = vpack.c.bf16 %v225, %v225
    %v242 = vld [vmem:[#allocation5] sm:$0xff]
    %v243 = vld [vmem:[#allocation5 + $0x8] sm:$0xff]
    %v244 = vld [vmem:[#allocation5 + $0x10] sm:$0xff]
    %v245 = vld [vmem:[#allocation5 + $0x18] sm:$0xff]
    %v246 = vld [vmem:[#allocation5 + $0x20] sm:$0xff]
    %v247 = vld [vmem:[#allocation5 + $0x28] sm:$0xff]
    %v248 = vld [vmem:[#allocation5 + $0x30] sm:$0xff]
    %v249 = vld [vmem:[#allocation5 + $0x38] sm:$0xff]
    %v250 = vld [vmem:[#allocation5 + $0x40] sm:$0xff]
    %v251 = vld [vmem:[#allocation5 + $0x48] sm:$0xff]
    %v252 = vld [vmem:[#allocation5 + $0x50] sm:$0xff]
    %v253 = vld [vmem:[#allocation5 + $0x58] sm:$0xff]
    %v254 = vld [vmem:[#allocation5 + $0x60] sm:$0xff]
    %v255 = vld [vmem:[#allocation5 + $0x68] sm:$0xff]
    %v256 = vld [vmem:[#allocation5 + $0x70] sm:$0xff]
    %v257 = vld [vmem:[#allocation5 + $0x78] sm:$0xff]
    %v258 = vld [vmem:[#allocation5 + $0x80] sm:$0xff]
    %v259 = vld [vmem:[#allocation5 + $0x88] sm:$0xff]
    %v260 = vld [vmem:[#allocation5 + $0x90] sm:$0xff]
    %v261 = vld [vmem:[#allocation5 + $0x98] sm:$0xff]
    %v262 = vld [vmem:[#allocation5 + $0xa0] sm:$0xff]
    %v263 = vld [vmem:[#allocation5 + $0xa8] sm:$0xff]
    %v264 = vld [vmem:[#allocation5 + $0xb0] sm:$0xff]
    %v265 = vld [vmem:[#allocation5 + $0xb8] sm:$0xff]
    %v266 = vld [vmem:[#allocation5 + $0xc0] sm:$0xff]
    %v267 = vld [vmem:[#allocation5 + $0xc8] sm:$0xff]
    %v268 = vld [vmem:[#allocation5 + $0xd0] sm:$0xff]
    %v269 = vld [vmem:[#allocation5 + $0xd8] sm:$0xff]
    %v270 = vld [vmem:[#allocation5 + $0xe0] sm:$0xff]
    %v271 = vld [vmem:[#allocation5 + $0xe8] sm:$0xff]
    %v272 = vld [vmem:[#allocation5 + $0xf0] sm:$0xff]
    %v273 = vld [vmem:[#allocation5 + $0xf8] sm:$0xff]
    %v274 = vld [vmem:[#allocation5 + $0x100] sm:$0xff]
    %v275 = vld [vmem:[#allocation5 + $0x108] sm:$0xff]
    %v276 = vld [vmem:[#allocation5 + $0x110] sm:$0xff]
    %v277 = vld [vmem:[#allocation5 + $0x118] sm:$0xff]
    %v278 = vld [vmem:[#allocation5 + $0x120] sm:$0xff]
    %v279 = vld [vmem:[#allocation5 + $0x128] sm:$0xff]
    %v280 = vld [vmem:[#allocation5 + $0x130] sm:$0xff]
    %v281 = vld [vmem:[#allocation5 + $0x138] sm:$0xff]
    %v282 = vld [vmem:[#allocation5 + $0x140] sm:$0xff]
    %v283 = vld [vmem:[#allocation5 + $0x148] sm:$0xff]
    %v284 = vld [vmem:[#allocation5 + $0x150] sm:$0xff]
    %v285 = vld [vmem:[#allocation5 + $0x158] sm:$0xff]
    %v286 = vld [vmem:[#allocation5 + $0x160] sm:$0xff]
    %v287 = vld [vmem:[#allocation5 + $0x168] sm:$0xff]
    %v288 = vld [vmem:[#allocation5 + $0x170] sm:$0xff]
    %v289 = vld [vmem:[#allocation5 + $0x178] sm:$0xff]
    %v290 = vld [vmem:[#allocation5 + $0x180] sm:$0xff]
    %v291 = vld [vmem:[#allocation5 + $0x188] sm:$0xff]
    %v292 = vld [vmem:[#allocation5 + $0x190] sm:$0xff]
    %v293 = vld [vmem:[#allocation5 + $0x198] sm:$0xff]
    %v294 = vld [vmem:[#allocation5 + $0x1a0] sm:$0xff]
    %v295 = vld [vmem:[#allocation5 + $0x1a8] sm:$0xff]
    %v296 = vld [vmem:[#allocation5 + $0x1b0] sm:$0xff]
    %v297 = vld [vmem:[#allocation5 + $0x1b8] sm:$0xff]
    %v298 = vld [vmem:[#allocation5 + $0x1c0] sm:$0xff]
    %v299 = vld [vmem:[#allocation5 + $0x1c8] sm:$0xff]
    %v300 = vld [vmem:[#allocation5 + $0x1d0] sm:$0xff]
    %v301 = vld [vmem:[#allocation5 + $0x1d8] sm:$0xff]
    %v302 = vld [vmem:[#allocation5 + $0x1e0] sm:$0xff]
    %v303 = vld [vmem:[#allocation5 + $0x1e8] sm:$0xff]
    %v304 = vld [vmem:[#allocation5 + $0x1f0] sm:$0xff]
    %v305 = vld [vmem:[#allocation5 + $0x1f8] sm:$0xff]
    %v306 = vld [vmem:[#allocation5 + $0x200] sm:$0xff]
    %v307 = vld [vmem:[#allocation5 + $0x208] sm:$0xff]
    %v308 = vld [vmem:[#allocation5 + $0x210] sm:$0xff]
    %v309 = vld [vmem:[#allocation5 + $0x218] sm:$0xff]
    %v310 = vld [vmem:[#allocation5 + $0x220] sm:$0xff]
    %v311 = vld [vmem:[#allocation5 + $0x228] sm:$0xff]
    %v312 = vld [vmem:[#allocation5 + $0x230] sm:$0xff]
    %v313 = vld [vmem:[#allocation5 + $0x238] sm:$0xff]
    %v314 = vld [vmem:[#allocation5 + $0x240] sm:$0xff]
    %v315 = vld [vmem:[#allocation5 + $0x248] sm:$0xff]
    %v316 = vld [vmem:[#allocation5 + $0x250] sm:$0xff]
    %v317 = vld [vmem:[#allocation5 + $0x258] sm:$0xff]
    %v318 = vld [vmem:[#allocation5 + $0x260] sm:$0xff]
    %v319 = vld [vmem:[#allocation5 + $0x268] sm:$0xff]
    %v320 = vld [vmem:[#allocation5 + $0x270] sm:$0xff]
    %v321 = vld [vmem:[#allocation5 + $0x278] sm:$0xff]
    %v322 = vld [vmem:[#allocation5 + $0x280] sm:$0xff]
    %v323 = vld [vmem:[#allocation5 + $0x288] sm:$0xff]
    %v324 = vld [vmem:[#allocation5 + $0x290] sm:$0xff]
    %v325 = vld [vmem:[#allocation5 + $0x298] sm:$0xff]
    %v326 = vld [vmem:[#allocation5 + $0x2a0] sm:$0xff]
    %v327 = vld [vmem:[#allocation5 + $0x2a8] sm:$0xff]
    %v328 = vld [vmem:[#allocation5 + $0x2b0] sm:$0xff]
    %v329 = vld [vmem:[#allocation5 + $0x2b8] sm:$0xff]
    %v330 = vld [vmem:[#allocation5 + $0x2c0] sm:$0xff]
    %v331 = vld [vmem:[#allocation5 + $0x2c8] sm:$0xff]
    %v332 = vld [vmem:[#allocation5 + $0x2d0] sm:$0xff]
    %v333 = vld [vmem:[#allocation5 + $0x2d8] sm:$0xff]
    %v334 = vld [vmem:[#allocation5 + $0x2e0] sm:$0xff]
    %v335 = vld [vmem:[#allocation5 + $0x2e8] sm:$0xff]
    %v336 = vld [vmem:[#allocation5 + $0x2f0] sm:$0xff]
    %v337 = vld [vmem:[#allocation5 + $0x2f8] sm:$0xff]
    %v338 = vld [vmem:[#allocation5 + $0x300] sm:$0xff]
    %v339 = vld [vmem:[#allocation5 + $0x308] sm:$0xff]
    %v340 = vld [vmem:[#allocation5 + $0x310] sm:$0xff]
    %v341 = vld [vmem:[#allocation5 + $0x318] sm:$0xff]
    %v342 = vld [vmem:[#allocation5 + $0x320] sm:$0xff]
    %v343 = vld [vmem:[#allocation5 + $0x328] sm:$0xff]
    %v344 = vld [vmem:[#allocation5 + $0x330] sm:$0xff]
    %v345 = vld [vmem:[#allocation5 + $0x338] sm:$0xff]
    %v346 = vld [vmem:[#allocation5 + $0x340] sm:$0xff]
    %v347 = vld [vmem:[#allocation5 + $0x348] sm:$0xff]
    %v348 = vld [vmem:[#allocation5 + $0x350] sm:$0xff]
    %v349 = vld [vmem:[#allocation5 + $0x358] sm:$0xff]
    %v350 = vld [vmem:[#allocation5 + $0x360] sm:$0xff]
    %v351 = vld [vmem:[#allocation5 + $0x368] sm:$0xff]
    %v352 = vld [vmem:[#allocation5 + $0x370] sm:$0xff]
    %v353 = vld [vmem:[#allocation5 + $0x378] sm:$0xff]
    %v354 = vld [vmem:[#allocation5 + $0x380] sm:$0xff]
    %v355 = vld [vmem:[#allocation5 + $0x388] sm:$0xff]
    %v356 = vld [vmem:[#allocation5 + $0x390] sm:$0xff]
    %v357 = vld [vmem:[#allocation5 + $0x398] sm:$0xff]
    %v358 = vld [vmem:[#allocation5 + $0x3a0] sm:$0xff]
    %v359 = vld [vmem:[#allocation5 + $0x3a8] sm:$0xff]
    %v360 = vld [vmem:[#allocation5 + $0x3b0] sm:$0xff]
    %v361 = vld [vmem:[#allocation5 + $0x3b8] sm:$0xff]
    %v362 = vld [vmem:[#allocation5 + $0x3c0] sm:$0xff]
    %v363 = vld [vmem:[#allocation5 + $0x3c8] sm:$0xff]
    %v364 = vld [vmem:[#allocation5 + $0x3d0] sm:$0xff]
    %v365 = vld [vmem:[#allocation5 + $0x3d8] sm:$0xff]
    %v366 = vld [vmem:[#allocation5 + $0x3e0] sm:$0xff]
    %v367 = vld [vmem:[#allocation5 + $0x3e8] sm:$0xff]
    %v368 = vld [vmem:[#allocation5 + $0x3f0] sm:$0xff]
    %v369 = vld [vmem:[#allocation5 + $0x3f8] sm:$0xff]
    %v370 = vld [vmem:[#allocation5 + $0x400] sm:$0xff]
    %v371 = vld [vmem:[#allocation5 + $0x408] sm:$0xff]
    %v372 = vld [vmem:[#allocation5 + $0x410] sm:$0xff]
    %v373 = vld [vmem:[#allocation5 + $0x418] sm:$0xff]
    %v374 = vld [vmem:[#allocation5 + $0x420] sm:$0xff]
    %v375 = vld [vmem:[#allocation5 + $0x428] sm:$0xff]
    %v376 = vld [vmem:[#allocation5 + $0x430] sm:$0xff]
    %v377 = vld [vmem:[#allocation5 + $0x438] sm:$0xff]
    %v378 = vld [vmem:[#allocation5 + $0x440] sm:$0xff]
    %v379 = vld [vmem:[#allocation5 + $0x448] sm:$0xff]
    %v380 = vld [vmem:[#allocation5 + $0x450] sm:$0xff]
    %v381 = vld [vmem:[#allocation5 + $0x458] sm:$0xff]
    %v382 = vld [vmem:[#allocation5 + $0x460] sm:$0xff]
    %v383 = vld [vmem:[#allocation5 + $0x468] sm:$0xff]
    %v384 = vld [vmem:[#allocation5 + $0x470] sm:$0xff]
    %v385 = vld [vmem:[#allocation5 + $0x478] sm:$0xff]
    %v386 = vld [vmem:[#allocation5 + $0x480] sm:$0xff]
    %v387 = vld [vmem:[#allocation5 + $0x488] sm:$0xff]
    %v388 = vld [vmem:[#allocation5 + $0x490] sm:$0xff]
    %v389 = vld [vmem:[#allocation5 + $0x498] sm:$0xff]
    %v390 = vld [vmem:[#allocation5 + $0x4a0] sm:$0xff]
    %v391 = vld [vmem:[#allocation5 + $0x4a8] sm:$0xff]
    %v392 = vld [vmem:[#allocation5 + $0x4b0] sm:$0xff]
    %v393 = vld [vmem:[#allocation5 + $0x4b8] sm:$0xff]
    %v394 = vld [vmem:[#allocation5 + $0x4c0] sm:$0xff]
    %v395 = vld [vmem:[#allocation5 + $0x4c8] sm:$0xff]
    %v396 = vld [vmem:[#allocation5 + $0x4d0] sm:$0xff]
    %v397 = vld [vmem:[#allocation5 + $0x4d8] sm:$0xff]
    %v398 = vld [vmem:[#allocation5 + $0x4e0] sm:$0xff]
    %v399 = vld [vmem:[#allocation5 + $0x4e8] sm:$0xff]
    %v400 = vld [vmem:[#allocation5 + $0x4f0] sm:$0xff]
    %v401 = vld [vmem:[#allocation5 + $0x4f8] sm:$0xff]
    %v402 = vld [vmem:[#allocation5 + $0x500] sm:$0xff]
    %v403 = vld [vmem:[#allocation5 + $0x508] sm:$0xff]
    %v404 = vld [vmem:[#allocation5 + $0x510] sm:$0xff]
    %v405 = vld [vmem:[#allocation5 + $0x518] sm:$0xff]
    %v406 = vld [vmem:[#allocation5 + $0x520] sm:$0xff]
    %v407 = vld [vmem:[#allocation5 + $0x528] sm:$0xff]
    %v408 = vld [vmem:[#allocation5 + $0x530] sm:$0xff]
    %v409 = vld [vmem:[#allocation5 + $0x538] sm:$0xff]
    %v410 = vld [vmem:[#allocation5 + $0x540] sm:$0xff]
    %v411 = vld [vmem:[#allocation5 + $0x548] sm:$0xff]
    %v412 = vld [vmem:[#allocation5 + $0x550] sm:$0xff]
    %v413 = vld [vmem:[#allocation5 + $0x558] sm:$0xff]
    %v414 = vld [vmem:[#allocation5 + $0x560] sm:$0xff]
    %v415 = vld [vmem:[#allocation5 + $0x568] sm:$0xff]
    %v416 = vld [vmem:[#allocation5 + $0x570] sm:$0xff]
    %v417 = vld [vmem:[#allocation5 + $0x578] sm:$0xff]
    %v418 = vld [vmem:[#allocation5 + $0x580] sm:$0xff]
    %v419 = vld [vmem:[#allocation5 + $0x588] sm:$0xff]
    %v420 = vld [vmem:[#allocation5 + $0x590] sm:$0xff]
    %v421 = vld [vmem:[#allocation5 + $0x598] sm:$0xff]
    %v422 = vld [vmem:[#allocation5 + $0x5a0] sm:$0xff]
    %v423 = vld [vmem:[#allocation5 + $0x5a8] sm:$0xff]
    %v424 = vld [vmem:[#allocation5 + $0x5b0] sm:$0xff]
    %v425 = vld [vmem:[#allocation5 + $0x5b8] sm:$0xff]
    %v426 = vld [vmem:[#allocation5 + $0x5c0] sm:$0xff]
    %v427 = vld [vmem:[#allocation5 + $0x5c8] sm:$0xff]
    %v428 = vld [vmem:[#allocation5 + $0x5d0] sm:$0xff]
    %v429 = vld [vmem:[#allocation5 + $0x5d8] sm:$0xff]
    %v430 = vld [vmem:[#allocation5 + $0x5e0] sm:$0xff]
    %v431 = vld [vmem:[#allocation5 + $0x5e8] sm:$0xff]
    %v432 = vld [vmem:[#allocation5 + $0x5f0] sm:$0xff]
    %v433 = vld [vmem:[#allocation5 + $0x5f8] sm:$0xff]
    %v434 = vld [vmem:[#allocation5 + $0x600] sm:$0xff]
    %v435 = vld [vmem:[#allocation5 + $0x608] sm:$0xff]
    %v436 = vld [vmem:[#allocation5 + $0x610] sm:$0xff]
    %v437 = vld [vmem:[#allocation5 + $0x618] sm:$0xff]
    %v438 = vld [vmem:[#allocation5 + $0x620] sm:$0xff]
    %v439 = vld [vmem:[#allocation5 + $0x628] sm:$0xff]
    %v440 = vld [vmem:[#allocation5 + $0x630] sm:$0xff]
    %v441 = vld [vmem:[#allocation5 + $0x638] sm:$0xff]
    %v442 = vld [vmem:[#allocation5 + $0x640] sm:$0xff]
    %v443 = vld [vmem:[#allocation5 + $0x648] sm:$0xff]
    %v444 = vld [vmem:[#allocation5 + $0x650] sm:$0xff]
    %v445 = vld [vmem:[#allocation5 + $0x658] sm:$0xff]
    %v446 = vld [vmem:[#allocation5 + $0x660] sm:$0xff]
    %v447 = vld [vmem:[#allocation5 + $0x668] sm:$0xff]
    %v448 = vld [vmem:[#allocation5 + $0x670] sm:$0xff]
    %v449 = vld [vmem:[#allocation5 + $0x678] sm:$0xff]
    %v450 = vld [vmem:[#allocation5 + $0x680] sm:$0xff]
    %v451 = vld [vmem:[#allocation5 + $0x688] sm:$0xff]
    %v452 = vld [vmem:[#allocation5 + $0x690] sm:$0xff]
    %v453 = vld [vmem:[#allocation5 + $0x698] sm:$0xff]
    %v454 = vld [vmem:[#allocation5 + $0x6a0] sm:$0xff]
    %v455 = vld [vmem:[#allocation5 + $0x6a8] sm:$0xff]
    %v456 = vld [vmem:[#allocation5 + $0x6b0] sm:$0xff]
    %v457 = vld [vmem:[#allocation5 + $0x6b8] sm:$0xff]
    %v458 = vld [vmem:[#allocation5 + $0x6c0] sm:$0xff]
    %v459 = vld [vmem:[#allocation5 + $0x6c8] sm:$0xff]
    %v460 = vld [vmem:[#allocation5 + $0x6d0] sm:$0xff]
    %v461 = vld [vmem:[#allocation5 + $0x6d8] sm:$0xff]
    %v462 = vld [vmem:[#allocation5 + $0x6e0] sm:$0xff]
    %v463 = vld [vmem:[#allocation5 + $0x6e8] sm:$0xff]
    %v464 = vld [vmem:[#allocation5 + $0x6f0] sm:$0xff]
    %v465 = vld [vmem:[#allocation5 + $0x6f8] sm:$0xff]
    %v466 = vld [vmem:[#allocation5 + $0x700] sm:$0xff]
    %v467 = vld [vmem:[#allocation5 + $0x708] sm:$0xff]
    %v468 = vld [vmem:[#allocation5 + $0x710] sm:$0xff]
    %v469 = vld [vmem:[#allocation5 + $0x718] sm:$0xff]
    %v470 = vld [vmem:[#allocation5 + $0x720] sm:$0xff]
    %v471 = vld [vmem:[#allocation5 + $0x728] sm:$0xff]
    %v472 = vld [vmem:[#allocation5 + $0x730] sm:$0xff]
    %v473 = vld [vmem:[#allocation5 + $0x738] sm:$0xff]
    %v474 = vld [vmem:[#allocation5 + $0x740] sm:$0xff]
    %v475 = vld [vmem:[#allocation5 + $0x748] sm:$0xff]
    %v476 = vld [vmem:[#allocation5 + $0x750] sm:$0xff]
    %v477 = vld [vmem:[#allocation5 + $0x758] sm:$0xff]
    %v478 = vld [vmem:[#allocation5 + $0x760] sm:$0xff]
    %v479 = vld [vmem:[#allocation5 + $0x768] sm:$0xff]
    %v480 = vld [vmem:[#allocation5 + $0x770] sm:$0xff]
    %v481 = vld [vmem:[#allocation5 + $0x778] sm:$0xff]
    %v482 = vld [vmem:[#allocation5 + $0x780] sm:$0xff]
    %v483 = vld [vmem:[#allocation5 + $0x788] sm:$0xff]
    %v484 = vld [vmem:[#allocation5 + $0x790] sm:$0xff]
    %v485 = vld [vmem:[#allocation5 + $0x798] sm:$0xff]
    %v486 = vld [vmem:[#allocation5 + $0x7a0] sm:$0xff]
    %v487 = vld [vmem:[#allocation5 + $0x7a8] sm:$0xff]
    %v488 = vld [vmem:[#allocation5 + $0x7b0] sm:$0xff]
    %v489 = vld [vmem:[#allocation5 + $0x7b8] sm:$0xff]
    %v490 = vld [vmem:[#allocation5 + $0x7c0] sm:$0xff]
    %v491 = vld [vmem:[#allocation5 + $0x7c8] sm:$0xff]
    %v492 = vld [vmem:[#allocation5 + $0x7d0] sm:$0xff]
    %v493 = vld [vmem:[#allocation5 + $0x7d8] sm:$0xff]
    %v494 = vld [vmem:[#allocation5 + $0x7e0] sm:$0xff]
    %v495 = vld [vmem:[#allocation5 + $0x7e8] sm:$0xff]
    %v496 = vld [vmem:[#allocation5 + $0x7f0] sm:$0xff]
    %v497 = vld [vmem:[#allocation5 + $0x7f8] sm:$0xff]
    %v498 = vld [vmem:[%s2] sm:$0xf]
    %v500 = vlaneseq
    %v501 = vshrl.u32 %v500, 7
    %v502 = vsub.s32 0, %v501
    %v503 = vrot.slane %v498, %v502
    %v504 = vlaneseq
    %v505 = vshrl.u32 %v504, 7
    %v506 = vsub.s32 1, %v505
    %v507 = vrot.slane %v498, %v506
    %v508 = vlaneseq
    %v509 = vshrl.u32 %v508, 7
    %v510 = vsub.s32 2, %v509
    %v511 = vrot.slane %v498, %v510
    %v512 = vlaneseq
    %v513 = vshrl.u32 %v512, 7
    %v514 = vsub.s32 3, %v513
    %v515 = vrot.slane %v498, %v514
    %v536 = vunpack.c.l.b16 %v226
    %v537 = vunpack.c.l.b16 %v227
    %v538 = vunpack.c.l.b16 %v228
    %v539 = vunpack.c.l.b16 %v229
    %v540 = vunpack.c.l.b16 %v230
    %v541 = vunpack.c.l.b16 %v231
    %v542 = vunpack.c.l.b16 %v232
    %v543 = vunpack.c.l.b16 %v233
    %v544 = vunpack.c.l.b16 %v234
    %v545 = vunpack.c.l.b16 %v235
    %v546 = vunpack.c.l.b16 %v236
    %v547 = vunpack.c.l.b16 %v237
    %v548 = vunpack.c.l.b16 %v238
    %v549 = vunpack.c.l.b16 %v239
    %v550 = vunpack.c.l.b16 %v240
    %v551 = vunpack.c.l.b16 %v241
    %vm552 = vcmask 1041409
    %v553 = vsel %vm552, %v544, %v536
    %v554 = vsel %vm552, %v545, %v537
    %v555 = vsel %vm552, %v546, %v538
    %v556 = vsel %vm552, %v547, %v539
    %v557 = vsel %vm552, %v548, %v540
    %v558 = vsel %vm552, %v549, %v541
    %v559 = vsel %vm552, %v550, %v542
    %v560 = vsel %vm552, %v551, %v543
    %v561 = vpack.c.b16 %v553, %v553
    %v562 = vpack.c.b16 %v554, %v554
    %v563 = vpack.c.b16 %v555, %v555
    %v564 = vpack.c.b16 %v556, %v556
    %v565 = vpack.c.b16 %v557, %v557
    %v566 = vpack.c.b16 %v558, %v558
    %v567 = vpack.c.b16 %v559, %v559
    %v568 = vpack.c.b16 %v560, %v560
    %v833 = vunpack.c.l.b16 %v242
    %v834 = vunpack.c.h.b16 %v242
    %v835 = vunpack.c.l.b16 %v243
    %v836 = vunpack.c.h.b16 %v243
    %v837 = vunpack.c.l.b16 %v244
    %v838 = vunpack.c.h.b16 %v244
    %v839 = vunpack.c.l.b16 %v245
    %v840 = vunpack.c.h.b16 %v245
    %v841 = vunpack.c.l.b16 %v246
    %v842 = vunpack.c.h.b16 %v246
    %v843 = vunpack.c.l.b16 %v247
    %v844 = vunpack.c.h.b16 %v247
    %v845 = vunpack.c.l.b16 %v248
    %v846 = vunpack.c.h.b16 %v248
    %v847 = vunpack.c.l.b16 %v249
    %v848 = vunpack.c.h.b16 %v249
    %v849 = vunpack.c.l.b16 %v250
    %v850 = vunpack.c.h.b16 %v250
    %v851 = vunpack.c.l.b16 %v251
    %v852 = vunpack.c.h.b16 %v251
    %v853 = vunpack.c.l.b16 %v252
    %v854 = vunpack.c.h.b16 %v252
    %v855 = vunpack.c.l.b16 %v253
    %v856 = vunpack.c.h.b16 %v253
    %v857 = vunpack.c.l.b16 %v254
    %v858 = vunpack.c.h.b16 %v254
    %v859 = vunpack.c.l.b16 %v255
    %v860 = vunpack.c.h.b16 %v255
    %v861 = vunpack.c.l.b16 %v256
    %v862 = vunpack.c.h.b16 %v256
    %v863 = vunpack.c.l.b16 %v257
    %v864 = vunpack.c.h.b16 %v257
    %v865 = vunpack.c.l.b16 %v258
    %v866 = vunpack.c.h.b16 %v258
    %v867 = vunpack.c.l.b16 %v259
    %v868 = vunpack.c.h.b16 %v259
    %v869 = vunpack.c.l.b16 %v260
    %v870 = vunpack.c.h.b16 %v260
    %v871 = vunpack.c.l.b16 %v261
    %v872 = vunpack.c.h.b16 %v261
    %v873 = vunpack.c.l.b16 %v262
    %v874 = vunpack.c.h.b16 %v262
    %v875 = vunpack.c.l.b16 %v263
    %v876 = vunpack.c.h.b16 %v263
    %v877 = vunpack.c.l.b16 %v264
    %v878 = vunpack.c.h.b16 %v264
    %v879 = vunpack.c.l.b16 %v265
    %v880 = vunpack.c.h.b16 %v265
    %v881 = vunpack.c.l.b16 %v266
    %v882 = vunpack.c.h.b16 %v266
    %v883 = vunpack.c.l.b16 %v267
    %v884 = vunpack.c.h.b16 %v267
    %v885 = vunpack.c.l.b16 %v268
    %v886 = vunpack.c.h.b16 %v268
    %v887 = vunpack.c.l.b16 %v269
    %v888 = vunpack.c.h.b16 %v269
    %v889 = vunpack.c.l.b16 %v270
    %v890 = vunpack.c.h.b16 %v270
    %v891 = vunpack.c.l.b16 %v271
    %v892 = vunpack.c.h.b16 %v271
    %v893 = vunpack.c.l.b16 %v272
    %v894 = vunpack.c.h.b16 %v272
    %v895 = vunpack.c.l.b16 %v273
    %v896 = vunpack.c.h.b16 %v273
    %v897 = vunpack.c.l.b16 %v274
    %v898 = vunpack.c.h.b16 %v274
    %v899 = vunpack.c.l.b16 %v275
    %v900 = vunpack.c.h.b16 %v275
    %v901 = vunpack.c.l.b16 %v276
    %v902 = vunpack.c.h.b16 %v276
    %v903 = vunpack.c.l.b16 %v277
    %v904 = vunpack.c.h.b16 %v277
    %v905 = vunpack.c.l.b16 %v278
    %v906 = vunpack.c.h.b16 %v278
    %v907 = vunpack.c.l.b16 %v279
    %v908 = vunpack.c.h.b16 %v279
    %v909 = vunpack.c.l.b16 %v280
    %v910 = vunpack.c.h.b16 %v280
    %v911 = vunpack.c.l.b16 %v281
    %v912 = vunpack.c.h.b16 %v281
    %v913 = vunpack.c.l.b16 %v282
    %v914 = vunpack.c.h.b16 %v282
    %v915 = vunpack.c.l.b16 %v283
    %v916 = vunpack.c.h.b16 %v283
    %v917 = vunpack.c.l.b16 %v284
    %v918 = vunpack.c.h.b16 %v284
    %v919 = vunpack.c.l.b16 %v285
    %v920 = vunpack.c.h.b16 %v285
    %v921 = vunpack.c.l.b16 %v286
    %v922 = vunpack.c.h.b16 %v286
    %v923 = vunpack.c.l.b16 %v287
    %v924 = vunpack.c.h.b16 %v287
    %v925 = vunpack.c.l.b16 %v288
    %v926 = vunpack.c.h.b16 %v288
    %v927 = vunpack.c.l.b16 %v289
    %v928 = vunpack.c.h.b16 %v289
    %v929 = vunpack.c.l.b16 %v290
    %v930 = vunpack.c.h.b16 %v290
    %v931 = vunpack.c.l.b16 %v291
    %v932 = vunpack.c.h.b16 %v291
    %v933 = vunpack.c.l.b16 %v292
    %v934 = vunpack.c.h.b16 %v292
    %v935 = vunpack.c.l.b16 %v293
    %v936 = vunpack.c.h.b16 %v293
    %v937 = vunpack.c.l.b16 %v294
    %v938 = vunpack.c.h.b16 %v294
    %v939 = vunpack.c.l.b16 %v295
    %v940 = vunpack.c.h.b16 %v295
    %v941 = vunpack.c.l.b16 %v296
    %v942 = vunpack.c.h.b16 %v296
    %v943 = vunpack.c.l.b16 %v297
    %v944 = vunpack.c.h.b16 %v297
    %v945 = vunpack.c.l.b16 %v298
    %v946 = vunpack.c.h.b16 %v298
    %v947 = vunpack.c.l.b16 %v299
    %v948 = vunpack.c.h.b16 %v299
    %v949 = vunpack.c.l.b16 %v300
    %v950 = vunpack.c.h.b16 %v300
    %v951 = vunpack.c.l.b16 %v301
    %v952 = vunpack.c.h.b16 %v301
    %v953 = vunpack.c.l.b16 %v302
    %v954 = vunpack.c.h.b16 %v302
    %v955 = vunpack.c.l.b16 %v303
    %v956 = vunpack.c.h.b16 %v303
    %v957 = vunpack.c.l.b16 %v304
    %v958 = vunpack.c.h.b16 %v304
    %v959 = vunpack.c.l.b16 %v305
    %v960 = vunpack.c.h.b16 %v305
    %v961 = vunpack.c.l.b16 %v306
    %v962 = vunpack.c.h.b16 %v306
    %v963 = vunpack.c.l.b16 %v307
    %v964 = vunpack.c.h.b16 %v307
    %v965 = vunpack.c.l.b16 %v308
    %v966 = vunpack.c.h.b16 %v308
    %v967 = vunpack.c.l.b16 %v309
    %v968 = vunpack.c.h.b16 %v309
    %v969 = vunpack.c.l.b16 %v310
    %v970 = vunpack.c.h.b16 %v310
    %v971 = vunpack.c.l.b16 %v311
    %v972 = vunpack.c.h.b16 %v311
    %v973 = vunpack.c.l.b16 %v312
    %v974 = vunpack.c.h.b16 %v312
    %v975 = vunpack.c.l.b16 %v313
    %v976 = vunpack.c.h.b16 %v313
    %v977 = vunpack.c.l.b16 %v314
    %v978 = vunpack.c.h.b16 %v314
    %v979 = vunpack.c.l.b16 %v315
    %v980 = vunpack.c.h.b16 %v315
    %v981 = vunpack.c.l.b16 %v316
    %v982 = vunpack.c.h.b16 %v316
    %v983 = vunpack.c.l.b16 %v317
    %v984 = vunpack.c.h.b16 %v317
    %v985 = vunpack.c.l.b16 %v318
    %v986 = vunpack.c.h.b16 %v318
    %v987 = vunpack.c.l.b16 %v319
    %v988 = vunpack.c.h.b16 %v319
    %v989 = vunpack.c.l.b16 %v320
    %v990 = vunpack.c.h.b16 %v320
    %v991 = vunpack.c.l.b16 %v321
    %v992 = vunpack.c.h.b16 %v321
    %v993 = vunpack.c.l.b16 %v322
    %v994 = vunpack.c.h.b16 %v322
    %v995 = vunpack.c.l.b16 %v323
    %v996 = vunpack.c.h.b16 %v323
    %v997 = vunpack.c.l.b16 %v324
    %v998 = vunpack.c.h.b16 %v324
    %v999 = vunpack.c.l.b16 %v325
    %v1000 = vunpack.c.h.b16 %v325
    %v1001 = vunpack.c.l.b16 %v326
    %v1002 = vunpack.c.h.b16 %v326
    %v1003 = vunpack.c.l.b16 %v327
    %v1004 = vunpack.c.h.b16 %v327
    %v1005 = vunpack.c.l.b16 %v328
    %v1006 = vunpack.c.h.b16 %v328
    %v1007 = vunpack.c.l.b16 %v329
    %v1008 = vunpack.c.h.b16 %v329
    %v1009 = vunpack.c.l.b16 %v330
    %v1010 = vunpack.c.h.b16 %v330
    %v1011 = vunpack.c.l.b16 %v331
    %v1012 = vunpack.c.h.b16 %v331
    %v1013 = vunpack.c.l.b16 %v332
    %v1014 = vunpack.c.h.b16 %v332
    %v1015 = vunpack.c.l.b16 %v333
    %v1016 = vunpack.c.h.b16 %v333
    %v1017 = vunpack.c.l.b16 %v334
    %v1018 = vunpack.c.h.b16 %v334
    %v1019 = vunpack.c.l.b16 %v335
    %v1020 = vunpack.c.h.b16 %v335
    %v1021 = vunpack.c.l.b16 %v336
    %v1022 = vunpack.c.h.b16 %v336
    %v1023 = vunpack.c.l.b16 %v337
    %v1024 = vunpack.c.h.b16 %v337
    %v1025 = vunpack.c.l.b16 %v338
    %v1026 = vunpack.c.h.b16 %v338
    %v1027 = vunpack.c.l.b16 %v339
    %v1028 = vunpack.c.h.b16 %v339
    %v1029 = vunpack.c.l.b16 %v340
    %v1030 = vunpack.c.h.b16 %v340
    %v1031 = vunpack.c.l.b16 %v341
    %v1032 = vunpack.c.h.b16 %v341
    %v1033 = vunpack.c.l.b16 %v342
    %v1034 = vunpack.c.h.b16 %v342
    %v1035 = vunpack.c.l.b16 %v343
    %v1036 = vunpack.c.h.b16 %v343
    %v1037 = vunpack.c.l.b16 %v344
    %v1038 = vunpack.c.h.b16 %v344
    %v1039 = vunpack.c.l.b16 %v345
    %v1040 = vunpack.c.h.b16 %v345
    %v1041 = vunpack.c.l.b16 %v346
    %v1042 = vunpack.c.h.b16 %v346
    %v1043 = vunpack.c.l.b16 %v347
    %v1044 = vunpack.c.h.b16 %v347
    %v1045 = vunpack.c.l.b16 %v348
    %v1046 = vunpack.c.h.b16 %v348
    %v1047 = vunpack.c.l.b16 %v349
    %v1048 = vunpack.c.h.b16 %v349
    %v1049 = vunpack.c.l.b16 %v350
    %v1050 = vunpack.c.h.b16 %v350
    %v1051 = vunpack.c.l.b16 %v351
    %v1052 = vunpack.c.h.b16 %v351
    %v1053 = vunpack.c.l.b16 %v352
    %v1054 = vunpack.c.h.b16 %v352
    %v1055 = vunpack.c.l.b16 %v353
    %v1056 = vunpack.c.h.b16 %v353
    %v1057 = vunpack.c.l.b16 %v354
    %v1058 = vunpack.c.h.b16 %v354
    %v1059 = vunpack.c.l.b16 %v355
    %v1060 = vunpack.c.h.b16 %v355
    %v1061 = vunpack.c.l.b16 %v356
    %v1062 = vunpack.c.h.b16 %v356
    %v1063 = vunpack.c.l.b16 %v357
    %v1064 = vunpack.c.h.b16 %v357
    %v1065 = vunpack.c.l.b16 %v358
    %v1066 = vunpack.c.h.b16 %v358
    %v1067 = vunpack.c.l.b16 %v359
    %v1068 = vunpack.c.h.b16 %v359
    %v1069 = vunpack.c.l.b16 %v360
    %v1070 = vunpack.c.h.b16 %v360
    %v1071 = vunpack.c.l.b16 %v361
    %v1072 = vunpack.c.h.b16 %v361
    %v1073 = vunpack.c.l.b16 %v362
    %v1074 = vunpack.c.h.b16 %v362
    %v1075 = vunpack.c.l.b16 %v363
    %v1076 = vunpack.c.h.b16 %v363
    %v1077 = vunpack.c.l.b16 %v364
    %v1078 = vunpack.c.h.b16 %v364
    %v1079 = vunpack.c.l.b16 %v365
    %v1080 = vunpack.c.h.b16 %v365
    %v1081 = vunpack.c.l.b16 %v366
    %v1082 = vunpack.c.h.b16 %v366
    %v1083 = vunpack.c.l.b16 %v367
    %v1084 = vunpack.c.h.b16 %v367
    %v1085 = vunpack.c.l.b16 %v368
    %v1086 = vunpack.c.h.b16 %v368
    %v1087 = vunpack.c.l.b16 %v369
    %v1088 = vunpack.c.h.b16 %v369
    %v1089 = vunpack.c.l.b16 %v370
    %v1090 = vunpack.c.h.b16 %v370
    %v1091 = vunpack.c.l.b16 %v371
    %v1092 = vunpack.c.h.b16 %v371
    %v1093 = vunpack.c.l.b16 %v372
    %v1094 = vunpack.c.h.b16 %v372
    %v1095 = vunpack.c.l.b16 %v373
    %v1096 = vunpack.c.h.b16 %v373
    %v1097 = vunpack.c.l.b16 %v374
    %v1098 = vunpack.c.h.b16 %v374
    %v1099 = vunpack.c.l.b16 %v375
    %v1100 = vunpack.c.h.b16 %v375
    %v1101 = vunpack.c.l.b16 %v376
    %v1102 = vunpack.c.h.b16 %v376
    %v1103 = vunpack.c.l.b16 %v377
    %v1104 = vunpack.c.h.b16 %v377
    %v1105 = vunpack.c.l.b16 %v378
    %v1106 = vunpack.c.h.b16 %v378
    %v1107 = vunpack.c.l.b16 %v379
    %v1108 = vunpack.c.h.b16 %v379
    %v1109 = vunpack.c.l.b16 %v380
    %v1110 = vunpack.c.h.b16 %v380
    %v1111 = vunpack.c.l.b16 %v381
    %v1112 = vunpack.c.h.b16 %v381
    %v1113 = vunpack.c.l.b16 %v382
    %v1114 = vunpack.c.h.b16 %v382
    %v1115 = vunpack.c.l.b16 %v383
    %v1116 = vunpack.c.h.b16 %v383
    %v1117 = vunpack.c.l.b16 %v384
    %v1118 = vunpack.c.h.b16 %v384
    %v1119 = vunpack.c.l.b16 %v385
    %v1120 = vunpack.c.h.b16 %v385
    %v1121 = vunpack.c.l.b16 %v386
    %v1122 = vunpack.c.h.b16 %v386
    %v1123 = vunpack.c.l.b16 %v387
    %v1124 = vunpack.c.h.b16 %v387
    %v1125 = vunpack.c.l.b16 %v388
    %v1126 = vunpack.c.h.b16 %v388
    %v1127 = vunpack.c.l.b16 %v389
    %v1128 = vunpack.c.h.b16 %v389
    %v1129 = vunpack.c.l.b16 %v390
    %v1130 = vunpack.c.h.b16 %v390
    %v1131 = vunpack.c.l.b16 %v391
    %v1132 = vunpack.c.h.b16 %v391
    %v1133 = vunpack.c.l.b16 %v392
    %v1134 = vunpack.c.h.b16 %v392
    %v1135 = vunpack.c.l.b16 %v393
    %v1136 = vunpack.c.h.b16 %v393
    %v1137 = vunpack.c.l.b16 %v394
    %v1138 = vunpack.c.h.b16 %v394
    %v1139 = vunpack.c.l.b16 %v395
    %v1140 = vunpack.c.h.b16 %v395
    %v1141 = vunpack.c.l.b16 %v396
    %v1142 = vunpack.c.h.b16 %v396
    %v1143 = vunpack.c.l.b16 %v397
    %v1144 = vunpack.c.h.b16 %v397
    %v1145 = vunpack.c.l.b16 %v398
    %v1146 = vunpack.c.h.b16 %v398
    %v1147 = vunpack.c.l.b16 %v399
    %v1148 = vunpack.c.h.b16 %v399
    %v1149 = vunpack.c.l.b16 %v400
    %v1150 = vunpack.c.h.b16 %v400
    %v1151 = vunpack.c.l.b16 %v401
    %v1152 = vunpack.c.h.b16 %v401
    %v1153 = vunpack.c.l.b16 %v402
    %v1154 = vunpack.c.h.b16 %v402
    %v1155 = vunpack.c.l.b16 %v403
    %v1156 = vunpack.c.h.b16 %v403
    %v1157 = vunpack.c.l.b16 %v404
    %v1158 = vunpack.c.h.b16 %v404
    %v1159 = vunpack.c.l.b16 %v405
    %v1160 = vunpack.c.h.b16 %v405
    %v1161 = vunpack.c.l.b16 %v406
    %v1162 = vunpack.c.h.b16 %v406
    %v1163 = vunpack.c.l.b16 %v407
    %v1164 = vunpack.c.h.b16 %v407
    %v1165 = vunpack.c.l.b16 %v408
    %v1166 = vunpack.c.h.b16 %v408
    %v1167 = vunpack.c.l.b16 %v409
    %v1168 = vunpack.c.h.b16 %v409
    %v1169 = vunpack.c.l.b16 %v410
    %v1170 = vunpack.c.h.b16 %v410
    %v1171 = vunpack.c.l.b16 %v411
    %v1172 = vunpack.c.h.b16 %v411
    %v1173 = vunpack.c.l.b16 %v412
    %v1174 = vunpack.c.h.b16 %v412
    %v1175 = vunpack.c.l.b16 %v413
    %v1176 = vunpack.c.h.b16 %v413
    %v1177 = vunpack.c.l.b16 %v414
    %v1178 = vunpack.c.h.b16 %v414
    %v1179 = vunpack.c.l.b16 %v415
    %v1180 = vunpack.c.h.b16 %v415
    %v1181 = vunpack.c.l.b16 %v416
    %v1182 = vunpack.c.h.b16 %v416
    %v1183 = vunpack.c.l.b16 %v417
    %v1184 = vunpack.c.h.b16 %v417
    %v1185 = vunpack.c.l.b16 %v418
    %v1186 = vunpack.c.h.b16 %v418
    %v1187 = vunpack.c.l.b16 %v419
    %v1188 = vunpack.c.h.b16 %v419
    %v1189 = vunpack.c.l.b16 %v420
    %v1190 = vunpack.c.h.b16 %v420
    %v1191 = vunpack.c.l.b16 %v421
    %v1192 = vunpack.c.h.b16 %v421
    %v1193 = vunpack.c.l.b16 %v422
    %v1194 = vunpack.c.h.b16 %v422
    %v1195 = vunpack.c.l.b16 %v423
    %v1196 = vunpack.c.h.b16 %v423
    %v1197 = vunpack.c.l.b16 %v424
    %v1198 = vunpack.c.h.b16 %v424
    %v1199 = vunpack.c.l.b16 %v425
    %v1200 = vunpack.c.h.b16 %v425
    %v1201 = vunpack.c.l.b16 %v426
    %v1202 = vunpack.c.h.b16 %v426
    %v1203 = vunpack.c.l.b16 %v427
    %v1204 = vunpack.c.h.b16 %v427
    %v1205 = vunpack.c.l.b16 %v428
    %v1206 = vunpack.c.h.b16 %v428
    %v1207 = vunpack.c.l.b16 %v429
    %v1208 = vunpack.c.h.b16 %v429
    %v1209 = vunpack.c.l.b16 %v430
    %v1210 = vunpack.c.h.b16 %v430
    %v1211 = vunpack.c.l.b16 %v431
    %v1212 = vunpack.c.h.b16 %v431
    %v1213 = vunpack.c.l.b16 %v432
    %v1214 = vunpack.c.h.b16 %v432
    %v1215 = vunpack.c.l.b16 %v433
    %v1216 = vunpack.c.h.b16 %v433
    %v1217 = vunpack.c.l.b16 %v434
    %v1218 = vunpack.c.h.b16 %v434
    %v1219 = vunpack.c.l.b16 %v435
    %v1220 = vunpack.c.h.b16 %v435
    %v1221 = vunpack.c.l.b16 %v436
    %v1222 = vunpack.c.h.b16 %v436
    %v1223 = vunpack.c.l.b16 %v437
    %v1224 = vunpack.c.h.b16 %v437
    %v1225 = vunpack.c.l.b16 %v438
    %v1226 = vunpack.c.h.b16 %v438
    %v1227 = vunpack.c.l.b16 %v439
    %v1228 = vunpack.c.h.b16 %v439
    %v1229 = vunpack.c.l.b16 %v440
    %v1230 = vunpack.c.h.b16 %v440
    %v1231 = vunpack.c.l.b16 %v441
    %v1232 = vunpack.c.h.b16 %v441
    %v1233 = vunpack.c.l.b16 %v442
    %v1234 = vunpack.c.h.b16 %v442
    %v1235 = vunpack.c.l.b16 %v443
    %v1236 = vunpack.c.h.b16 %v443
    %v1237 = vunpack.c.l.b16 %v444
    %v1238 = vunpack.c.h.b16 %v444
    %v1239 = vunpack.c.l.b16 %v445
    %v1240 = vunpack.c.h.b16 %v445
    %v1241 = vunpack.c.l.b16 %v446
    %v1242 = vunpack.c.h.b16 %v446
    %v1243 = vunpack.c.l.b16 %v447
    %v1244 = vunpack.c.h.b16 %v447
    %v1245 = vunpack.c.l.b16 %v448
    %v1246 = vunpack.c.h.b16 %v448
    %v1247 = vunpack.c.l.b16 %v449
    %v1248 = vunpack.c.h.b16 %v449
    %v1249 = vunpack.c.l.b16 %v450
    %v1250 = vunpack.c.h.b16 %v450
    %v1251 = vunpack.c.l.b16 %v451
    %v1252 = vunpack.c.h.b16 %v451
    %v1253 = vunpack.c.l.b16 %v452
    %v1254 = vunpack.c.h.b16 %v452
    %v1255 = vunpack.c.l.b16 %v453
    %v1256 = vunpack.c.h.b16 %v453
    %v1257 = vunpack.c.l.b16 %v454
    %v1258 = vunpack.c.h.b16 %v454
    %v1259 = vunpack.c.l.b16 %v455
    %v1260 = vunpack.c.h.b16 %v455
    %v1261 = vunpack.c.l.b16 %v456
    %v1262 = vunpack.c.h.b16 %v456
    %v1263 = vunpack.c.l.b16 %v457
    %v1264 = vunpack.c.h.b16 %v457
    %v1265 = vunpack.c.l.b16 %v458
    %v1266 = vunpack.c.h.b16 %v458
    %v1267 = vunpack.c.l.b16 %v459
    %v1268 = vunpack.c.h.b16 %v459
    %v1269 = vunpack.c.l.b16 %v460
    %v1270 = vunpack.c.h.b16 %v460
    %v1271 = vunpack.c.l.b16 %v461
    %v1272 = vunpack.c.h.b16 %v461
    %v1273 = vunpack.c.l.b16 %v462
    %v1274 = vunpack.c.h.b16 %v462
    %v1275 = vunpack.c.l.b16 %v463
    %v1276 = vunpack.c.h.b16 %v463
    %v1277 = vunpack.c.l.b16 %v464
    %v1278 = vunpack.c.h.b16 %v464
    %v1279 = vunpack.c.l.b16 %v465
    %v1280 = vunpack.c.h.b16 %v465
    %v1281 = vunpack.c.l.b16 %v466
    %v1282 = vunpack.c.h.b16 %v466
    %v1283 = vunpack.c.l.b16 %v467
    %v1284 = vunpack.c.h.b16 %v467
    %v1285 = vunpack.c.l.b16 %v468
    %v1286 = vunpack.c.h.b16 %v468
    %v1287 = vunpack.c.l.b16 %v469
    %v1288 = vunpack.c.h.b16 %v469
    %v1289 = vunpack.c.l.b16 %v470
    %v1290 = vunpack.c.h.b16 %v470
    %v1291 = vunpack.c.l.b16 %v471
    %v1292 = vunpack.c.h.b16 %v471
    %v1293 = vunpack.c.l.b16 %v472
    %v1294 = vunpack.c.h.b16 %v472
    %v1295 = vunpack.c.l.b16 %v473
    %v1296 = vunpack.c.h.b16 %v473
    %v1297 = vunpack.c.l.b16 %v474
    %v1298 = vunpack.c.h.b16 %v474
    %v1299 = vunpack.c.l.b16 %v475
    %v1300 = vunpack.c.h.b16 %v475
    %v1301 = vunpack.c.l.b16 %v476
    %v1302 = vunpack.c.h.b16 %v476
    %v1303 = vunpack.c.l.b16 %v477
    %v1304 = vunpack.c.h.b16 %v477
    %v1305 = vunpack.c.l.b16 %v478
    %v1306 = vunpack.c.h.b16 %v478
    %v1307 = vunpack.c.l.b16 %v479
    %v1308 = vunpack.c.h.b16 %v479
    %v1309 = vunpack.c.l.b16 %v480
    %v1310 = vunpack.c.h.b16 %v480
    %v1311 = vunpack.c.l.b16 %v481
    %v1312 = vunpack.c.h.b16 %v481
    %v1313 = vunpack.c.l.b16 %v482
    %v1314 = vunpack.c.h.b16 %v482
    %v1315 = vunpack.c.l.b16 %v483
    %v1316 = vunpack.c.h.b16 %v483
    %v1317 = vunpack.c.l.b16 %v484
    %v1318 = vunpack.c.h.b16 %v484
    %v1319 = vunpack.c.l.b16 %v485
    %v1320 = vunpack.c.h.b16 %v485
    %v1321 = vunpack.c.l.b16 %v486
    %v1322 = vunpack.c.h.b16 %v486
    %v1323 = vunpack.c.l.b16 %v487
    %v1324 = vunpack.c.h.b16 %v487
    %v1325 = vunpack.c.l.b16 %v488
    %v1326 = vunpack.c.h.b16 %v488
    %v1327 = vunpack.c.l.b16 %v489
    %v1328 = vunpack.c.h.b16 %v489
    %v1329 = vunpack.c.l.b16 %v490
    %v1330 = vunpack.c.h.b16 %v490
    %v1331 = vunpack.c.l.b16 %v491
    %v1332 = vunpack.c.h.b16 %v491
    %v1333 = vunpack.c.l.b16 %v492
    %v1334 = vunpack.c.h.b16 %v492
    %v1335 = vunpack.c.l.b16 %v493
    %v1336 = vunpack.c.h.b16 %v493
    %v1337 = vunpack.c.l.b16 %v494
    %v1338 = vunpack.c.h.b16 %v494
    %v1339 = vunpack.c.l.b16 %v495
    %v1340 = vunpack.c.h.b16 %v495
    %v1341 = vunpack.c.l.b16 %v496
    %v1342 = vunpack.c.h.b16 %v496
    %v1343 = vunpack.c.l.b16 %v497
    %v1344 = vunpack.c.h.b16 %v497
    %v1345 = vpack.c.b16 %v837, %v833
    %v1346 = vpack.c.b16 %v838, %v834
    %v1347 = vpack.c.b16 %v839, %v835
    %v1348 = vpack.c.b16 %v840, %v836
    %v1349 = vpack.c.b16 %v845, %v841
    %v1350 = vpack.c.b16 %v846, %v842
    %v1351 = vpack.c.b16 %v847, %v843
    %v1352 = vpack.c.b16 %v848, %v844
    %v1353 = vpack.c.b16 %v853, %v849
    %v1354 = vpack.c.b16 %v854, %v850
    %v1355 = vpack.c.b16 %v855, %v851
    %v1356 = vpack.c.b16 %v856, %v852
    %v1357 = vpack.c.b16 %v861, %v857
    %v1358 = vpack.c.b16 %v862, %v858
    %v1359 = vpack.c.b16 %v863, %v859
    %v1360 = vpack.c.b16 %v864, %v860
    %v1361 = vpack.c.b16 %v869, %v865
    %v1362 = vpack.c.b16 %v870, %v866
    %v1363 = vpack.c.b16 %v871, %v867
    %v1364 = vpack.c.b16 %v872, %v868
    %v1365 = vpack.c.b16 %v877, %v873
    %v1366 = vpack.c.b16 %v878, %v874
    %v1367 = vpack.c.b16 %v879, %v875
    %v1368 = vpack.c.b16 %v880, %v876
    %v1369 = vpack.c.b16 %v885, %v881
    %v1370 = vpack.c.b16 %v886, %v882
    %v1371 = vpack.c.b16 %v887, %v883
    %v1372 = vpack.c.b16 %v888, %v884
    %v1373 = vpack.c.b16 %v893, %v889
    %v1374 = vpack.c.b16 %v894, %v890
    %v1375 = vpack.c.b16 %v895, %v891
    %v1376 = vpack.c.b16 %v896, %v892
    %v1377 = vpack.c.b16 %v901, %v897
    %v1378 = vpack.c.b16 %v902, %v898
    %v1379 = vpack.c.b16 %v903, %v899
    %v1380 = vpack.c.b16 %v904, %v900
    %v1381 = vpack.c.b16 %v909, %v905
    %v1382 = vpack.c.b16 %v910, %v906
    %v1383 = vpack.c.b16 %v911, %v907
    %v1384 = vpack.c.b16 %v912, %v908
    %v1385 = vpack.c.b16 %v917, %v913
    %v1386 = vpack.c.b16 %v918, %v914
    %v1387 = vpack.c.b16 %v919, %v915
    %v1388 = vpack.c.b16 %v920, %v916
    %v1389 = vpack.c.b16 %v925, %v921
    %v1390 = vpack.c.b16 %v926, %v922
    %v1391 = vpack.c.b16 %v927, %v923
    %v1392 = vpack.c.b16 %v928, %v924
    %v1393 = vpack.c.b16 %v933, %v929
    %v1394 = vpack.c.b16 %v934, %v930
    %v1395 = vpack.c.b16 %v935, %v931
    %v1396 = vpack.c.b16 %v936, %v932
    %v1397 = vpack.c.b16 %v941, %v937
    %v1398 = vpack.c.b16 %v942, %v938
    %v1399 = vpack.c.b16 %v943, %v939
    %v1400 = vpack.c.b16 %v944, %v940
    %v1401 = vpack.c.b16 %v949, %v945
    %v1402 = vpack.c.b16 %v950, %v946
    %v1403 = vpack.c.b16 %v951, %v947
    %v1404 = vpack.c.b16 %v952, %v948
    %v1405 = vpack.c.b16 %v957, %v953
    %v1406 = vpack.c.b16 %v958, %v954
    %v1407 = vpack.c.b16 %v959, %v955
    %v1408 = vpack.c.b16 %v960, %v956
    %v1409 = vpack.c.b16 %v965, %v961
    %v1410 = vpack.c.b16 %v966, %v962
    %v1411 = vpack.c.b16 %v967, %v963
    %v1412 = vpack.c.b16 %v968, %v964
    %v1413 = vpack.c.b16 %v973, %v969
    %v1414 = vpack.c.b16 %v974, %v970
    %v1415 = vpack.c.b16 %v975, %v971
    %v1416 = vpack.c.b16 %v976, %v972
    %v1417 = vpack.c.b16 %v981, %v977
    %v1418 = vpack.c.b16 %v982, %v978
    %v1419 = vpack.c.b16 %v983, %v979
    %v1420 = vpack.c.b16 %v984, %v980
    %v1421 = vpack.c.b16 %v989, %v985
    %v1422 = vpack.c.b16 %v990, %v986
    %v1423 = vpack.c.b16 %v991, %v987
    %v1424 = vpack.c.b16 %v992, %v988
    %v1425 = vpack.c.b16 %v997, %v993
    %v1426 = vpack.c.b16 %v998, %v994
    %v1427 = vpack.c.b16 %v999, %v995
    %v1428 = vpack.c.b16 %v1000, %v996
    %v1429 = vpack.c.b16 %v1005, %v1001
    %v1430 = vpack.c.b16 %v1006, %v1002
    %v1431 = vpack.c.b16 %v1007, %v1003
    %v1432 = vpack.c.b16 %v1008, %v1004
    %v1433 = vpack.c.b16 %v1013, %v1009
    %v1434 = vpack.c.b16 %v1014, %v1010
    %v1435 = vpack.c.b16 %v1015, %v1011
    %v1436 = vpack.c.b16 %v1016, %v1012
    %v1437 = vpack.c.b16 %v1021, %v1017
    %v1438 = vpack.c.b16 %v1022, %v1018
    %v1439 = vpack.c.b16 %v1023, %v1019
    %v1440 = vpack.c.b16 %v1024, %v1020
    %v1441 = vpack.c.b16 %v1029, %v1025
    %v1442 = vpack.c.b16 %v1030, %v1026
    %v1443 = vpack.c.b16 %v1031, %v1027
    %v1444 = vpack.c.b16 %v1032, %v1028
    %v1445 = vpack.c.b16 %v1037, %v1033
    %v1446 = vpack.c.b16 %v1038, %v1034
    %v1447 = vpack.c.b16 %v1039, %v1035
    %v1448 = vpack.c.b16 %v1040, %v1036
    %v1449 = vpack.c.b16 %v1045, %v1041
    %v1450 = vpack.c.b16 %v1046, %v1042
    %v1451 = vpack.c.b16 %v1047, %v1043
    %v1452 = vpack.c.b16 %v1048, %v1044
    %v1453 = vpack.c.b16 %v1053, %v1049
    %v1454 = vpack.c.b16 %v1054, %v1050
    %v1455 = vpack.c.b16 %v1055, %v1051
    %v1456 = vpack.c.b16 %v1056, %v1052
    %v1457 = vpack.c.b16 %v1061, %v1057
    %v1458 = vpack.c.b16 %v1062, %v1058
    %v1459 = vpack.c.b16 %v1063, %v1059
    %v1460 = vpack.c.b16 %v1064, %v1060
    %v1461 = vpack.c.b16 %v1069, %v1065
    %v1462 = vpack.c.b16 %v1070, %v1066
    %v1463 = vpack.c.b16 %v1071, %v1067
    %v1464 = vpack.c.b16 %v1072, %v1068
    %v1465 = vpack.c.b16 %v1077, %v1073
    %v1466 = vpack.c.b16 %v1078, %v1074
    %v1467 = vpack.c.b16 %v1079, %v1075
    %v1468 = vpack.c.b16 %v1080, %v1076
    %v1469 = vpack.c.b16 %v1085, %v1081
    %v1470 = vpack.c.b16 %v1086, %v1082
    %v1471 = vpack.c.b16 %v1087, %v1083
    %v1472 = vpack.c.b16 %v1088, %v1084
    %v1473 = vpack.c.b16 %v1093, %v1089
    %v1474 = vpack.c.b16 %v1094, %v1090
    %v1475 = vpack.c.b16 %v1095, %v1091
    %v1476 = vpack.c.b16 %v1096, %v1092
    %v1477 = vpack.c.b16 %v1101, %v1097
    %v1478 = vpack.c.b16 %v1102, %v1098
    %v1479 = vpack.c.b16 %v1103, %v1099
    %v1480 = vpack.c.b16 %v1104, %v1100
    %v1481 = vpack.c.b16 %v1109, %v1105
    %v1482 = vpack.c.b16 %v1110, %v1106
    %v1483 = vpack.c.b16 %v1111, %v1107
    %v1484 = vpack.c.b16 %v1112, %v1108
    %v1485 = vpack.c.b16 %v1117, %v1113
    %v1486 = vpack.c.b16 %v1118, %v1114
    %v1487 = vpack.c.b16 %v1119, %v1115
    %v1488 = vpack.c.b16 %v1120, %v1116
    %v1489 = vpack.c.b16 %v1125, %v1121
    %v1490 = vpack.c.b16 %v1126, %v1122
    %v1491 = vpack.c.b16 %v1127, %v1123
    %v1492 = vpack.c.b16 %v1128, %v1124
    %v1493 = vpack.c.b16 %v1133, %v1129
    %v1494 = vpack.c.b16 %v1134, %v1130
    %v1495 = vpack.c.b16 %v1135, %v1131
    %v1496 = vpack.c.b16 %v1136, %v1132
    %v1497 = vpack.c.b16 %v1141, %v1137
    %v1498 = vpack.c.b16 %v1142, %v1138
    %v1499 = vpack.c.b16 %v1143, %v1139
    %v1500 = vpack.c.b16 %v1144, %v1140
    %v1501 = vpack.c.b16 %v1149, %v1145
    %v1502 = vpack.c.b16 %v1150, %v1146
    %v1503 = vpack.c.b16 %v1151, %v1147
    %v1504 = vpack.c.b16 %v1152, %v1148
    %v1505 = vpack.c.b16 %v1157, %v1153
    %v1506 = vpack.c.b16 %v1158, %v1154
    %v1507 = vpack.c.b16 %v1159, %v1155
    %v1508 = vpack.c.b16 %v1160, %v1156
    %v1509 = vpack.c.b16 %v1165, %v1161
    %v1510 = vpack.c.b16 %v1166, %v1162
    %v1511 = vpack.c.b16 %v1167, %v1163
    %v1512 = vpack.c.b16 %v1168, %v1164
    %v1513 = vpack.c.b16 %v1173, %v1169
    %v1514 = vpack.c.b16 %v1174, %v1170
    %v1515 = vpack.c.b16 %v1175, %v1171
    %v1516 = vpack.c.b16 %v1176, %v1172
    %v1517 = vpack.c.b16 %v1181, %v1177
    %v1518 = vpack.c.b16 %v1182, %v1178
    %v1519 = vpack.c.b16 %v1183, %v1179
    %v1520 = vpack.c.b16 %v1184, %v1180
    %v1521 = vpack.c.b16 %v1189, %v1185
    %v1522 = vpack.c.b16 %v1190, %v1186
    %v1523 = vpack.c.b16 %v1191, %v1187
    %v1524 = vpack.c.b16 %v1192, %v1188
    %v1525 = vpack.c.b16 %v1197, %v1193
    %v1526 = vpack.c.b16 %v1198, %v1194
    %v1527 = vpack.c.b16 %v1199, %v1195
    %v1528 = vpack.c.b16 %v1200, %v1196
    %v1529 = vpack.c.b16 %v1205, %v1201
    %v1530 = vpack.c.b16 %v1206, %v1202
    %v1531 = vpack.c.b16 %v1207, %v1203
    %v1532 = vpack.c.b16 %v1208, %v1204
    %v1533 = vpack.c.b16 %v1213, %v1209
    %v1534 = vpack.c.b16 %v1214, %v1210
    %v1535 = vpack.c.b16 %v1215, %v1211
    %v1536 = vpack.c.b16 %v1216, %v1212
    %v1537 = vpack.c.b16 %v1221, %v1217
    %v1538 = vpack.c.b16 %v1222, %v1218
    %v1539 = vpack.c.b16 %v1223, %v1219
    %v1540 = vpack.c.b16 %v1224, %v1220
    %v1541 = vpack.c.b16 %v1229, %v1225
    %v1542 = vpack.c.b16 %v1230, %v1226
    %v1543 = vpack.c.b16 %v1231, %v1227
    %v1544 = vpack.c.b16 %v1232, %v1228
    %v1545 = vpack.c.b16 %v1237, %v1233
    %v1546 = vpack.c.b16 %v1238, %v1234
    %v1547 = vpack.c.b16 %v1239, %v1235
    %v1548 = vpack.c.b16 %v1240, %v1236
    %v1549 = vpack.c.b16 %v1245, %v1241
    %v1550 = vpack.c.b16 %v1246, %v1242
    %v1551 = vpack.c.b16 %v1247, %v1243
    %v1552 = vpack.c.b16 %v1248, %v1244
    %v1553 = vpack.c.b16 %v1253, %v1249
    %v1554 = vpack.c.b16 %v1254, %v1250
    %v1555 = vpack.c.b16 %v1255, %v1251
    %v1556 = vpack.c.b16 %v1256, %v1252
    %v1557 = vpack.c.b16 %v1261, %v1257
    %v1558 = vpack.c.b16 %v1262, %v1258
    %v1559 = vpack.c.b16 %v1263, %v1259
    %v1560 = vpack.c.b16 %v1264, %v1260
    %v1561 = vpack.c.b16 %v1269, %v1265
    %v1562 = vpack.c.b16 %v1270, %v1266
    %v1563 = vpack.c.b16 %v1271, %v1267
    %v1564 = vpack.c.b16 %v1272, %v1268
    %v1565 = vpack.c.b16 %v1277, %v1273
    %v1566 = vpack.c.b16 %v1278, %v1274
    %v1567 = vpack.c.b16 %v1279, %v1275
    %v1568 = vpack.c.b16 %v1280, %v1276
    %v1569 = vpack.c.b16 %v1285, %v1281
    %v1570 = vpack.c.b16 %v1286, %v1282
    %v1571 = vpack.c.b16 %v1287, %v1283
    %v1572 = vpack.c.b16 %v1288, %v1284
    %v1573 = vpack.c.b16 %v1293, %v1289
    %v1574 = vpack.c.b16 %v1294, %v1290
    %v1575 = vpack.c.b16 %v1295, %v1291
    %v1576 = vpack.c.b16 %v1296, %v1292
    %v1577 = vpack.c.b16 %v1301, %v1297
    %v1578 = vpack.c.b16 %v1302, %v1298
    %v1579 = vpack.c.b16 %v1303, %v1299
    %v1580 = vpack.c.b16 %v1304, %v1300
    %v1581 = vpack.c.b16 %v1309, %v1305
    %v1582 = vpack.c.b16 %v1310, %v1306
    %v1583 = vpack.c.b16 %v1311, %v1307
    %v1584 = vpack.c.b16 %v1312, %v1308
    %v1585 = vpack.c.b16 %v1317, %v1313
    %v1586 = vpack.c.b16 %v1318, %v1314
    %v1587 = vpack.c.b16 %v1319, %v1315
    %v1588 = vpack.c.b16 %v1320, %v1316
    %v1589 = vpack.c.b16 %v1325, %v1321
    %v1590 = vpack.c.b16 %v1326, %v1322
    %v1591 = vpack.c.b16 %v1327, %v1323
    %v1592 = vpack.c.b16 %v1328, %v1324
    %v1593 = vpack.c.b16 %v1333, %v1329
    %v1594 = vpack.c.b16 %v1334, %v1330
    %v1595 = vpack.c.b16 %v1335, %v1331
    %v1596 = vpack.c.b16 %v1336, %v1332
    %v1597 = vpack.c.b16 %v1341, %v1337
    %v1598 = vpack.c.b16 %v1342, %v1338
    %v1599 = vpack.c.b16 %v1343, %v1339
    %v1600 = vpack.c.b16 %v1344, %v1340
    %1857 = vmatprep.subr.bf16.mxu0 %v1346
    %1858 = vmatpush1.bf16.msra.mxu0 %v1345
    %1859 = vmatprep.subr.bf16.mxu0 %v1350
    %1860 = vmatpush1.bf16.msra.mxu0 %v1349
    %1861 = vmatprep.subr.bf16.mxu0 %v1354
    %1862 = vmatpush1.bf16.msra.mxu0 %v1353
    %1863 = vmatprep.subr.bf16.mxu0 %v1358
    %1864 = vmatpush1.bf16.msra.mxu0 %v1357
    %1865 = vmatprep.subr.bf16.mxu0 %v1362
    %1866 = vmatpush1.bf16.msra.mxu0 %v1361
    %1867 = vmatprep.subr.bf16.mxu0 %v1366
    %1868 = vmatpush1.bf16.msra.mxu0 %v1365
    %1869 = vmatprep.subr.bf16.mxu0 %v1370
    %1870 = vmatpush1.bf16.msra.mxu0 %v1369
    %1871 = vmatprep.subr.bf16.mxu0 %v1374
    %1872 = vmatpush1.bf16.msra.mxu0 %v1373
    %1873 = vmatprep.subr.bf16.mxu0 %v1378
    %1874 = vmatpush1.bf16.msra.mxu0 %v1377
    %1875 = vmatprep.subr.bf16.mxu0 %v1382
    %1876 = vmatpush1.bf16.msra.mxu0 %v1381
    %1877 = vmatprep.subr.bf16.mxu0 %v1386
    %1878 = vmatpush1.bf16.msra.mxu0 %v1385
    %1879 = vmatprep.subr.bf16.mxu0 %v1390
    %1880 = vmatpush1.bf16.msra.mxu0 %v1389
    %1881 = vmatprep.subr.bf16.mxu0 %v1394
    %1882 = vmatpush1.bf16.msra.mxu0 %v1393
    %1883 = vmatprep.subr.bf16.mxu0 %v1398
    %1884 = vmatpush1.bf16.msra.mxu0 %v1397
    %1885 = vmatprep.subr.bf16.mxu0 %v1402
    %1886 = vmatpush1.bf16.msra.mxu0 %v1401
    %1887 = vmatprep.subr.bf16.mxu0 %v1406
    %1888 = vmatpush1.bf16.msra.mxu0 %v1405
    %1889 = vmatprep.mubr.bf16.mxu0 %v562
    %1890 = vmatmul.mubr.bf16.gmra.mrb[0].mxu0 %v561
    %v1891 = vpop.f32.mrb[0].mxu0
    %v1892 = vadd.f32 %v503, %v1891
    %v1893 = vpop.f32.mrb[0].mxu0
    %v1894 = vadd.f32 %v507, %v1893
    %v1895 = vpop.f32.mrb[0].mxu0
    %v1896 = vpop.f32.mrb[0].mxu0
    %1897 = vdwg.mxu0
    %1898 = vmatprep.subr.bf16.mxu0 %v1410
    %1899 = vmatpush1.bf16.msra.mxu0 %v1409
    %1900 = vmatprep.subr.bf16.mxu0 %v1414
    %1901 = vmatpush1.bf16.msra.mxu0 %v1413
    %1902 = vmatprep.subr.bf16.mxu0 %v1418
    %1903 = vmatpush1.bf16.msra.mxu0 %v1417
    %1904 = vmatprep.subr.bf16.mxu0 %v1422
    %1905 = vmatpush1.bf16.msra.mxu0 %v1421
    %1906 = vmatprep.subr.bf16.mxu0 %v1426
    %1907 = vmatpush1.bf16.msra.mxu0 %v1425
    %1908 = vmatprep.subr.bf16.mxu0 %v1430
    %1909 = vmatpush1.bf16.msra.mxu0 %v1429
    %1910 = vmatprep.subr.bf16.mxu0 %v1434
    %1911 = vmatpush1.bf16.msra.mxu0 %v1433
    %1912 = vmatprep.subr.bf16.mxu0 %v1438
    %1913 = vmatpush1.bf16.msra.mxu0 %v1437
    %1914 = vmatprep.subr.bf16.mxu0 %v1442
    %1915 = vmatpush1.bf16.msra.mxu0 %v1441
    %1916 = vmatprep.subr.bf16.mxu0 %v1446
    %1917 = vmatpush1.bf16.msra.mxu0 %v1445
    %1918 = vmatprep.subr.bf16.mxu0 %v1450
    %1919 = vmatpush1.bf16.msra.mxu0 %v1449
    %1920 = vmatprep.subr.bf16.mxu0 %v1454
    %1921 = vmatpush1.bf16.msra.mxu0 %v1453
    %1922 = vmatprep.subr.bf16.mxu0 %v1458
    %1923 = vmatpush1.bf16.msra.mxu0 %v1457
    %1924 = vmatprep.subr.bf16.mxu0 %v1462
    %1925 = vmatpush1.bf16.msra.mxu0 %v1461
    %1926 = vmatprep.subr.bf16.mxu0 %v1466
    %1927 = vmatpush1.bf16.msra.mxu0 %v1465
    %1928 = vmatprep.subr.bf16.mxu0 %v1470
    %1929 = vmatpush1.bf16.msra.mxu0 %v1469
    %1930 = vmatprep.mubr.bf16.mxu0 %v564
    %1931 = vmatmul.mubr.bf16.gmra.mrb[0].mxu0 %v563
    %v1932 = vpop.f32.mrb[0].mxu0
    %v1933 = vadd.f32 %v1892, %v1932
    %v1934 = vpop.f32.mrb[0].mxu0
    %v1935 = vadd.f32 %v1894, %v1934
    %v1936 = vpop.f32.mrb[0].mxu0
    %v1937 = vpop.f32.mrb[0].mxu0
    %1938 = vdwg.mxu0
    %1939 = vmatprep.subr.bf16.mxu0 %v1474
    %1940 = vmatpush1.bf16.msra.mxu0 %v1473
    %1941 = vmatprep.subr.bf16.mxu0 %v1478
    %1942 = vmatpush1.bf16.msra.mxu0 %v1477
    %1943 = vmatprep.subr.bf16.mxu0 %v1482
    %1944 = vmatpush1.bf16.msra.mxu0 %v1481
    %1945 = vmatprep.subr.bf16.mxu0 %v1486
    %1946 = vmatpush1.bf16.msra.mxu0 %v1485
    %1947 = vmatprep.subr.bf16.mxu0 %v1490
    %1948 = vmatpush1.bf16.msra.mxu0 %v1489
    %1949 = vmatprep.subr.bf16.mxu0 %v1494
    %1950 = vmatpush1.bf16.msra.mxu0 %v1493
    %1951 = vmatprep.subr.bf16.mxu0 %v1498
    %1952 = vmatpush1.bf16.msra.mxu0 %v1497
    %1953 = vmatprep.subr.bf16.mxu0 %v1502
    %1954 = vmatpush1.bf16.msra.mxu0 %v1501
    %1955 = vmatprep.subr.bf16.mxu0 %v1506
    %1956 = vmatpush1.bf16.msra.mxu0 %v1505
    %1957 = vmatprep.subr.bf16.mxu0 %v1510
    %1958 = vmatpush1.bf16.msra.mxu0 %v1509
    %1959 = vmatprep.subr.bf16.mxu0 %v1514
    %1960 = vmatpush1.bf16.msra.mxu0 %v1513
    %1961 = vmatprep.subr.bf16.mxu0 %v1518
    %1962 = vmatpush1.bf16.msra.mxu0 %v1517
    %1963 = vmatprep.subr.bf16.mxu0 %v1522
    %1964 = vmatpush1.bf16.msra.mxu0 %v1521
    %1965 = vmatprep.subr.bf16.mxu0 %v1526
    %1966 = vmatpush1.bf16.msra.mxu0 %v1525
    %1967 = vmatprep.subr.bf16.mxu0 %v1530
    %1968 = vmatpush1.bf16.msra.mxu0 %v1529
    %1969 = vmatprep.subr.bf16.mxu0 %v1534
    %1970 = vmatpush1.bf16.msra.mxu0 %v1533
    %1971 = vmatprep.mubr.bf16.mxu0 %v566
    %1972 = vmatmul.mubr.bf16.gmra.mrb[0].mxu0 %v565
    %v1973 = vpop.f32.mrb[0].mxu0
    %v1974 = vadd.f32 %v1933, %v1973
    %v1975 = vpop.f32.mrb[0].mxu0
    %v1976 = vadd.f32 %v1935, %v1975
    %v1977 = vpop.f32.mrb[0].mxu0
    %v1978 = vpop.f32.mrb[0].mxu0
    %1979 = vdwg.mxu0
    %1980 = vmatprep.subr.bf16.mxu0 %v1538
    %1981 = vmatpush1.bf16.msra.mxu0 %v1537
    %1982 = vmatprep.subr.bf16.mxu0 %v1542
    %1983 = vmatpush1.bf16.msra.mxu0 %v1541
    %1984 = vmatprep.subr.bf16.mxu0 %v1546
    %1985 = vmatpush1.bf16.msra.mxu0 %v1545
    %1986 = vmatprep.subr.bf16.mxu0 %v1550
    %1987 = vmatpush1.bf16.msra.mxu0 %v1549
    %1988 = vmatprep.subr.bf16.mxu0 %v1554
    %1989 = vmatpush1.bf16.msra.mxu0 %v1553
    %1990 = vmatprep.subr.bf16.mxu0 %v1558
    %1991 = vmatpush1.bf16.msra.mxu0 %v1557
    %1992 = vmatprep.subr.bf16.mxu0 %v1562
    %1993 = vmatpush1.bf16.msra.mxu0 %v1561
    %1994 = vmatprep.subr.bf16.mxu0 %v1566
    %1995 = vmatpush1.bf16.msra.mxu0 %v1565
    %1996 = vmatprep.subr.bf16.mxu0 %v1570
    %1997 = vmatpush1.bf16.msra.mxu0 %v1569
    %1998 = vmatprep.subr.bf16.mxu0 %v1574
    %1999 = vmatpush1.bf16.msra.mxu0 %v1573
    %2000 = vmatprep.subr.bf16.mxu0 %v1578
    %2001 = vmatpush1.bf16.msra.mxu0 %v1577
    %2002 = vmatprep.subr.bf16.mxu0 %v1582
    %2003 = vmatpush1.bf16.msra.mxu0 %v1581
    %2004 = vmatprep.subr.bf16.mxu0 %v1586
    %2005 = vmatpush1.bf16.msra.mxu0 %v1585
    %2006 = vmatprep.subr.bf16.mxu0 %v1590
    %2007 = vmatpush1.bf16.msra.mxu0 %v1589
    %2008 = vmatprep.subr.bf16.mxu0 %v1594
    %2009 = vmatpush1.bf16.msra.mxu0 %v1593
    %2010 = vmatprep.subr.bf16.mxu0 %v1598
    %2011 = vmatpush1.bf16.msra.mxu0 %v1597
    %2012 = vmatprep.mubr.bf16.mxu0 %v568
    %2013 = vmatmul.mubr.bf16.gmra.mrb[0].mxu0 %v567
    %v2014 = vpop.f32.mrb[0].mxu0
    %v2015 = vadd.f32 %v1974, %v2014
    %v2016 = vpop.f32.mrb[0].mxu0
    %v2017 = vadd.f32 %v1976, %v2016
    %v2018 = vpop.f32.mrb[0].mxu0
    %v2019 = vpop.f32.mrb[0].mxu0
    %2020 = vdwg.mxu0
    %2021 = vmatprep.subr.bf16.mxu0 %v1348
    %2022 = vmatpush1.bf16.msra.mxu0 %v1347
    %2023 = vmatprep.subr.bf16.mxu0 %v1352
    %2024 = vmatpush1.bf16.msra.mxu0 %v1351
    %2025 = vmatprep.subr.bf16.mxu0 %v1356
    %2026 = vmatpush1.bf16.msra.mxu0 %v1355
    %2027 = vmatprep.subr.bf16.mxu0 %v1360
    %2028 = vmatpush1.bf16.msra.mxu0 %v1359
    %2029 = vmatprep.subr.bf16.mxu0 %v1364
    %2030 = vmatpush1.bf16.msra.mxu0 %v1363
    %2031 = vmatprep.subr.bf16.mxu0 %v1368
    %2032 = vmatpush1.bf16.msra.mxu0 %v1367
    %2033 = vmatprep.subr.bf16.mxu0 %v1372
    %2034 = vmatpush1.bf16.msra.mxu0 %v1371
    %2035 = vmatprep.subr.bf16.mxu0 %v1376
    %2036 = vmatpush1.bf16.msra.mxu0 %v1375
    %2037 = vmatprep.subr.bf16.mxu0 %v1380
    %2038 = vmatpush1.bf16.msra.mxu0 %v1379
    %2039 = vmatprep.subr.bf16.mxu0 %v1384
    %2040 = vmatpush1.bf16.msra.mxu0 %v1383
    %2041 = vmatprep.subr.bf16.mxu0 %v1388
    %2042 = vmatpush1.bf16.msra.mxu0 %v1387
    %2043 = vmatprep.subr.bf16.mxu0 %v1392
    %2044 = vmatpush1.bf16.msra.mxu0 %v1391
    %2045 = vmatprep.subr.bf16.mxu0 %v1396
    %2046 = vmatpush1.bf16.msra.mxu0 %v1395
    %2047 = vmatprep.subr.bf16.mxu0 %v1400
    %2048 = vmatpush1.bf16.msra.mxu0 %v1399
    %2049 = vmatprep.subr.bf16.mxu0 %v1404
    %2050 = vmatpush1.bf16.msra.mxu0 %v1403
    %2051 = vmatprep.subr.bf16.mxu0 %v1408
    %2052 = vmatpush1.bf16.msra.mxu0 %v1407
    %2053 = vmatprep.mubr.bf16.mxu0 %v562
    %2054 = vmatmul.mubr.bf16.gmra.mrb[0].mxu0 %v561
    %v2055 = vpop.f32.mrb[0].mxu0
    %v2056 = vadd.f32 %v511, %v2055
    %v2057 = vpop.f32.mrb[0].mxu0
    %v2058 = vadd.f32 %v515, %v2057
    %v2059 = vpop.f32.mrb[0].mxu0
    %v2060 = vpop.f32.mrb[0].mxu0
    %2061 = vdwg.mxu0
    %2062 = vmatprep.subr.bf16.mxu0 %v1412
    %2063 = vmatpush1.bf16.msra.mxu0 %v1411
    %2064 = vmatprep.subr.bf16.mxu0 %v1416
    %2065 = vmatpush1.bf16.msra.mxu0 %v1415
    %2066 = vmatprep.subr.bf16.mxu0 %v1420
    %2067 = vmatpush1.bf16.msra.mxu0 %v1419
    %2068 = vmatprep.subr.bf16.mxu0 %v1424
    %2069 = vmatpush1.bf16.msra.mxu0 %v1423
    %2070 = vmatprep.subr.bf16.mxu0 %v1428
    %2071 = vmatpush1.bf16.msra.mxu0 %v1427
    %2072 = vmatprep.subr.bf16.mxu0 %v1432
    %2073 = vmatpush1.bf16.msra.mxu0 %v1431
    %2074 = vmatprep.subr.bf16.mxu0 %v1436
    %2075 = vmatpush1.bf16.msra.mxu0 %v1435
    %2076 = vmatprep.subr.bf16.mxu0 %v1440
    %2077 = vmatpush1.bf16.msra.mxu0 %v1439
    %2078 = vmatprep.subr.bf16.mxu0 %v1444
    %2079 = vmatpush1.bf16.msra.mxu0 %v1443
    %2080 = vmatprep.subr.bf16.mxu0 %v1448
    %2081 = vmatpush1.bf16.msra.mxu0 %v1447
    %2082 = vmatprep.subr.bf16.mxu0 %v1452
    %2083 = vmatpush1.bf16.msra.mxu0 %v1451
    %2084 = vmatprep.subr.bf16.mxu0 %v1456
    %2085 = vmatpush1.bf16.msra.mxu0 %v1455
    %2086 = vmatprep.subr.bf16.mxu0 %v1460
    %2087 = vmatpush1.bf16.msra.mxu0 %v1459
    %2088 = vmatprep.subr.bf16.mxu0 %v1464
    %2089 = vmatpush1.bf16.msra.mxu0 %v1463
    %2090 = vmatprep.subr.bf16.mxu0 %v1468
    %2091 = vmatpush1.bf16.msra.mxu0 %v1467
    %2092 = vmatprep.subr.bf16.mxu0 %v1472
    %2093 = vmatpush1.bf16.msra.mxu0 %v1471
    %2094 = vmatprep.mubr.bf16.mxu0 %v564
    %2095 = vmatmul.mubr.bf16.gmra.mrb[0].mxu0 %v563
    %v2096 = vpop.f32.mrb[0].mxu0
    %v2097 = vadd.f32 %v2056, %v2096
    %v2098 = vpop.f32.mrb[0].mxu0
    %v2099 = vadd.f32 %v2058, %v2098
    %v2100 = vpop.f32.mrb[0].mxu0
    %v2101 = vpop.f32.mrb[0].mxu0
    %2102 = vdwg.mxu0
    %2103 = vmatprep.subr.bf16.mxu0 %v1476
    %2104 = vmatpush1.bf16.msra.mxu0 %v1475
    %2105 = vmatprep.subr.bf16.mxu0 %v1480
    %2106 = vmatpush1.bf16.msra.mxu0 %v1479
    %2107 = vmatprep.subr.bf16.mxu0 %v1484
    %2108 = vmatpush1.bf16.msra.mxu0 %v1483
    %2109 = vmatprep.subr.bf16.mxu0 %v1488
    %2110 = vmatpush1.bf16.msra.mxu0 %v1487
    %2111 = vmatprep.subr.bf16.mxu0 %v1492
    %2112 = vmatpush1.bf16.msra.mxu0 %v1491
    %2113 = vmatprep.subr.bf16.mxu0 %v1496
    %2114 = vmatpush1.bf16.msra.mxu0 %v1495
    %2115 = vmatprep.subr.bf16.mxu0 %v1500
    %2116 = vmatpush1.bf16.msra.mxu0 %v1499
    %2117 = vmatprep.subr.bf16.mxu0 %v1504
    %2118 = vmatpush1.bf16.msra.mxu0 %v1503
    %2119 = vmatprep.subr.bf16.mxu0 %v1508
    %2120 = vmatpush1.bf16.msra.mxu0 %v1507
    %2121 = vmatprep.subr.bf16.mxu0 %v1512
    %2122 = vmatpush1.bf16.msra.mxu0 %v1511
    %2123 = vmatprep.subr.bf16.mxu0 %v1516
    %2124 = vmatpush1.bf16.msra.mxu0 %v1515
    %2125 = vmatprep.subr.bf16.mxu0 %v1520
    %2126 = vmatpush1.bf16.msra.mxu0 %v1519
    %2127 = vmatprep.subr.bf16.mxu0 %v1524
    %2128 = vmatpush1.bf16.msra.mxu0 %v1523
    %2129 = vmatprep.subr.bf16.mxu0 %v1528
    %2130 = vmatpush1.bf16.msra.mxu0 %v1527
    %2131 = vmatprep.subr.bf16.mxu0 %v1532
    %2132 = vmatpush1.bf16.msra.mxu0 %v1531
    %2133 = vmatprep.subr.bf16.mxu0 %v1536
    %2134 = vmatpush1.bf16.msra.mxu0 %v1535
    %2135 = vmatprep.mubr.bf16.mxu0 %v566
    %2136 = vmatmul.mubr.bf16.gmra.mrb[0].mxu0 %v565
    %v2137 = vpop.f32.mrb[0].mxu0
    %v2138 = vadd.f32 %v2097, %v2137
    %v2139 = vpop.f32.mrb[0].mxu0
    %v2140 = vadd.f32 %v2099, %v2139
    %v2141 = vpop.f32.mrb[0].mxu0
    %v2142 = vpop.f32.mrb[0].mxu0
    %2143 = vdwg.mxu0
    %2144 = vmatprep.subr.bf16.mxu0 %v1540
    %2145 = vmatpush1.bf16.msra.mxu0 %v1539
    %2146 = vmatprep.subr.bf16.mxu0 %v1544
    %2147 = vmatpush1.bf16.msra.mxu0 %v1543
    %2148 = vmatprep.subr.bf16.mxu0 %v1548
    %2149 = vmatpush1.bf16.msra.mxu0 %v1547
    %2150 = vmatprep.subr.bf16.mxu0 %v1552
    %2151 = vmatpush1.bf16.msra.mxu0 %v1551
    %2152 = vmatprep.subr.bf16.mxu0 %v1556
    %2153 = vmatpush1.bf16.msra.mxu0 %v1555
    %2154 = vmatprep.subr.bf16.mxu0 %v1560
    %2155 = vmatpush1.bf16.msra.mxu0 %v1559
    %2156 = vmatprep.subr.bf16.mxu0 %v1564
    %2157 = vmatpush1.bf16.msra.mxu0 %v1563
    %2158 = vmatprep.subr.bf16.mxu0 %v1568
    %2159 = vmatpush1.bf16.msra.mxu0 %v1567
    %2160 = vmatprep.subr.bf16.mxu0 %v1572
    %2161 = vmatpush1.bf16.msra.mxu0 %v1571
    %2162 = vmatprep.subr.bf16.mxu0 %v1576
    %2163 = vmatpush1.bf16.msra.mxu0 %v1575
    %2164 = vmatprep.subr.bf16.mxu0 %v1580
    %2165 = vmatpush1.bf16.msra.mxu0 %v1579
    %2166 = vmatprep.subr.bf16.mxu0 %v1584
    %2167 = vmatpush1.bf16.msra.mxu0 %v1583
    %2168 = vmatprep.subr.bf16.mxu0 %v1588
    %2169 = vmatpush1.bf16.msra.mxu0 %v1587
    %2170 = vmatprep.subr.bf16.mxu0 %v1592
    %2171 = vmatpush1.bf16.msra.mxu0 %v1591
    %2172 = vmatprep.subr.bf16.mxu0 %v1596
    %2173 = vmatpush1.bf16.msra.mxu0 %v1595
    %2174 = vmatprep.subr.bf16.mxu0 %v1600
    %2175 = vmatpush1.bf16.msra.mxu0 %v1599
    %2176 = vmatprep.mubr.bf16.mxu0 %v568
    %2177 = vmatmul.mubr.bf16.gmra.mrb[0].mxu0 %v567
    %v2178 = vpop.f32.mrb[0].mxu0
    %v2179 = vadd.f32 %v2138, %v2178
    %v2180 = vpop.f32.mrb[0].mxu0
    %v2181 = vadd.f32 %v2140, %v2180
    %v2182 = vpop.f32.mrb[0].mxu0
    %v2183 = vpop.f32.mrb[0].mxu0
    %2184 = vdwg.mxu0
    %v2185 = vmul.f32 %v2015, %v2015
    %v2186 = vmul.f32 %v2017, %v2017
    %v2187 = vmul.f32 %v2179, %v2179
    %v2188 = vmul.f32 %v2181, %v2181
    %vm2189 = vcmask 1041408
    %v2190 = vsel %vm2189, %v2185, 0.0
    %v2191 = vsel %vm2189, %v2186, 0.0
    %v2192 = vadd.f32 %v2190, %v2191
    %v2193 = vsel %vm2189, %v2187, 0.0
    %v2194 = vadd.f32 %v2192, %v2193
    %v2195 = vsel %vm2189, %v2188, 0.0
    %v2196 = vadd.f32 %v2194, %v2195
    %2197 = vadd.xlane.f32.xlu0 %v2196
    %v2198 = vpop.xlane.xlu0 %2197
    %v2199 = vadd.f32 %v2198, 1e-16
    %v2200 = vrsqrt.pop %v2199
    %v2201 = vmul.f32 %v2015, %v2200
    %v2202 = vmul.f32 %v2017, %v2200
    %v2203 = vmul.f32 %v2179, %v2200
    %v2204 = vmul.f32 %v2181, %v2200
    %v2209 = vcombine.low %v2201, %v2202
    %v2210 = vcombine.low %v2203, %v2204
    %v2212 = vunpack.c.l.s4 1983009808
    %v2213 = vunpack.c.0.s8 %v2212
    %v2214 = vlaneseq
    %v2215 = vshrl.u32 %v2214, 7
    %v2216 = vsub.s32 %v2213, %v2215
    %v2217 = vrot.slane %v2209, %v2216
    %v2219 = vunpack.c.l.s4 1983009808
    %v2220 = vunpack.c.0.s8 %v2219
    %v2221 = vlaneseq
    %v2222 = vshrl.u32 %v2221, 7
    %v2223 = vsub.s32 %v2220, %v2222
    %v2224 = vrot.slane %v2210, %v2223
    %v2225 = vcombine.low %v2217, %v2224
    %2227 = vst [vmem:[#allocation9] sm:$0xff] %v2225
    %v2228 = vpack.c.bf16 %v2015, %v2015
    %v2229 = vpack.c.bf16 %v2017, %v2017
    %v2230 = vpack.c.bf16 %v2179, %v2179
    %v2231 = vpack.c.bf16 %v2181, %v2181
    %v2232 = vld [vmem:[#allocation7] sm:$0xf]
    %v2233 = vld [vmem:[#allocation7 + $0x4] sm:$0xf]
    %v2234 = vld [vmem:[#allocation7 + $0x8] sm:$0xf]
    %v2235 = vld [vmem:[#allocation7 + $0xc] sm:$0xf]
    %v2236 = vld [vmem:[#allocation7 + $0x10] sm:$0xf]
    %v2237 = vld [vmem:[#allocation7 + $0x14] sm:$0xf]
    %v2238 = vld [vmem:[#allocation7 + $0x18] sm:$0xf]
    %v2239 = vld [vmem:[#allocation7 + $0x1c] sm:$0xf]
    %v2240 = vld [vmem:[#allocation7 + $0x20] sm:$0xf]
    %v2241 = vld [vmem:[#allocation7 + $0x24] sm:$0xf]
    %v2242 = vld [vmem:[#allocation7 + $0x28] sm:$0xf]
    %v2243 = vld [vmem:[#allocation7 + $0x2c] sm:$0xf]
    %v2244 = vld [vmem:[#allocation7 + $0x30] sm:$0xf]
    %v2245 = vld [vmem:[#allocation7 + $0x34] sm:$0xf]
    %v2246 = vld [vmem:[#allocation7 + $0x38] sm:$0xf]
    %v2247 = vld [vmem:[#allocation7 + $0x3c] sm:$0xf]
    %v2248 = vld [vmem:[#allocation7 + $0x40] sm:$0xf]
    %v2249 = vld [vmem:[#allocation7 + $0x44] sm:$0xf]
    %v2250 = vld [vmem:[#allocation7 + $0x48] sm:$0xf]
    %v2251 = vld [vmem:[#allocation7 + $0x4c] sm:$0xf]
    %v2252 = vld [vmem:[#allocation7 + $0x50] sm:$0xf]
    %v2253 = vld [vmem:[#allocation7 + $0x54] sm:$0xf]
    %v2254 = vld [vmem:[#allocation7 + $0x58] sm:$0xf]
    %v2255 = vld [vmem:[#allocation7 + $0x5c] sm:$0xf]
    %v2256 = vld [vmem:[#allocation7 + $0x60] sm:$0xf]
    %v2257 = vld [vmem:[#allocation7 + $0x64] sm:$0xf]
    %v2258 = vld [vmem:[#allocation7 + $0x68] sm:$0xf]
    %v2259 = vld [vmem:[#allocation7 + $0x6c] sm:$0xf]
    %v2260 = vld [vmem:[#allocation7 + $0x70] sm:$0xf]
    %v2261 = vld [vmem:[#allocation7 + $0x74] sm:$0xf]
    %v2262 = vld [vmem:[#allocation7 + $0x78] sm:$0xf]
    %v2263 = vld [vmem:[#allocation7 + $0x7c] sm:$0xf]
    %v2264 = vld [vmem:[#allocation7 + $0x80] sm:$0xf]
    %v2265 = vld [vmem:[#allocation7 + $0x84] sm:$0xf]
    %v2266 = vld [vmem:[#allocation7 + $0x88] sm:$0xf]
    %v2267 = vld [vmem:[#allocation7 + $0x8c] sm:$0xf]
    %v2268 = vld [vmem:[#allocation7 + $0x90] sm:$0xf]
    %v2269 = vld [vmem:[#allocation7 + $0x94] sm:$0xf]
    %v2270 = vld [vmem:[#allocation7 + $0x98] sm:$0xf]
    %v2271 = vld [vmem:[#allocation7 + $0x9c] sm:$0xf]
    %v2272 = vld [vmem:[#allocation7 + $0xa0] sm:$0xf]
    %v2273 = vld [vmem:[#allocation7 + $0xa4] sm:$0xf]
    %v2274 = vld [vmem:[#allocation7 + $0xa8] sm:$0xf]
    %v2275 = vld [vmem:[#allocation7 + $0xac] sm:$0xf]
    %v2276 = vld [vmem:[#allocation7 + $0xb0] sm:$0xf]
    %v2277 = vld [vmem:[#allocation7 + $0xb4] sm:$0xf]
    %v2278 = vld [vmem:[#allocation7 + $0xb8] sm:$0xf]
    %v2279 = vld [vmem:[#allocation7 + $0xbc] sm:$0xf]
    %v2280 = vld [vmem:[#allocation7 + $0xc0] sm:$0xf]
    %v2281 = vld [vmem:[#allocation7 + $0xc4] sm:$0xf]
    %v2282 = vld [vmem:[#allocation7 + $0xc8] sm:$0xf]
    %v2283 = vld [vmem:[#allocation7 + $0xcc] sm:$0xf]
    %v2284 = vld [vmem:[#allocation7 + $0xd0] sm:$0xf]
    %v2285 = vld [vmem:[#allocation7 + $0xd4] sm:$0xf]
    %v2286 = vld [vmem:[#allocation7 + $0xd8] sm:$0xf]
    %v2287 = vld [vmem:[#allocation7 + $0xdc] sm:$0xf]
    %v2288 = vld [vmem:[#allocation7 + $0xe0] sm:$0xf]
    %v2289 = vld [vmem:[#allocation7 + $0xe4] sm:$0xf]
    %v2290 = vld [vmem:[#allocation7 + $0xe8] sm:$0xf]
    %v2291 = vld [vmem:[#allocation7 + $0xec] sm:$0xf]
    %v2292 = vld [vmem:[#allocation7 + $0xf0] sm:$0xf]
    %v2293 = vld [vmem:[#allocation7 + $0xf4] sm:$0xf]
    %v2294 = vld [vmem:[#allocation7 + $0xf8] sm:$0xf]
    %v2295 = vld [vmem:[#allocation7 + $0xfc] sm:$0xf]
    %v2296 = vld [vmem:[%s4] sm:$0x1]
    %v2298 = vlaneseq
    %v2299 = vshrl.u32 %v2298, 7
    %v2300 = vsub.s32 0, %v2299
    %v2301 = vrot.slane %v2296, %v2300
    %v2367 = vunpack.c.l.b16 %v2232
    %v2368 = vunpack.c.l.b16 %v2233
    %v2369 = vunpack.c.l.b16 %v2234
    %v2370 = vunpack.c.l.b16 %v2235
    %v2371 = vunpack.c.l.b16 %v2236
    %v2372 = vunpack.c.l.b16 %v2237
    %v2373 = vunpack.c.l.b16 %v2238
    %v2374 = vunpack.c.l.b16 %v2239
    %v2375 = vunpack.c.l.b16 %v2240
    %v2376 = vunpack.c.l.b16 %v2241
    %v2377 = vunpack.c.l.b16 %v2242
    %v2378 = vunpack.c.l.b16 %v2243
    %v2379 = vunpack.c.l.b16 %v2244
    %v2380 = vunpack.c.l.b16 %v2245
    %v2381 = vunpack.c.l.b16 %v2246
    %v2382 = vunpack.c.l.b16 %v2247
    %v2383 = vunpack.c.l.b16 %v2248
    %v2384 = vunpack.c.l.b16 %v2249
    %v2385 = vunpack.c.l.b16 %v2250
    %v2386 = vunpack.c.l.b16 %v2251
    %v2387 = vunpack.c.l.b16 %v2252
    %v2388 = vunpack.c.l.b16 %v2253
    %v2389 = vunpack.c.l.b16 %v2254
    %v2390 = vunpack.c.l.b16 %v2255
    %v2391 = vunpack.c.l.b16 %v2256
    %v2392 = vunpack.c.l.b16 %v2257
    %v2393 = vunpack.c.l.b16 %v2258
    %v2394 = vunpack.c.l.b16 %v2259
    %v2395 = vunpack.c.l.b16 %v2260
    %v2396 = vunpack.c.l.b16 %v2261
    %v2397 = vunpack.c.l.b16 %v2262
    %v2398 = vunpack.c.l.b16 %v2263
    %v2399 = vunpack.c.l.b16 %v2264
    %v2400 = vunpack.c.l.b16 %v2265
    %v2401 = vunpack.c.l.b16 %v2266
    %v2402 = vunpack.c.l.b16 %v2267
    %v2403 = vunpack.c.l.b16 %v2268
    %v2404 = vunpack.c.l.b16 %v2269
    %v2405 = vunpack.c.l.b16 %v2270
    %v2406 = vunpack.c.l.b16 %v2271
    %v2407 = vunpack.c.l.b16 %v2272
    %v2408 = vunpack.c.l.b16 %v2273
    %v2409 = vunpack.c.l.b16 %v2274
    %v2410 = vunpack.c.l.b16 %v2275
    %v2411 = vunpack.c.l.b16 %v2276
    %v2412 = vunpack.c.l.b16 %v2277
    %v2413 = vunpack.c.l.b16 %v2278
    %v2414 = vunpack.c.l.b16 %v2279
    %v2415 = vunpack.c.l.b16 %v2280
    %v2416 = vunpack.c.l.b16 %v2281
    %v2417 = vunpack.c.l.b16 %v2282
    %v2418 = vunpack.c.l.b16 %v2283
    %v2419 = vunpack.c.l.b16 %v2284
    %v2420 = vunpack.c.l.b16 %v2285
    %v2421 = vunpack.c.l.b16 %v2286
    %v2422 = vunpack.c.l.b16 %v2287
    %v2423 = vunpack.c.l.b16 %v2288
    %v2424 = vunpack.c.l.b16 %v2289
    %v2425 = vunpack.c.l.b16 %v2290
    %v2426 = vunpack.c.l.b16 %v2291
    %v2427 = vunpack.c.l.b16 %v2292
    %v2428 = vunpack.c.l.b16 %v2293
    %v2429 = vunpack.c.l.b16 %v2294
    %v2430 = vunpack.c.l.b16 %v2295
    %v2431 = vpack.c.b16 %v2368, %v2367
    %v2432 = vpack.c.b16 %v2370, %v2369
    %v2433 = vpack.c.b16 %v2372, %v2371
    %v2434 = vpack.c.b16 %v2374, %v2373
    %v2435 = vpack.c.b16 %v2376, %v2375
    %v2436 = vpack.c.b16 %v2378, %v2377
    %v2437 = vpack.c.b16 %v2380, %v2379
    %v2438 = vpack.c.b16 %v2382, %v2381
    %v2439 = vpack.c.b16 %v2384, %v2383
    %v2440 = vpack.c.b16 %v2386, %v2385
    %v2441 = vpack.c.b16 %v2388, %v2387
    %v2442 = vpack.c.b16 %v2390, %v2389
    %v2443 = vpack.c.b16 %v2392, %v2391
    %v2444 = vpack.c.b16 %v2394, %v2393
    %v2445 = vpack.c.b16 %v2396, %v2395
    %v2446 = vpack.c.b16 %v2398, %v2397
    %v2447 = vpack.c.b16 %v2400, %v2399
    %v2448 = vpack.c.b16 %v2402, %v2401
    %v2449 = vpack.c.b16 %v2404, %v2403
    %v2450 = vpack.c.b16 %v2406, %v2405
    %v2451 = vpack.c.b16 %v2408, %v2407
    %v2452 = vpack.c.b16 %v2410, %v2409
    %v2453 = vpack.c.b16 %v2412, %v2411
    %v2454 = vpack.c.b16 %v2414, %v2413
    %v2455 = vpack.c.b16 %v2416, %v2415
    %v2456 = vpack.c.b16 %v2418, %v2417
    %v2457 = vpack.c.b16 %v2420, %v2419
    %v2458 = vpack.c.b16 %v2422, %v2421
    %v2459 = vpack.c.b16 %v2424, %v2423
    %v2460 = vpack.c.b16 %v2426, %v2425
    %v2461 = vpack.c.b16 %v2428, %v2427
    %v2462 = vpack.c.b16 %v2430, %v2429
    %2495 = vmatprep.subr.bf16.mxu0 0
    %2496 = vmatpush1.bf16.msra.mxu0 %v2431
    %2497 = vmatprep.subr.bf16.mxu0 0
    %2498 = vmatpush1.bf16.msra.mxu0 %v2432
    %2499 = vmatprep.subr.bf16.mxu0 0
    %2500 = vmatpush1.bf16.msra.mxu0 %v2433
    %2501 = vmatprep.subr.bf16.mxu0 0
    %2502 = vmatpush1.bf16.msra.mxu0 %v2434
    %2503 = vmatprep.subr.bf16.mxu0 0
    %2504 = vmatpush1.bf16.msra.mxu0 %v2435
    %2505 = vmatprep.subr.bf16.mxu0 0
    %2506 = vmatpush1.bf16.msra.mxu0 %v2436
    %2507 = vmatprep.subr.bf16.mxu0 0
    %2508 = vmatpush1.bf16.msra.mxu0 %v2437
    %2509 = vmatprep.subr.bf16.mxu0 0
    %2510 = vmatpush1.bf16.msra.mxu0 %v2438
    %2511 = vmatprep.subr.bf16.mxu0 0
    %2512 = vmatpush1.bf16.msra.mxu0 %v2439
    %2513 = vmatprep.subr.bf16.mxu0 0
    %2514 = vmatpush1.bf16.msra.mxu0 %v2440
    %2515 = vmatprep.subr.bf16.mxu0 0
    %2516 = vmatpush1.bf16.msra.mxu0 %v2441
    %2517 = vmatprep.subr.bf16.mxu0 0
    %2518 = vmatpush1.bf16.msra.mxu0 %v2442
    %2519 = vmatprep.subr.bf16.mxu0 0
    %2520 = vmatpush1.bf16.msra.mxu0 %v2443
    %2521 = vmatprep.subr.bf16.mxu0 0
    %2522 = vmatpush1.bf16.msra.mxu0 %v2444
    %2523 = vmatprep.subr.bf16.mxu0 0
    %2524 = vmatpush1.bf16.msra.mxu0 %v2445
    %2525 = vmatprep.subr.bf16.mxu0 0
    %2526 = vmatpush1.bf16.msra.mxu0 %v2446
    %2527 = vmatprep.mubr.bf16.mxu0 %v2229
    %2528 = vmatmul.mubr.bf16.gmra.mrb[0].mxu0 %v2228
    %v2529 = vpop.f32.mrb[0].mxu0
    %v2530 = vadd.f32 %v2301, %v2529
    %v2531 = vpop.f32.mrb[0].mxu0
    %v2532 = vpop.f32.mrb[0].mxu0
    %v2533 = vpop.f32.mrb[0].mxu0
    %2534 = vdwg.mxu0
    %2535 = vmatprep.subr.bf16.mxu0 0
    %2536 = vmatpush1.bf16.msra.mxu0 %v2447
    %2537 = vmatprep.subr.bf16.mxu0 0
    %2538 = vmatpush1.bf16.msra.mxu0 %v2448
    %2539 = vmatprep.subr.bf16.mxu0 0
    %2540 = vmatpush1.bf16.msra.mxu0 %v2449
    %2541 = vmatprep.subr.bf16.mxu0 0
    %2542 = vmatpush1.bf16.msra.mxu0 %v2450
    %2543 = vmatprep.subr.bf16.mxu0 0
    %2544 = vmatpush1.bf16.msra.mxu0 %v2451
    %2545 = vmatprep.subr.bf16.mxu0 0
    %2546 = vmatpush1.bf16.msra.mxu0 %v2452
    %2547 = vmatprep.subr.bf16.mxu0 0
    %2548 = vmatpush1.bf16.msra.mxu0 %v2453
    %2549 = vmatprep.subr.bf16.mxu0 0
    %2550 = vmatpush1.bf16.msra.mxu0 %v2454
    %2551 = vmatprep.subr.bf16.mxu0 0
    %2552 = vmatpush1.bf16.msra.mxu0 %v2455
    %2553 = vmatprep.subr.bf16.mxu0 0
    %2554 = vmatpush1.bf16.msra.mxu0 %v2456
    %2555 = vmatprep.subr.bf16.mxu0 0
    %2556 = vmatpush1.bf16.msra.mxu0 %v2457
    %2557 = vmatprep.subr.bf16.mxu0 0
    %2558 = vmatpush1.bf16.msra.mxu0 %v2458
    %2559 = vmatprep.subr.bf16.mxu0 0
    %2560 = vmatpush1.bf16.msra.mxu0 %v2459
    %2561 = vmatprep.subr.bf16.mxu0 0
    %2562 = vmatpush1.bf16.msra.mxu0 %v2460
    %2563 = vmatprep.subr.bf16.mxu0 0
    %2564 = vmatpush1.bf16.msra.mxu0 %v2461
    %2565 = vmatprep.subr.bf16.mxu0 0
    %2566 = vmatpush1.bf16.msra.mxu0 %v2462
    %2567 = vmatprep.mubr.bf16.mxu0 %v2231
    %2568 = vmatmul.mubr.bf16.gmra.mrb[0].mxu0 %v2230
    %v2569 = vpop.f32.mrb[0].mxu0
    %v2570 = vadd.f32 %v2530, %v2569
    %v2571 = vpop.f32.mrb[0].mxu0
    %v2572 = vpop.f32.mrb[0].mxu0
    %v2573 = vpop.f32.mrb[0].mxu0
    %2574 = vdwg.mxu0
    %2575 = vst [vmem:[#allocation8] sm:$0x3] %v2570
    // Predicated region
    $region34: #{tpu_custom_call.1} parent=1 // pred_check
      _
    $region35: #{tpu_custom_call.1} parent=1 // pred_check_branch
      %2577 = sbr.rel (0) target = $region37
    $region36: #{tpu_custom_call.1} parent=1 // pred_region
      %s2579 = ssub.s32 32, 32
      %2580 = vsyncadd [#allocation4], %s2579
      %s2582 = sshll.u32 [#allocation8], 4
      %s2583 = int_to_ptr.vmem [resolvable:$true] %s2582
      %2585 = dma.vmem_to_hbm [thread:$0]  %s2583, 32, %s5, [#allocation4]
    $region37: #{tpu_custom_call.1} parent=1 // pred_fallthru
      _
    // Predicated region
    $region38: #{tpu_custom_call.1} parent=1 // pred_check
      _
    $region39: #{tpu_custom_call.1} parent=1 // pred_check_branch
      %2587 = sbr.rel (0) target = $region41
    $region40: #{tpu_custom_call.1} parent=1 // pred_region
      %s2589 = ssub.s32 128, 128
      %2590 = vsyncadd [#allocation10], %s2589
      %s2592 = sshll.u32 [#allocation9], 4
      %s2593 = int_to_ptr.vmem [resolvable:$true] %s2592
      %2595 = dma.vmem_to_hbm [thread:$0]  %s2593, 128, %s6, [#allocation10]
    $region41: #{tpu_custom_call.1} parent=1 // pred_fallthru
      _
    // Predicated region
    $region42: #{tpu_custom_call.1} parent=1 // pred_check
      _
    $region43: #{tpu_custom_call.1} parent=1 // pred_check_branch
      %2597 = sbr.rel (0) target = $region45
    $region44: #{tpu_custom_call.1} parent=1 // pred_region
      %2598 = dma.done [#allocation4], 32
    $region45: #{tpu_custom_call.1} parent=1 // pred_fallthru
      _
    // Predicated region
    $region46: #{tpu_custom_call.1} parent=1 // pred_check
      _
    $region47: #{tpu_custom_call.1} parent=1 // pred_check_branch
      %2600 = sbr.rel (0) target = $region49
    $region48: #{tpu_custom_call.1} parent=1 // pred_region
      %2601 = dma.done [#allocation10], 128
    $region49: #{tpu_custom_call.1} parent=1 // pred_fallthru
      _
    %2602 = vsyncpa [#allocation3], 1
    %2603 = vsyncpa [#allocation6], 1
    %2604 = vsyncpa [#allocation4], 1
    %2605 = vsyncpa [#allocation10], 1

// kernel: tpu_custom_call.1
$region0: #{tpu_custom_call.1}
  #allocation0 [shape = 'u32[]', space=smem, size = 0x4, offset = 0x4, fixed_abs, tag = 'smem constant byte address 0x4 - core index']
  #allocation1 [shape = 'u32[144,128]{1,0:T(1,128)}', space=vmem, size = 0x12000, scoped, tag = 'internal scratch']
  %s0 = inlined_call_operand.hbm [shape: bf16[2,16,1024], index: 0, kind: input, shape index: {}]
  %s1 = inlined_call_operand.hbm [shape: bf16[1024,512], index: 1, kind: input, shape index: {}]
  %s2 = inlined_call_operand.vmem [shape: f32[1,512], index: 2, kind: input, shape index: {}]
  %s3 = inlined_call_operand.hbm [shape: bf16[512,128], index: 3, kind: input, shape index: {}]
  %s4 = inlined_call_operand.vmem [shape: f32[1,128], index: 4, kind: input, shape index: {}]
  %s5 = inlined_call_operand.hbm [shape: f32[2,128], index: 5, kind: output, shape index: {0}]
  %s6 = inlined_call_operand.hbm [shape: f32[2,512], index: 6, kind: output, shape index: {1}]
  %7 = xla_tuple %s5, %s6
  %s8 = sld [smem:[#allocation0]]
  $region50: #{tpu_custom_call.1} parent=0
    _
  %s10 = ssub.s32 1, %s8
  %s11 = scalar_select 0, %s10, %s8
  $region1: #{tpu_custom_call.1} parent=0
    #allocation2 [shape = 'u8[65536]{0}', space=vmem, size = 0x10000, scoped, tag = 'input window, operand 0, single buffered']
    #allocation3 [shape = 's32[1]{0}', space=sflag, size = 0x4, scoped, tag = 'scoped memory for tpu_custom_call.1']
    #allocation4 [shape = 's32[1]{0}', space=sflag, size = 0x4, scoped, tag = 'scoped memory for tpu_custom_call.1']
    #allocation5 [shape = 'u8[1048576]{0}', space=vmem, size = 0x100000, scoped, tag = 'input window, operand 1, single buffered']
    #allocation6 [shape = 's32[1]{0}', space=sflag, size = 0x4, scoped, tag = 'scoped memory for tpu_custom_call.1']
    #allocation7 [shape = 'u8[131072]{0}', space=vmem, size = 0x20000, scoped, tag = 'input window, operand 3, single buffered']
    #allocation8 [shape = 'u8[1024]{0}', space=vmem, size = 0x400, scoped, tag = 'output window, operand 0, single buffered']
    #allocation9 [shape = 'u8[4096]{0}', space=vmem, size = 0x1000, scoped, tag = 'output window, operand 1, single buffered']
    #allocation10 [shape = 's32[1]{0}', space=sflag, size = 0x4, scoped, tag = 'scoped memory for tpu_custom_call.1']
    %12 = vsyncpa [#allocation3], 0
    %13 = vsyncpa [#allocation6], 0
    %14 = vsyncpa [#allocation4], 0
    %15 = vsyncpa [#allocation10], 0
    // Predicated region
    $region2: #{tpu_custom_call.1} parent=1 // pred_check
      _
    $region3: #{tpu_custom_call.1} parent=1 // pred_check_branch
      %17 = sbr.rel (0) target = $region5
    $region4: #{tpu_custom_call.1} parent=1 // pred_region
      %s19 = ssub.s32 2048, 2048
      %20 = vsyncadd [#allocation3], %s19
      %s21 = sshll.u32 [#allocation2], 4
      %s22 = int_to_ptr.vmem [resolvable:$true] %s21
      %27 = dma.hbm_to_vmem [thread:$0]  %s0, 2048, %s22, [#allocation3], 512, 512, 32
    $region5: #{tpu_custom_call.1} parent=1 // pred_fallthru
      _
    // Predicated region
    $region6: #{tpu_custom_call.1} parent=1 // pred_check
      _
    $region7: #{tpu_custom_call.1} parent=1 // pred_check_branch
      %29 = sbr.rel (0) target = $region9
    $region8: #{tpu_custom_call.1} parent=1 // pred_region
      %s31 = ssub.s32 32768, 32768
      %32 = vsyncadd [#allocation6], %s31
      %s33 = sshll.u32 [#allocation5], 4
      %s34 = int_to_ptr.vmem [resolvable:$true] %s33
      %39 = dma.hbm_to_vmem [thread:$0]  %s1, 32768, %s34, [#allocation6], 256, 256, 16
    $region9: #{tpu_custom_call.1} parent=1 // pred_fallthru
      _
    // Predicated region
    $region10: #{tpu_custom_call.1} parent=1 // pred_check
      _
    $region11: #{tpu_custom_call.1} parent=1 // pred_check_branch
      %41 = sbr.rel (0) target = $region13
    $region12: #{tpu_custom_call.1} parent=1 // pred_region
      _
    $region13: #{tpu_custom_call.1} parent=1 // pred_fallthru
      _
    // Predicated region
    $region14: #{tpu_custom_call.1} parent=1 // pred_check
      _
    $region15: #{tpu_custom_call.1} parent=1 // pred_check_branch
      %43 = sbr.rel (0) target = $region17
    $region16: #{tpu_custom_call.1} parent=1 // pred_region
      %s45 = ssub.s32 4096, 4096
      %46 = vsyncadd [#allocation6], %s45
      %s47 = sshll.u32 [#allocation7], 4
      %s48 = int_to_ptr.vmem [resolvable:$true] %s47
      %53 = dma.hbm_to_vmem [thread:$0]  %s3, 4096, %s48, [#allocation6], 64, 64, 4
    $region17: #{tpu_custom_call.1} parent=1 // pred_fallthru
      _
    // Predicated region
    $region18: #{tpu_custom_call.1} parent=1 // pred_check
      _
    $region19: #{tpu_custom_call.1} parent=1 // pred_check_branch
      %55 = sbr.rel (0) target = $region21
    $region20: #{tpu_custom_call.1} parent=1 // pred_region
      _
    $region21: #{tpu_custom_call.1} parent=1 // pred_fallthru
      _
    // Predicated region
    $region22: #{tpu_custom_call.1} parent=1 // pred_check
      _
    $region23: #{tpu_custom_call.1} parent=1 // pred_check_branch
      %57 = sbr.rel (0) target = $region25
    $region24: #{tpu_custom_call.1} parent=1 // pred_region
      %58 = dma.done [#allocation3], 2048
    $region25: #{tpu_custom_call.1} parent=1 // pred_fallthru
      _
    // Predicated region
    $region26: #{tpu_custom_call.1} parent=1 // pred_check
      _
    $region27: #{tpu_custom_call.1} parent=1 // pred_check_branch
      %60 = sbr.rel (0) target = $region29
    $region28: #{tpu_custom_call.1} parent=1 // pred_region
      %61 = dma.done [#allocation6], 32768
    $region29: #{tpu_custom_call.1} parent=1 // pred_fallthru
      _
    // Predicated region
    $region30: #{tpu_custom_call.1} parent=1 // pred_check
      _
    $region31: #{tpu_custom_call.1} parent=1 // pred_check_branch
      %63 = sbr.rel (0) target = $region33
    $region32: #{tpu_custom_call.1} parent=1 // pred_region
      %64 = dma.done [#allocation6], 4096
    $region33: #{tpu_custom_call.1} parent=1 // pred_fallthru
      _
    %v66 = vld [vmem:[#allocation2] sm:$0xff]
    %v67 = vld [vmem:[#allocation2 + $0x8] sm:$0xff]
    %v68 = vld [vmem:[#allocation2 + $0x10] sm:$0xff]
    %v69 = vld [vmem:[#allocation2 + $0x18] sm:$0xff]
    %v70 = vld [vmem:[#allocation2 + $0x20] sm:$0xff]
    %v71 = vld [vmem:[#allocation2 + $0x28] sm:$0xff]
    %v72 = vld [vmem:[#allocation2 + $0x30] sm:$0xff]
    %v73 = vld [vmem:[#allocation2 + $0x38] sm:$0xff]
    %v74 = vld [vmem:[#allocation2 + $0x40] sm:$0xff]
    %v75 = vld [vmem:[#allocation2 + $0x48] sm:$0xff]
    %v76 = vld [vmem:[#allocation2 + $0x50] sm:$0xff]
    %v77 = vld [vmem:[#allocation2 + $0x58] sm:$0xff]
    %v78 = vld [vmem:[#allocation2 + $0x60] sm:$0xff]
    %v79 = vld [vmem:[#allocation2 + $0x68] sm:$0xff]
    %v80 = vld [vmem:[#allocation2 + $0x70] sm:$0xff]
    %v81 = vld [vmem:[#allocation2 + $0x78] sm:$0xff]
    %v82 = vunpack.c.l.bf16 %v66
    %v83 = vunpack.c.h.bf16 %v66
    %v84 = vunpack.c.l.bf16 %v67
    %v85 = vunpack.c.h.bf16 %v67
    %v86 = vunpack.c.l.bf16 %v68
    %v87 = vunpack.c.h.bf16 %v68
    %v88 = vunpack.c.l.bf16 %v69
    %v89 = vunpack.c.h.bf16 %v69
    %v90 = vunpack.c.l.bf16 %v70
    %v91 = vunpack.c.h.bf16 %v70
    %v92 = vunpack.c.l.bf16 %v71
    %v93 = vunpack.c.h.bf16 %v71
    %v94 = vunpack.c.l.bf16 %v72
    %v95 = vunpack.c.h.bf16 %v72
    %v96 = vunpack.c.l.bf16 %v73
    %v97 = vunpack.c.h.bf16 %v73
    %v98 = vunpack.c.l.bf16 %v74
    %v99 = vunpack.c.h.bf16 %v74
    %v100 = vunpack.c.l.bf16 %v75
    %v101 = vunpack.c.h.bf16 %v75
    %v102 = vunpack.c.l.bf16 %v76
    %v103 = vunpack.c.h.bf16 %v76
    %v104 = vunpack.c.l.bf16 %v77
    %v105 = vunpack.c.h.bf16 %v77
    %v106 = vunpack.c.l.bf16 %v78
    %v107 = vunpack.c.h.bf16 %v78
    %v108 = vunpack.c.l.bf16 %v79
    %v109 = vunpack.c.h.bf16 %v79
    %v110 = vunpack.c.l.bf16 %v80
    %v111 = vunpack.c.h.bf16 %v80
    %v112 = vunpack.c.l.bf16 %v81
    %v113 = vunpack.c.h.bf16 %v81
    %v114 = vadd.f32 %v82, %v90
    %v115 = vrot.slane %v114, 4
    %v116 = vadd.f32 %v114, %v115
    %v117 = vrot.slane %v116, 2
    %v118 = vadd.f32 %v116, %v117
    %v119 = vrot.slane %v118, 1
    %v120 = vadd.f32 %v118, %v119
    %v121 = vadd.f32 %v83, %v91
    %v122 = vrot.slane %v121, 4
    %v123 = vadd.f32 %v121, %v122
    %v124 = vrot.slane %v123, 2
    %v125 = vadd.f32 %v123, %v124
    %v126 = vrot.slane %v125, 1
    %v127 = vadd.f32 %v125, %v126
    %v128 = vadd.f32 %v84, %v92
    %v129 = vrot.slane %v128, 4
    %v130 = vadd.f32 %v128, %v129
    %v131 = vrot.slane %v130, 2
    %v132 = vadd.f32 %v130, %v131
    %v133 = vrot.slane %v132, 1
    %v134 = vadd.f32 %v132, %v133
    %v135 = vadd.f32 %v85, %v93
    %v136 = vrot.slane %v135, 4
    %v137 = vadd.f32 %v135, %v136
    %v138 = vrot.slane %v137, 2
    %v139 = vadd.f32 %v137, %v138
    %v140 = vrot.slane %v139, 1
    %v141 = vadd.f32 %v139, %v140
    %v142 = vadd.f32 %v86, %v94
    %v143 = vrot.slane %v142, 4
    %v144 = vadd.f32 %v142, %v143
    %v145 = vrot.slane %v144, 2
    %v146 = vadd.f32 %v144, %v145
    %v147 = vrot.slane %v146, 1
    %v148 = vadd.f32 %v146, %v147
    %v149 = vadd.f32 %v87, %v95
    %v150 = vrot.slane %v149, 4
    %v151 = vadd.f32 %v149, %v150
    %v152 = vrot.slane %v151, 2
    %v153 = vadd.f32 %v151, %v152
    %v154 = vrot.slane %v153, 1
    %v155 = vadd.f32 %v153, %v154
    %v156 = vadd.f32 %v88, %v96
    %v157 = vrot.slane %v156, 4
    %v158 = vadd.f32 %v156, %v157
    %v159 = vrot.slane %v158, 2
    %v160 = vadd.f32 %v158, %v159
    %v161 = vrot.slane %v160, 1
    %v162 = vadd.f32 %v160, %v161
    %v163 = vadd.f32 %v89, %v97
    %v164 = vrot.slane %v163, 4
    %v165 = vadd.f32 %v163, %v164
    %v166 = vrot.slane %v165, 2
    %v167 = vadd.f32 %v165, %v166
    %v168 = vrot.slane %v167, 1
    %v169 = vadd.f32 %v167, %v168
    %v170 = vadd.f32 %v98, %v106
    %v171 = vrot.slane %v170, 4
    %v172 = vadd.f32 %v170, %v171
    %v173 = vrot.slane %v172, 2
    %v174 = vadd.f32 %v172, %v173
    %v175 = vrot.slane %v174, 1
    %v176 = vadd.f32 %v174, %v175
    %v177 = vadd.f32 %v99, %v107
    %v178 = vrot.slane %v177, 4
    %v179 = vadd.f32 %v177, %v178
    %v180 = vrot.slane %v179, 2
    %v181 = vadd.f32 %v179, %v180
    %v182 = vrot.slane %v181, 1
    %v183 = vadd.f32 %v181, %v182
    %v184 = vadd.f32 %v100, %v108
    %v185 = vrot.slane %v184, 4
    %v186 = vadd.f32 %v184, %v185
    %v187 = vrot.slane %v186, 2
    %v188 = vadd.f32 %v186, %v187
    %v189 = vrot.slane %v188, 1
    %v190 = vadd.f32 %v188, %v189
    %v191 = vadd.f32 %v101, %v109
    %v192 = vrot.slane %v191, 4
    %v193 = vadd.f32 %v191, %v192
    %v194 = vrot.slane %v193, 2
    %v195 = vadd.f32 %v193, %v194
    %v196 = vrot.slane %v195, 1
    %v197 = vadd.f32 %v195, %v196
    %v198 = vadd.f32 %v102, %v110
    %v199 = vrot.slane %v198, 4
    %v200 = vadd.f32 %v198, %v199
    %v201 = vrot.slane %v200, 2
    %v202 = vadd.f32 %v200, %v201
    %v203 = vrot.slane %v202, 1
    %v204 = vadd.f32 %v202, %v203
    %v205 = vadd.f32 %v103, %v111
    %v206 = vrot.slane %v205, 4
    %v207 = vadd.f32 %v205, %v206
    %v208 = vrot.slane %v207, 2
    %v209 = vadd.f32 %v207, %v208
    %v210 = vrot.slane %v209, 1
    %v211 = vadd.f32 %v209, %v210
    %v212 = vadd.f32 %v104, %v112
    %v213 = vrot.slane %v212, 4
    %v214 = vadd.f32 %v212, %v213
    %v215 = vrot.slane %v214, 2
    %v216 = vadd.f32 %v214, %v215
    %v217 = vrot.slane %v216, 1
    %v218 = vadd.f32 %v216, %v217
    %v219 = vadd.f32 %v105, %v113
    %v220 = vrot.slane %v219, 4
    %v221 = vadd.f32 %v219, %v220
    %v222 = vrot.slane %v221, 2
    %v223 = vadd.f32 %v221, %v222
    %v224 = vrot.slane %v223, 1
    %v225 = vadd.f32 %v223, %v224
    %v226 = vpack.c.bf16 %v120, %v120
    %v227 = vpack.c.bf16 %v127, %v127
    %v228 = vpack.c.bf16 %v134, %v134
    %v229 = vpack.c.bf16 %v141, %v141
    %v230 = vpack.c.bf16 %v148, %v148
    %v231 = vpack.c.bf16 %v155, %v155
    %v232 = vpack.c.bf16 %v162, %v162
    %v233 = vpack.c.bf16 %v169, %v169
    %v234 = vpack.c.bf16 %v176, %v176
    %v235 = vpack.c.bf16 %v183, %v183
    %v236 = vpack.c.bf16 %v190, %v190
    %v237 = vpack.c.bf16 %v197, %v197
    %v238 = vpack.c.bf16 %v204, %v204
    %v239 = vpack.c.bf16 %v211, %v211
    %v240 = vpack.c.bf16 %v218, %v218
    %v241 = vpack.c.bf16 %v225, %v225
    %v242 = vld [vmem:[#allocation5] sm:$0xff]
    %v243 = vld [vmem:[#allocation5 + $0x8] sm:$0xff]
    %v244 = vld [vmem:[#allocation5 + $0x10] sm:$0xff]
    %v245 = vld [vmem:[#allocation5 + $0x18] sm:$0xff]
    %v246 = vld [vmem:[#allocation5 + $0x20] sm:$0xff]
    %v247 = vld [vmem:[#allocation5 + $0x28] sm:$0xff]
    %v248 = vld [vmem:[#allocation5 + $0x30] sm:$0xff]
    %v249 = vld [vmem:[#allocation5 + $0x38] sm:$0xff]
    %v250 = vld [vmem:[#allocation5 + $0x40] sm:$0xff]
    %v251 = vld [vmem:[#allocation5 + $0x48] sm:$0xff]
    %v252 = vld [vmem:[#allocation5 + $0x50] sm:$0xff]
    %v253 = vld [vmem:[#allocation5 + $0x58] sm:$0xff]
    %v254 = vld [vmem:[#allocation5 + $0x60] sm:$0xff]
    %v255 = vld [vmem:[#allocation5 + $0x68] sm:$0xff]
    %v256 = vld [vmem:[#allocation5 + $0x70] sm:$0xff]
    %v257 = vld [vmem:[#allocation5 + $0x78] sm:$0xff]
    %v258 = vld [vmem:[#allocation5 + $0x80] sm:$0xff]
    %v259 = vld [vmem:[#allocation5 + $0x88] sm:$0xff]
    %v260 = vld [vmem:[#allocation5 + $0x90] sm:$0xff]
    %v261 = vld [vmem:[#allocation5 + $0x98] sm:$0xff]
    %v262 = vld [vmem:[#allocation5 + $0xa0] sm:$0xff]
    %v263 = vld [vmem:[#allocation5 + $0xa8] sm:$0xff]
    %v264 = vld [vmem:[#allocation5 + $0xb0] sm:$0xff]
    %v265 = vld [vmem:[#allocation5 + $0xb8] sm:$0xff]
    %v266 = vld [vmem:[#allocation5 + $0xc0] sm:$0xff]
    %v267 = vld [vmem:[#allocation5 + $0xc8] sm:$0xff]
    %v268 = vld [vmem:[#allocation5 + $0xd0] sm:$0xff]
    %v269 = vld [vmem:[#allocation5 + $0xd8] sm:$0xff]
    %v270 = vld [vmem:[#allocation5 + $0xe0] sm:$0xff]
    %v271 = vld [vmem:[#allocation5 + $0xe8] sm:$0xff]
    %v272 = vld [vmem:[#allocation5 + $0xf0] sm:$0xff]
    %v273 = vld [vmem:[#allocation5 + $0xf8] sm:$0xff]
    %v274 = vld [vmem:[#allocation5 + $0x100] sm:$0xff]
    %v275 = vld [vmem:[#allocation5 + $0x108] sm:$0xff]
    %v276 = vld [vmem:[#allocation5 + $0x110] sm:$0xff]
    %v277 = vld [vmem:[#allocation5 + $0x118] sm:$0xff]
    %v278 = vld [vmem:[#allocation5 + $0x120] sm:$0xff]
    %v279 = vld [vmem:[#allocation5 + $0x128] sm:$0xff]
    %v280 = vld [vmem:[#allocation5 + $0x130] sm:$0xff]
    %v281 = vld [vmem:[#allocation5 + $0x138] sm:$0xff]
    %v282 = vld [vmem:[#allocation5 + $0x140] sm:$0xff]
    %v283 = vld [vmem:[#allocation5 + $0x148] sm:$0xff]
    %v284 = vld [vmem:[#allocation5 + $0x150] sm:$0xff]
    %v285 = vld [vmem:[#allocation5 + $0x158] sm:$0xff]
    %v286 = vld [vmem:[#allocation5 + $0x160] sm:$0xff]
    %v287 = vld [vmem:[#allocation5 + $0x168] sm:$0xff]
    %v288 = vld [vmem:[#allocation5 + $0x170] sm:$0xff]
    %v289 = vld [vmem:[#allocation5 + $0x178] sm:$0xff]
    %v290 = vld [vmem:[#allocation5 + $0x180] sm:$0xff]
    %v291 = vld [vmem:[#allocation5 + $0x188] sm:$0xff]
    %v292 = vld [vmem:[#allocation5 + $0x190] sm:$0xff]
    %v293 = vld [vmem:[#allocation5 + $0x198] sm:$0xff]
    %v294 = vld [vmem:[#allocation5 + $0x1a0] sm:$0xff]
    %v295 = vld [vmem:[#allocation5 + $0x1a8] sm:$0xff]
    %v296 = vld [vmem:[#allocation5 + $0x1b0] sm:$0xff]
    %v297 = vld [vmem:[#allocation5 + $0x1b8] sm:$0xff]
    %v298 = vld [vmem:[#allocation5 + $0x1c0] sm:$0xff]
    %v299 = vld [vmem:[#allocation5 + $0x1c8] sm:$0xff]
    %v300 = vld [vmem:[#allocation5 + $0x1d0] sm:$0xff]
    %v301 = vld [vmem:[#allocation5 + $0x1d8] sm:$0xff]
    %v302 = vld [vmem:[#allocation5 + $0x1e0] sm:$0xff]
    %v303 = vld [vmem:[#allocation5 + $0x1e8] sm:$0xff]
    %v304 = vld [vmem:[#allocation5 + $0x1f0] sm:$0xff]
    %v305 = vld [vmem:[#allocation5 + $0x1f8] sm:$0xff]
    %v306 = vld [vmem:[#allocation5 + $0x200] sm:$0xff]
    %v307 = vld [vmem:[#allocation5 + $0x208] sm:$0xff]
    %v308 = vld [vmem:[#allocation5 + $0x210] sm:$0xff]
    %v309 = vld [vmem:[#allocation5 + $0x218] sm:$0xff]
    %v310 = vld [vmem:[#allocation5 + $0x220] sm:$0xff]
    %v311 = vld [vmem:[#allocation5 + $0x228] sm:$0xff]
    %v312 = vld [vmem:[#allocation5 + $0x230] sm:$0xff]
    %v313 = vld [vmem:[#allocation5 + $0x238] sm:$0xff]
    %v314 = vld [vmem:[#allocation5 + $0x240] sm:$0xff]
    %v315 = vld [vmem:[#allocation5 + $0x248] sm:$0xff]
    %v316 = vld [vmem:[#allocation5 + $0x250] sm:$0xff]
    %v317 = vld [vmem:[#allocation5 + $0x258] sm:$0xff]
    %v318 = vld [vmem:[#allocation5 + $0x260] sm:$0xff]
    %v319 = vld [vmem:[#allocation5 + $0x268] sm:$0xff]
    %v320 = vld [vmem:[#allocation5 + $0x270] sm:$0xff]
    %v321 = vld [vmem:[#allocation5 + $0x278] sm:$0xff]
    %v322 = vld [vmem:[#allocation5 + $0x280] sm:$0xff]
    %v323 = vld [vmem:[#allocation5 + $0x288] sm:$0xff]
    %v324 = vld [vmem:[#allocation5 + $0x290] sm:$0xff]
    %v325 = vld [vmem:[#allocation5 + $0x298] sm:$0xff]
    %v326 = vld [vmem:[#allocation5 + $0x2a0] sm:$0xff]
    %v327 = vld [vmem:[#allocation5 + $0x2a8] sm:$0xff]
    %v328 = vld [vmem:[#allocation5 + $0x2b0] sm:$0xff]
    %v329 = vld [vmem:[#allocation5 + $0x2b8] sm:$0xff]
    %v330 = vld [vmem:[#allocation5 + $0x2c0] sm:$0xff]
    %v331 = vld [vmem:[#allocation5 + $0x2c8] sm:$0xff]
    %v332 = vld [vmem:[#allocation5 + $0x2d0] sm:$0xff]
    %v333 = vld [vmem:[#allocation5 + $0x2d8] sm:$0xff]
    %v334 = vld [vmem:[#allocation5 + $0x2e0] sm:$0xff]
    %v335 = vld [vmem:[#allocation5 + $0x2e8] sm:$0xff]
    %v336 = vld [vmem:[#allocation5 + $0x2f0] sm:$0xff]
    %v337 = vld [vmem:[#allocation5 + $0x2f8] sm:$0xff]
    %v338 = vld [vmem:[#allocation5 + $0x300] sm:$0xff]
    %v339 = vld [vmem:[#allocation5 + $0x308] sm:$0xff]
    %v340 = vld [vmem:[#allocation5 + $0x310] sm:$0xff]
    %v341 = vld [vmem:[#allocation5 + $0x318] sm:$0xff]
    %v342 = vld [vmem:[#allocation5 + $0x320] sm:$0xff]
    %v343 = vld [vmem:[#allocation5 + $0x328] sm:$0xff]
    %v344 = vld [vmem:[#allocation5 + $0x330] sm:$0xff]
    %v345 = vld [vmem:[#allocation5 + $0x338] sm:$0xff]
    %v346 = vld [vmem:[#allocation5 + $0x340] sm:$0xff]
    %v347 = vld [vmem:[#allocation5 + $0x348] sm:$0xff]
    %v348 = vld [vmem:[#allocation5 + $0x350] sm:$0xff]
    %v349 = vld [vmem:[#allocation5 + $0x358] sm:$0xff]
    %v350 = vld [vmem:[#allocation5 + $0x360] sm:$0xff]
    %v351 = vld [vmem:[#allocation5 + $0x368] sm:$0xff]
    %v352 = vld [vmem:[#allocation5 + $0x370] sm:$0xff]
    %v353 = vld [vmem:[#allocation5 + $0x378] sm:$0xff]
    %v354 = vld [vmem:[#allocation5 + $0x380] sm:$0xff]
    %v355 = vld [vmem:[#allocation5 + $0x388] sm:$0xff]
    %v356 = vld [vmem:[#allocation5 + $0x390] sm:$0xff]
    %v357 = vld [vmem:[#allocation5 + $0x398] sm:$0xff]
    %v358 = vld [vmem:[#allocation5 + $0x3a0] sm:$0xff]
    %v359 = vld [vmem:[#allocation5 + $0x3a8] sm:$0xff]
    %v360 = vld [vmem:[#allocation5 + $0x3b0] sm:$0xff]
    %v361 = vld [vmem:[#allocation5 + $0x3b8] sm:$0xff]
    %v362 = vld [vmem:[#allocation5 + $0x3c0] sm:$0xff]
    %v363 = vld [vmem:[#allocation5 + $0x3c8] sm:$0xff]
    %v364 = vld [vmem:[#allocation5 + $0x3d0] sm:$0xff]
    %v365 = vld [vmem:[#allocation5 + $0x3d8] sm:$0xff]
    %v366 = vld [vmem:[#allocation5 + $0x3e0] sm:$0xff]
    %v367 = vld [vmem:[#allocation5 + $0x3e8] sm:$0xff]
    %v368 = vld [vmem:[#allocation5 + $0x3f0] sm:$0xff]
    %v369 = vld [vmem:[#allocation5 + $0x3f8] sm:$0xff]
    %v370 = vld [vmem:[#allocation5 + $0x400] sm:$0xff]
    %v371 = vld [vmem:[#allocation5 + $0x408] sm:$0xff]
    %v372 = vld [vmem:[#allocation5 + $0x410] sm:$0xff]
    %v373 = vld [vmem:[#allocation5 + $0x418] sm:$0xff]
    %v374 = vld [vmem:[#allocation5 + $0x420] sm:$0xff]
    %v375 = vld [vmem:[#allocation5 + $0x428] sm:$0xff]
    %v376 = vld [vmem:[#allocation5 + $0x430] sm:$0xff]
    %v377 = vld [vmem:[#allocation5 + $0x438] sm:$0xff]
    %v378 = vld [vmem:[#allocation5 + $0x440] sm:$0xff]
    %v379 = vld [vmem:[#allocation5 + $0x448] sm:$0xff]
    %v380 = vld [vmem:[#allocation5 + $0x450] sm:$0xff]
    %v381 = vld [vmem:[#allocation5 + $0x458] sm:$0xff]
    %v382 = vld [vmem:[#allocation5 + $0x460] sm:$0xff]
    %v383 = vld [vmem:[#allocation5 + $0x468] sm:$0xff]
    %v384 = vld [vmem:[#allocation5 + $0x470] sm:$0xff]
    %v385 = vld [vmem:[#allocation5 + $0x478] sm:$0xff]
    %v386 = vld [vmem:[#allocation5 + $0x480] sm:$0xff]
    %v387 = vld [vmem:[#allocation5 + $0x488] sm:$0xff]
    %v388 = vld [vmem:[#allocation5 + $0x490] sm:$0xff]
    %v389 = vld [vmem:[#allocation5 + $0x498] sm:$0xff]
    %v390 = vld [vmem:[#allocation5 + $0x4a0] sm:$0xff]
    %v391 = vld [vmem:[#allocation5 + $0x4a8] sm:$0xff]
    %v392 = vld [vmem:[#allocation5 + $0x4b0] sm:$0xff]
    %v393 = vld [vmem:[#allocation5 + $0x4b8] sm:$0xff]
    %v394 = vld [vmem:[#allocation5 + $0x4c0] sm:$0xff]
    %v395 = vld [vmem:[#allocation5 + $0x4c8] sm:$0xff]
    %v396 = vld [vmem:[#allocation5 + $0x4d0] sm:$0xff]
    %v397 = vld [vmem:[#allocation5 + $0x4d8] sm:$0xff]
    %v398 = vld [vmem:[#allocation5 + $0x4e0] sm:$0xff]
    %v399 = vld [vmem:[#allocation5 + $0x4e8] sm:$0xff]
    %v400 = vld [vmem:[#allocation5 + $0x4f0] sm:$0xff]
    %v401 = vld [vmem:[#allocation5 + $0x4f8] sm:$0xff]
    %v402 = vld [vmem:[#allocation5 + $0x500] sm:$0xff]
    %v403 = vld [vmem:[#allocation5 + $0x508] sm:$0xff]
    %v404 = vld [vmem:[#allocation5 + $0x510] sm:$0xff]
    %v405 = vld [vmem:[#allocation5 + $0x518] sm:$0xff]
    %v406 = vld [vmem:[#allocation5 + $0x520] sm:$0xff]
    %v407 = vld [vmem:[#allocation5 + $0x528] sm:$0xff]
    %v408 = vld [vmem:[#allocation5 + $0x530] sm:$0xff]
    %v409 = vld [vmem:[#allocation5 + $0x538] sm:$0xff]
    %v410 = vld [vmem:[#allocation5 + $0x540] sm:$0xff]
    %v411 = vld [vmem:[#allocation5 + $0x548] sm:$0xff]
    %v412 = vld [vmem:[#allocation5 + $0x550] sm:$0xff]
    %v413 = vld [vmem:[#allocation5 + $0x558] sm:$0xff]
    %v414 = vld [vmem:[#allocation5 + $0x560] sm:$0xff]
    %v415 = vld [vmem:[#allocation5 + $0x568] sm:$0xff]
    %v416 = vld [vmem:[#allocation5 + $0x570] sm:$0xff]
    %v417 = vld [vmem:[#allocation5 + $0x578] sm:$0xff]
    %v418 = vld [vmem:[#allocation5 + $0x580] sm:$0xff]
    %v419 = vld [vmem:[#allocation5 + $0x588] sm:$0xff]
    %v420 = vld [vmem:[#allocation5 + $0x590] sm:$0xff]
    %v421 = vld [vmem:[#allocation5 + $0x598] sm:$0xff]
    %v422 = vld [vmem:[#allocation5 + $0x5a0] sm:$0xff]
    %v423 = vld [vmem:[#allocation5 + $0x5a8] sm:$0xff]
    %v424 = vld [vmem:[#allocation5 + $0x5b0] sm:$0xff]
    %v425 = vld [vmem:[#allocation5 + $0x5b8] sm:$0xff]
    %v426 = vld [vmem:[#allocation5 + $0x5c0] sm:$0xff]
    %v427 = vld [vmem:[#allocation5 + $0x5c8] sm:$0xff]
    %v428 = vld [vmem:[#allocation5 + $0x5d0] sm:$0xff]
    %v429 = vld [vmem:[#allocation5 + $0x5d8] sm:$0xff]
    %v430 = vld [vmem:[#allocation5 + $0x5e0] sm:$0xff]
    %v431 = vld [vmem:[#allocation5 + $0x5e8] sm:$0xff]
    %v432 = vld [vmem:[#allocation5 + $0x5f0] sm:$0xff]
    %v433 = vld [vmem:[#allocation5 + $0x5f8] sm:$0xff]
    %v434 = vld [vmem:[#allocation5 + $0x600] sm:$0xff]
    %v435 = vld [vmem:[#allocation5 + $0x608] sm:$0xff]
    %v436 = vld [vmem:[#allocation5 + $0x610] sm:$0xff]
    %v437 = vld [vmem:[#allocation5 + $0x618] sm:$0xff]
    %v438 = vld [vmem:[#allocation5 + $0x620] sm:$0xff]
    %v439 = vld [vmem:[#allocation5 + $0x628] sm:$0xff]
    %v440 = vld [vmem:[#allocation5 + $0x630] sm:$0xff]
    %v441 = vld [vmem:[#allocation5 + $0x638] sm:$0xff]
    %v442 = vld [vmem:[#allocation5 + $0x640] sm:$0xff]
    %v443 = vld [vmem:[#allocation5 + $0x648] sm:$0xff]
    %v444 = vld [vmem:[#allocation5 + $0x650] sm:$0xff]
    %v445 = vld [vmem:[#allocation5 + $0x658] sm:$0xff]
    %v446 = vld [vmem:[#allocation5 + $0x660] sm:$0xff]
    %v447 = vld [vmem:[#allocation5 + $0x668] sm:$0xff]
    %v448 = vld [vmem:[#allocation5 + $0x670] sm:$0xff]
    %v449 = vld [vmem:[#allocation5 + $0x678] sm:$0xff]
    %v450 = vld [vmem:[#allocation5 + $0x680] sm:$0xff]
    %v451 = vld [vmem:[#allocation5 + $0x688] sm:$0xff]
    %v452 = vld [vmem:[#allocation5 + $0x690] sm:$0xff]
    %v453 = vld [vmem:[#allocation5 + $0x698] sm:$0xff]
    %v454 = vld [vmem:[#allocation5 + $0x6a0] sm:$0xff]
    %v455 = vld [vmem:[#allocation5 + $0x6a8] sm:$0xff]
    %v456 = vld [vmem:[#allocation5 + $0x6b0] sm:$0xff]
    %v457 = vld [vmem:[#allocation5 + $0x6b8] sm:$0xff]
    %v458 = vld [vmem:[#allocation5 + $0x6c0] sm:$0xff]
    %v459 = vld [vmem:[#allocation5 + $0x6c8] sm:$0xff]
    %v460 = vld [vmem:[#allocation5 + $0x6d0] sm:$0xff]
    %v461 = vld [vmem:[#allocation5 + $0x6d8] sm:$0xff]
    %v462 = vld [vmem:[#allocation5 + $0x6e0] sm:$0xff]
    %v463 = vld [vmem:[#allocation5 + $0x6e8] sm:$0xff]
    %v464 = vld [vmem:[#allocation5 + $0x6f0] sm:$0xff]
    %v465 = vld [vmem:[#allocation5 + $0x6f8] sm:$0xff]
    %v466 = vld [vmem:[#allocation5 + $0x700] sm:$0xff]
    %v467 = vld [vmem:[#allocation5 + $0x708] sm:$0xff]
    %v468 = vld [vmem:[#allocation5 + $0x710] sm:$0xff]
    %v469 = vld [vmem:[#allocation5 + $0x718] sm:$0xff]
    %v470 = vld [vmem:[#allocation5 + $0x720] sm:$0xff]
    %v471 = vld [vmem:[#allocation5 + $0x728] sm:$0xff]
    %v472 = vld [vmem:[#allocation5 + $0x730] sm:$0xff]
    %v473 = vld [vmem:[#allocation5 + $0x738] sm:$0xff]
    %v474 = vld [vmem:[#allocation5 + $0x740] sm:$0xff]
    %v475 = vld [vmem:[#allocation5 + $0x748] sm:$0xff]
    %v476 = vld [vmem:[#allocation5 + $0x750] sm:$0xff]
    %v477 = vld [vmem:[#allocation5 + $0x758] sm:$0xff]
    %v478 = vld [vmem:[#allocation5 + $0x760] sm:$0xff]
    %v479 = vld [vmem:[#allocation5 + $0x768] sm:$0xff]
    %v480 = vld [vmem:[#allocation5 + $0x770] sm:$0xff]
    %v481 = vld [vmem:[#allocation5 + $0x778] sm:$0xff]
    %v482 = vld [vmem:[#allocation5 + $0x780] sm:$0xff]
    %v483 = vld [vmem:[#allocation5 + $0x788] sm:$0xff]
    %v484 = vld [vmem:[#allocation5 + $0x790] sm:$0xff]
    %v485 = vld [vmem:[#allocation5 + $0x798] sm:$0xff]
    %v486 = vld [vmem:[#allocation5 + $0x7a0] sm:$0xff]
    %v487 = vld [vmem:[#allocation5 + $0x7a8] sm:$0xff]
    %v488 = vld [vmem:[#allocation5 + $0x7b0] sm:$0xff]
    %v489 = vld [vmem:[#allocation5 + $0x7b8] sm:$0xff]
    %v490 = vld [vmem:[#allocation5 + $0x7c0] sm:$0xff]
    %v491 = vld [vmem:[#allocation5 + $0x7c8] sm:$0xff]
    %v492 = vld [vmem:[#allocation5 + $0x7d0] sm:$0xff]
    %v493 = vld [vmem:[#allocation5 + $0x7d8] sm:$0xff]
    %v494 = vld [vmem:[#allocation5 + $0x7e0] sm:$0xff]
    %v495 = vld [vmem:[#allocation5 + $0x7e8] sm:$0xff]
    %v496 = vld [vmem:[#allocation5 + $0x7f0] sm:$0xff]
    %v497 = vld [vmem:[#allocation5 + $0x7f8] sm:$0xff]
    %v498 = vld [vmem:[%s2] sm:$0xf]
    %v500 = vlaneseq
    %v501 = vshrl.u32 %v500, 7
    %v502 = vsub.s32 0, %v501
    %v503 = vrot.slane %v498, %v502
    %v504 = vlaneseq
    %v505 = vshrl.u32 %v504, 7
    %v506 = vsub.s32 1, %v505
    %v507 = vrot.slane %v498, %v506
    %v508 = vlaneseq
    %v509 = vshrl.u32 %v508, 7
    %v510 = vsub.s32 2, %v509
    %v511 = vrot.slane %v498, %v510
    %v512 = vlaneseq
    %v513 = vshrl.u32 %v512, 7
    %v514 = vsub.s32 3, %v513
    %v515 = vrot.slane %v498, %v514
    %v536 = vunpack.c.l.b16 %v226
    %v537 = vunpack.c.l.b16 %v227
    %v538 = vunpack.c.l.b16 %v228
    %v539 = vunpack.c.l.b16 %v229
    %v540 = vunpack.c.l.b16 %v230
    %v541 = vunpack.c.l.b16 %v231
    %v542 = vunpack.c.l.b16 %v232
    %v543 = vunpack.c.l.b16 %v233
    %v544 = vunpack.c.l.b16 %v234
    %v545 = vunpack.c.l.b16 %v235
    %v546 = vunpack.c.l.b16 %v236
    %v547 = vunpack.c.l.b16 %v237
    %v548 = vunpack.c.l.b16 %v238
    %v549 = vunpack.c.l.b16 %v239
    %v550 = vunpack.c.l.b16 %v240
    %v551 = vunpack.c.l.b16 %v241
    %vm552 = vcmask 1041409
    %v553 = vsel %vm552, %v544, %v536
    %v554 = vsel %vm552, %v545, %v537
    %v555 = vsel %vm552, %v546, %v538
    %v556 = vsel %vm552, %v547, %v539
    %v557 = vsel %vm552, %v548, %v540
    %v558 = vsel %vm552, %v549, %v541
    %v559 = vsel %vm552, %v550, %v542
    %v560 = vsel %vm552, %v551, %v543
    %v561 = vpack.c.b16 %v553, %v553
    %v562 = vpack.c.b16 %v554, %v554
    %v563 = vpack.c.b16 %v555, %v555
    %v564 = vpack.c.b16 %v556, %v556
    %v565 = vpack.c.b16 %v557, %v557
    %v566 = vpack.c.b16 %v558, %v558
    %v567 = vpack.c.b16 %v559, %v559
    %v568 = vpack.c.b16 %v560, %v560
    %v833 = vunpack.c.l.b16 %v242
    %v834 = vunpack.c.h.b16 %v242
    %v835 = vunpack.c.l.b16 %v243
    %v836 = vunpack.c.h.b16 %v243
    %v837 = vunpack.c.l.b16 %v244
    %v838 = vunpack.c.h.b16 %v244
    %v839 = vunpack.c.l.b16 %v245
    %v840 = vunpack.c.h.b16 %v245
    %v841 = vunpack.c.l.b16 %v246
    %v842 = vunpack.c.h.b16 %v246
    %v843 = vunpack.c.l.b16 %v247
    %v844 = vunpack.c.h.b16 %v247
    %v845 = vunpack.c.l.b16 %v248
    %v846 = vunpack.c.h.b16 %v248
    %v847 = vunpack.c.l.b16 %v249
    %v848 = vunpack.c.h.b16 %v249
    %v849 = vunpack.c.l.b16 %v250
    %v850 = vunpack.c.h.b16 %v250
    %v851 = vunpack.c.l.b16 %v251
    %v852 = vunpack.c.h.b16 %v251
    %v853 = vunpack.c.l.b16 %v252
    %v854 = vunpack.c.h.b16 %v252
    %v855 = vunpack.c.l.b16 %v253
    %v856 = vunpack.c.h.b16 %v253
    %v857 = vunpack.c.l.b16 %v254
    %v858 = vunpack.c.h.b16 %v254
    %v859 = vunpack.c.l.b16 %v255
    %v860 = vunpack.c.h.b16 %v255
    %v861 = vunpack.c.l.b16 %v256
    %v862 = vunpack.c.h.b16 %v256
    %v863 = vunpack.c.l.b16 %v257
    %v864 = vunpack.c.h.b16 %v257
    %v865 = vunpack.c.l.b16 %v258
    %v866 = vunpack.c.h.b16 %v258
    %v867 = vunpack.c.l.b16 %v259
    %v868 = vunpack.c.h.b16 %v259
    %v869 = vunpack.c.l.b16 %v260
    %v870 = vunpack.c.h.b16 %v260
    %v871 = vunpack.c.l.b16 %v261
    %v872 = vunpack.c.h.b16 %v261
    %v873 = vunpack.c.l.b16 %v262
    %v874 = vunpack.c.h.b16 %v262
    %v875 = vunpack.c.l.b16 %v263
    %v876 = vunpack.c.h.b16 %v263
    %v877 = vunpack.c.l.b16 %v264
    %v878 = vunpack.c.h.b16 %v264
    %v879 = vunpack.c.l.b16 %v265
    %v880 = vunpack.c.h.b16 %v265
    %v881 = vunpack.c.l.b16 %v266
    %v882 = vunpack.c.h.b16 %v266
    %v883 = vunpack.c.l.b16 %v267
    %v884 = vunpack.c.h.b16 %v267
    %v885 = vunpack.c.l.b16 %v268
    %v886 = vunpack.c.h.b16 %v268
    %v887 = vunpack.c.l.b16 %v269
    %v888 = vunpack.c.h.b16 %v269
    %v889 = vunpack.c.l.b16 %v270
    %v890 = vunpack.c.h.b16 %v270
    %v891 = vunpack.c.l.b16 %v271
    %v892 = vunpack.c.h.b16 %v271
    %v893 = vunpack.c.l.b16 %v272
    %v894 = vunpack.c.h.b16 %v272
    %v895 = vunpack.c.l.b16 %v273
    %v896 = vunpack.c.h.b16 %v273
    %v897 = vunpack.c.l.b16 %v274
    %v898 = vunpack.c.h.b16 %v274
    %v899 = vunpack.c.l.b16 %v275
    %v900 = vunpack.c.h.b16 %v275
    %v901 = vunpack.c.l.b16 %v276
    %v902 = vunpack.c.h.b16 %v276
    %v903 = vunpack.c.l.b16 %v277
    %v904 = vunpack.c.h.b16 %v277
    %v905 = vunpack.c.l.b16 %v278
    %v906 = vunpack.c.h.b16 %v278
    %v907 = vunpack.c.l.b16 %v279
    %v908 = vunpack.c.h.b16 %v279
    %v909 = vunpack.c.l.b16 %v280
    %v910 = vunpack.c.h.b16 %v280
    %v911 = vunpack.c.l.b16 %v281
    %v912 = vunpack.c.h.b16 %v281
    %v913 = vunpack.c.l.b16 %v282
    %v914 = vunpack.c.h.b16 %v282
    %v915 = vunpack.c.l.b16 %v283
    %v916 = vunpack.c.h.b16 %v283
    %v917 = vunpack.c.l.b16 %v284
    %v918 = vunpack.c.h.b16 %v284
    %v919 = vunpack.c.l.b16 %v285
    %v920 = vunpack.c.h.b16 %v285
    %v921 = vunpack.c.l.b16 %v286
    %v922 = vunpack.c.h.b16 %v286
    %v923 = vunpack.c.l.b16 %v287
    %v924 = vunpack.c.h.b16 %v287
    %v925 = vunpack.c.l.b16 %v288
    %v926 = vunpack.c.h.b16 %v288
    %v927 = vunpack.c.l.b16 %v289
    %v928 = vunpack.c.h.b16 %v289
    %v929 = vunpack.c.l.b16 %v290
    %v930 = vunpack.c.h.b16 %v290
    %v931 = vunpack.c.l.b16 %v291
    %v932 = vunpack.c.h.b16 %v291
    %v933 = vunpack.c.l.b16 %v292
    %v934 = vunpack.c.h.b16 %v292
    %v935 = vunpack.c.l.b16 %v293
    %v936 = vunpack.c.h.b16 %v293
    %v937 = vunpack.c.l.b16 %v294
    %v938 = vunpack.c.h.b16 %v294
    %v939 = vunpack.c.l.b16 %v295
    %v940 = vunpack.c.h.b16 %v295
    %v941 = vunpack.c.l.b16 %v296
    %v942 = vunpack.c.h.b16 %v296
    %v943 = vunpack.c.l.b16 %v297
    %v944 = vunpack.c.h.b16 %v297
    %v945 = vunpack.c.l.b16 %v298
    %v946 = vunpack.c.h.b16 %v298
    %v947 = vunpack.c.l.b16 %v299
    %v948 = vunpack.c.h.b16 %v299
    %v949 = vunpack.c.l.b16 %v300
    %v950 = vunpack.c.h.b16 %v300
    %v951 = vunpack.c.l.b16 %v301
    %v952 = vunpack.c.h.b16 %v301
    %v953 = vunpack.c.l.b16 %v302
    %v954 = vunpack.c.h.b16 %v302
    %v955 = vunpack.c.l.b16 %v303
    %v956 = vunpack.c.h.b16 %v303
    %v957 = vunpack.c.l.b16 %v304
    %v958 = vunpack.c.h.b16 %v304
    %v959 = vunpack.c.l.b16 %v305
    %v960 = vunpack.c.h.b16 %v305
    %v961 = vunpack.c.l.b16 %v306
    %v962 = vunpack.c.h.b16 %v306
    %v963 = vunpack.c.l.b16 %v307
    %v964 = vunpack.c.h.b16 %v307
    %v965 = vunpack.c.l.b16 %v308
    %v966 = vunpack.c.h.b16 %v308
    %v967 = vunpack.c.l.b16 %v309
    %v968 = vunpack.c.h.b16 %v309
    %v969 = vunpack.c.l.b16 %v310
    %v970 = vunpack.c.h.b16 %v310
    %v971 = vunpack.c.l.b16 %v311
    %v972 = vunpack.c.h.b16 %v311
    %v973 = vunpack.c.l.b16 %v312
    %v974 = vunpack.c.h.b16 %v312
    %v975 = vunpack.c.l.b16 %v313
    %v976 = vunpack.c.h.b16 %v313
    %v977 = vunpack.c.l.b16 %v314
    %v978 = vunpack.c.h.b16 %v314
    %v979 = vunpack.c.l.b16 %v315
    %v980 = vunpack.c.h.b16 %v315
    %v981 = vunpack.c.l.b16 %v316
    %v982 = vunpack.c.h.b16 %v316
    %v983 = vunpack.c.l.b16 %v317
    %v984 = vunpack.c.h.b16 %v317
    %v985 = vunpack.c.l.b16 %v318
    %v986 = vunpack.c.h.b16 %v318
    %v987 = vunpack.c.l.b16 %v319
    %v988 = vunpack.c.h.b16 %v319
    %v989 = vunpack.c.l.b16 %v320
    %v990 = vunpack.c.h.b16 %v320
    %v991 = vunpack.c.l.b16 %v321
    %v992 = vunpack.c.h.b16 %v321
    %v993 = vunpack.c.l.b16 %v322
    %v994 = vunpack.c.h.b16 %v322
    %v995 = vunpack.c.l.b16 %v323
    %v996 = vunpack.c.h.b16 %v323
    %v997 = vunpack.c.l.b16 %v324
    %v998 = vunpack.c.h.b16 %v324
    %v999 = vunpack.c.l.b16 %v325
    %v1000 = vunpack.c.h.b16 %v325
    %v1001 = vunpack.c.l.b16 %v326
    %v1002 = vunpack.c.h.b16 %v326
    %v1003 = vunpack.c.l.b16 %v327
    %v1004 = vunpack.c.h.b16 %v327
    %v1005 = vunpack.c.l.b16 %v328
    %v1006 = vunpack.c.h.b16 %v328
    %v1007 = vunpack.c.l.b16 %v329
    %v1008 = vunpack.c.h.b16 %v329
    %v1009 = vunpack.c.l.b16 %v330
    %v1010 = vunpack.c.h.b16 %v330
    %v1011 = vunpack.c.l.b16 %v331
    %v1012 = vunpack.c.h.b16 %v331
    %v1013 = vunpack.c.l.b16 %v332
    %v1014 = vunpack.c.h.b16 %v332
    %v1015 = vunpack.c.l.b16 %v333
    %v1016 = vunpack.c.h.b16 %v333
    %v1017 = vunpack.c.l.b16 %v334
    %v1018 = vunpack.c.h.b16 %v334
    %v1019 = vunpack.c.l.b16 %v335
    %v1020 = vunpack.c.h.b16 %v335
    %v1021 = vunpack.c.l.b16 %v336
    %v1022 = vunpack.c.h.b16 %v336
    %v1023 = vunpack.c.l.b16 %v337
    %v1024 = vunpack.c.h.b16 %v337
    %v1025 = vunpack.c.l.b16 %v338
    %v1026 = vunpack.c.h.b16 %v338
    %v1027 = vunpack.c.l.b16 %v339
    %v1028 = vunpack.c.h.b16 %v339
    %v1029 = vunpack.c.l.b16 %v340
    %v1030 = vunpack.c.h.b16 %v340
    %v1031 = vunpack.c.l.b16 %v341
    %v1032 = vunpack.c.h.b16 %v341
    %v1033 = vunpack.c.l.b16 %v342
    %v1034 = vunpack.c.h.b16 %v342
    %v1035 = vunpack.c.l.b16 %v343
    %v1036 = vunpack.c.h.b16 %v343
    %v1037 = vunpack.c.l.b16 %v344
    %v1038 = vunpack.c.h.b16 %v344
    %v1039 = vunpack.c.l.b16 %v345
    %v1040 = vunpack.c.h.b16 %v345
    %v1041 = vunpack.c.l.b16 %v346
    %v1042 = vunpack.c.h.b16 %v346
    %v1043 = vunpack.c.l.b16 %v347
    %v1044 = vunpack.c.h.b16 %v347
    %v1045 = vunpack.c.l.b16 %v348
    %v1046 = vunpack.c.h.b16 %v348
    %v1047 = vunpack.c.l.b16 %v349
    %v1048 = vunpack.c.h.b16 %v349
    %v1049 = vunpack.c.l.b16 %v350
    %v1050 = vunpack.c.h.b16 %v350
    %v1051 = vunpack.c.l.b16 %v351
    %v1052 = vunpack.c.h.b16 %v351
    %v1053 = vunpack.c.l.b16 %v352
    %v1054 = vunpack.c.h.b16 %v352
    %v1055 = vunpack.c.l.b16 %v353
    %v1056 = vunpack.c.h.b16 %v353
    %v1057 = vunpack.c.l.b16 %v354
    %v1058 = vunpack.c.h.b16 %v354
    %v1059 = vunpack.c.l.b16 %v355
    %v1060 = vunpack.c.h.b16 %v355
    %v1061 = vunpack.c.l.b16 %v356
    %v1062 = vunpack.c.h.b16 %v356
    %v1063 = vunpack.c.l.b16 %v357
    %v1064 = vunpack.c.h.b16 %v357
    %v1065 = vunpack.c.l.b16 %v358
    %v1066 = vunpack.c.h.b16 %v358
    %v1067 = vunpack.c.l.b16 %v359
    %v1068 = vunpack.c.h.b16 %v359
    %v1069 = vunpack.c.l.b16 %v360
    %v1070 = vunpack.c.h.b16 %v360
    %v1071 = vunpack.c.l.b16 %v361
    %v1072 = vunpack.c.h.b16 %v361
    %v1073 = vunpack.c.l.b16 %v362
    %v1074 = vunpack.c.h.b16 %v362
    %v1075 = vunpack.c.l.b16 %v363
    %v1076 = vunpack.c.h.b16 %v363
    %v1077 = vunpack.c.l.b16 %v364
    %v1078 = vunpack.c.h.b16 %v364
    %v1079 = vunpack.c.l.b16 %v365
    %v1080 = vunpack.c.h.b16 %v365
    %v1081 = vunpack.c.l.b16 %v366
    %v1082 = vunpack.c.h.b16 %v366
    %v1083 = vunpack.c.l.b16 %v367
    %v1084 = vunpack.c.h.b16 %v367
    %v1085 = vunpack.c.l.b16 %v368
    %v1086 = vunpack.c.h.b16 %v368
    %v1087 = vunpack.c.l.b16 %v369
    %v1088 = vunpack.c.h.b16 %v369
    %v1089 = vunpack.c.l.b16 %v370
    %v1090 = vunpack.c.h.b16 %v370
    %v1091 = vunpack.c.l.b16 %v371
    %v1092 = vunpack.c.h.b16 %v371
    %v1093 = vunpack.c.l.b16 %v372
    %v1094 = vunpack.c.h.b16 %v372
    %v1095 = vunpack.c.l.b16 %v373
    %v1096 = vunpack.c.h.b16 %v373
    %v1097 = vunpack.c.l.b16 %v374
    %v1098 = vunpack.c.h.b16 %v374
    %v1099 = vunpack.c.l.b16 %v375
    %v1100 = vunpack.c.h.b16 %v375
    %v1101 = vunpack.c.l.b16 %v376
    %v1102 = vunpack.c.h.b16 %v376
    %v1103 = vunpack.c.l.b16 %v377
    %v1104 = vunpack.c.h.b16 %v377
    %v1105 = vunpack.c.l.b16 %v378
    %v1106 = vunpack.c.h.b16 %v378
    %v1107 = vunpack.c.l.b16 %v379
    %v1108 = vunpack.c.h.b16 %v379
    %v1109 = vunpack.c.l.b16 %v380
    %v1110 = vunpack.c.h.b16 %v380
    %v1111 = vunpack.c.l.b16 %v381
    %v1112 = vunpack.c.h.b16 %v381
    %v1113 = vunpack.c.l.b16 %v382
    %v1114 = vunpack.c.h.b16 %v382
    %v1115 = vunpack.c.l.b16 %v383
    %v1116 = vunpack.c.h.b16 %v383
    %v1117 = vunpack.c.l.b16 %v384
    %v1118 = vunpack.c.h.b16 %v384
    %v1119 = vunpack.c.l.b16 %v385
    %v1120 = vunpack.c.h.b16 %v385
    %v1121 = vunpack.c.l.b16 %v386
    %v1122 = vunpack.c.h.b16 %v386
    %v1123 = vunpack.c.l.b16 %v387
    %v1124 = vunpack.c.h.b16 %v387
    %v1125 = vunpack.c.l.b16 %v388
    %v1126 = vunpack.c.h.b16 %v388
    %v1127 = vunpack.c.l.b16 %v389
    %v1128 = vunpack.c.h.b16 %v389
    %v1129 = vunpack.c.l.b16 %v390
    %v1130 = vunpack.c.h.b16 %v390
    %v1131 = vunpack.c.l.b16 %v391
    %v1132 = vunpack.c.h.b16 %v391
    %v1133 = vunpack.c.l.b16 %v392
    %v1134 = vunpack.c.h.b16 %v392
    %v1135 = vunpack.c.l.b16 %v393
    %v1136 = vunpack.c.h.b16 %v393
    %v1137 = vunpack.c.l.b16 %v394
    %v1138 = vunpack.c.h.b16 %v394
    %v1139 = vunpack.c.l.b16 %v395
    %v1140 = vunpack.c.h.b16 %v395
    %v1141 = vunpack.c.l.b16 %v396
    %v1142 = vunpack.c.h.b16 %v396
    %v1143 = vunpack.c.l.b16 %v397
    %v1144 = vunpack.c.h.b16 %v397
    %v1145 = vunpack.c.l.b16 %v398
    %v1146 = vunpack.c.h.b16 %v398
    %v1147 = vunpack.c.l.b16 %v399
    %v1148 = vunpack.c.h.b16 %v399
    %v1149 = vunpack.c.l.b16 %v400
    %v1150 = vunpack.c.h.b16 %v400
    %v1151 = vunpack.c.l.b16 %v401
    %v1152 = vunpack.c.h.b16 %v401
    %v1153 = vunpack.c.l.b16 %v402
    %v1154 = vunpack.c.h.b16 %v402
    %v1155 = vunpack.c.l.b16 %v403
    %v1156 = vunpack.c.h.b16 %v403
    %v1157 = vunpack.c.l.b16 %v404
    %v1158 = vunpack.c.h.b16 %v404
    %v1159 = vunpack.c.l.b16 %v405
    %v1160 = vunpack.c.h.b16 %v405
    %v1161 = vunpack.c.l.b16 %v406
    %v1162 = vunpack.c.h.b16 %v406
    %v1163 = vunpack.c.l.b16 %v407
    %v1164 = vunpack.c.h.b16 %v407
    %v1165 = vunpack.c.l.b16 %v408
    %v1166 = vunpack.c.h.b16 %v408
    %v1167 = vunpack.c.l.b16 %v409
    %v1168 = vunpack.c.h.b16 %v409
    %v1169 = vunpack.c.l.b16 %v410
    %v1170 = vunpack.c.h.b16 %v410
    %v1171 = vunpack.c.l.b16 %v411
    %v1172 = vunpack.c.h.b16 %v411
    %v1173 = vunpack.c.l.b16 %v412
    %v1174 = vunpack.c.h.b16 %v412
    %v1175 = vunpack.c.l.b16 %v413
    %v1176 = vunpack.c.h.b16 %v413
    %v1177 = vunpack.c.l.b16 %v414
    %v1178 = vunpack.c.h.b16 %v414
    %v1179 = vunpack.c.l.b16 %v415
    %v1180 = vunpack.c.h.b16 %v415
    %v1181 = vunpack.c.l.b16 %v416
    %v1182 = vunpack.c.h.b16 %v416
    %v1183 = vunpack.c.l.b16 %v417
    %v1184 = vunpack.c.h.b16 %v417
    %v1185 = vunpack.c.l.b16 %v418
    %v1186 = vunpack.c.h.b16 %v418
    %v1187 = vunpack.c.l.b16 %v419
    %v1188 = vunpack.c.h.b16 %v419
    %v1189 = vunpack.c.l.b16 %v420
    %v1190 = vunpack.c.h.b16 %v420
    %v1191 = vunpack.c.l.b16 %v421
    %v1192 = vunpack.c.h.b16 %v421
    %v1193 = vunpack.c.l.b16 %v422
    %v1194 = vunpack.c.h.b16 %v422
    %v1195 = vunpack.c.l.b16 %v423
    %v1196 = vunpack.c.h.b16 %v423
    %v1197 = vunpack.c.l.b16 %v424
    %v1198 = vunpack.c.h.b16 %v424
    %v1199 = vunpack.c.l.b16 %v425
    %v1200 = vunpack.c.h.b16 %v425
    %v1201 = vunpack.c.l.b16 %v426
    %v1202 = vunpack.c.h.b16 %v426
    %v1203 = vunpack.c.l.b16 %v427
    %v1204 = vunpack.c.h.b16 %v427
    %v1205 = vunpack.c.l.b16 %v428
    %v1206 = vunpack.c.h.b16 %v428
    %v1207 = vunpack.c.l.b16 %v429
    %v1208 = vunpack.c.h.b16 %v429
    %v1209 = vunpack.c.l.b16 %v430
    %v1210 = vunpack.c.h.b16 %v430
    %v1211 = vunpack.c.l.b16 %v431
    %v1212 = vunpack.c.h.b16 %v431
    %v1213 = vunpack.c.l.b16 %v432
    %v1214 = vunpack.c.h.b16 %v432
    %v1215 = vunpack.c.l.b16 %v433
    %v1216 = vunpack.c.h.b16 %v433
    %v1217 = vunpack.c.l.b16 %v434
    %v1218 = vunpack.c.h.b16 %v434
    %v1219 = vunpack.c.l.b16 %v435
    %v1220 = vunpack.c.h.b16 %v435
    %v1221 = vunpack.c.l.b16 %v436
    %v1222 = vunpack.c.h.b16 %v436
    %v1223 = vunpack.c.l.b16 %v437
    %v1224 = vunpack.c.h.b16 %v437
    %v1225 = vunpack.c.l.b16 %v438
    %v1226 = vunpack.c.h.b16 %v438
    %v1227 = vunpack.c.l.b16 %v439
    %v1228 = vunpack.c.h.b16 %v439
    %v1229 = vunpack.c.l.b16 %v440
    %v1230 = vunpack.c.h.b16 %v440
    %v1231 = vunpack.c.l.b16 %v441
    %v1232 = vunpack.c.h.b16 %v441
    %v1233 = vunpack.c.l.b16 %v442
    %v1234 = vunpack.c.h.b16 %v442
    %v1235 = vunpack.c.l.b16 %v443
    %v1236 = vunpack.c.h.b16 %v443
    %v1237 = vunpack.c.l.b16 %v444
    %v1238 = vunpack.c.h.b16 %v444
    %v1239 = vunpack.c.l.b16 %v445
    %v1240 = vunpack.c.h.b16 %v445
    %v1241 = vunpack.c.l.b16 %v446
    %v1242 = vunpack.c.h.b16 %v446
    %v1243 = vunpack.c.l.b16 %v447
    %v1244 = vunpack.c.h.b16 %v447
    %v1245 = vunpack.c.l.b16 %v448
    %v1246 = vunpack.c.h.b16 %v448
    %v1247 = vunpack.c.l.b16 %v449
    %v1248 = vunpack.c.h.b16 %v449
    %v1249 = vunpack.c.l.b16 %v450
    %v1250 = vunpack.c.h.b16 %v450
    %v1251 = vunpack.c.l.b16 %v451
    %v1252 = vunpack.c.h.b16 %v451
    %v1253 = vunpack.c.l.b16 %v452
    %v1254 = vunpack.c.h.b16 %v452
    %v1255 = vunpack.c.l.b16 %v453
    %v1256 = vunpack.c.h.b16 %v453
    %v1257 = vunpack.c.l.b16 %v454
    %v1258 = vunpack.c.h.b16 %v454
    %v1259 = vunpack.c.l.b16 %v455
    %v1260 = vunpack.c.h.b16 %v455
    %v1261 = vunpack.c.l.b16 %v456
    %v1262 = vunpack.c.h.b16 %v456
    %v1263 = vunpack.c.l.b16 %v457
    %v1264 = vunpack.c.h.b16 %v457
    %v1265 = vunpack.c.l.b16 %v458
    %v1266 = vunpack.c.h.b16 %v458
    %v1267 = vunpack.c.l.b16 %v459
    %v1268 = vunpack.c.h.b16 %v459
    %v1269 = vunpack.c.l.b16 %v460
    %v1270 = vunpack.c.h.b16 %v460
    %v1271 = vunpack.c.l.b16 %v461
    %v1272 = vunpack.c.h.b16 %v461
    %v1273 = vunpack.c.l.b16 %v462
    %v1274 = vunpack.c.h.b16 %v462
    %v1275 = vunpack.c.l.b16 %v463
    %v1276 = vunpack.c.h.b16 %v463
    %v1277 = vunpack.c.l.b16 %v464
    %v1278 = vunpack.c.h.b16 %v464
    %v1279 = vunpack.c.l.b16 %v465
    %v1280 = vunpack.c.h.b16 %v465
    %v1281 = vunpack.c.l.b16 %v466
    %v1282 = vunpack.c.h.b16 %v466
    %v1283 = vunpack.c.l.b16 %v467
    %v1284 = vunpack.c.h.b16 %v467
    %v1285 = vunpack.c.l.b16 %v468
    %v1286 = vunpack.c.h.b16 %v468
    %v1287 = vunpack.c.l.b16 %v469
    %v1288 = vunpack.c.h.b16 %v469
    %v1289 = vunpack.c.l.b16 %v470
    %v1290 = vunpack.c.h.b16 %v470
    %v1291 = vunpack.c.l.b16 %v471
    %v1292 = vunpack.c.h.b16 %v471
    %v1293 = vunpack.c.l.b16 %v472
    %v1294 = vunpack.c.h.b16 %v472
    %v1295 = vunpack.c.l.b16 %v473
    %v1296 = vunpack.c.h.b16 %v473
    %v1297 = vunpack.c.l.b16 %v474
    %v1298 = vunpack.c.h.b16 %v474
    %v1299 = vunpack.c.l.b16 %v475
    %v1300 = vunpack.c.h.b16 %v475
    %v1301 = vunpack.c.l.b16 %v476
    %v1302 = vunpack.c.h.b16 %v476
    %v1303 = vunpack.c.l.b16 %v477
    %v1304 = vunpack.c.h.b16 %v477
    %v1305 = vunpack.c.l.b16 %v478
    %v1306 = vunpack.c.h.b16 %v478
    %v1307 = vunpack.c.l.b16 %v479
    %v1308 = vunpack.c.h.b16 %v479
    %v1309 = vunpack.c.l.b16 %v480
    %v1310 = vunpack.c.h.b16 %v480
    %v1311 = vunpack.c.l.b16 %v481
    %v1312 = vunpack.c.h.b16 %v481
    %v1313 = vunpack.c.l.b16 %v482
    %v1314 = vunpack.c.h.b16 %v482
    %v1315 = vunpack.c.l.b16 %v483
    %v1316 = vunpack.c.h.b16 %v483
    %v1317 = vunpack.c.l.b16 %v484
    %v1318 = vunpack.c.h.b16 %v484
    %v1319 = vunpack.c.l.b16 %v485
    %v1320 = vunpack.c.h.b16 %v485
    %v1321 = vunpack.c.l.b16 %v486
    %v1322 = vunpack.c.h.b16 %v486
    %v1323 = vunpack.c.l.b16 %v487
    %v1324 = vunpack.c.h.b16 %v487
    %v1325 = vunpack.c.l.b16 %v488
    %v1326 = vunpack.c.h.b16 %v488
    %v1327 = vunpack.c.l.b16 %v489
    %v1328 = vunpack.c.h.b16 %v489
    %v1329 = vunpack.c.l.b16 %v490
    %v1330 = vunpack.c.h.b16 %v490
    %v1331 = vunpack.c.l.b16 %v491
    %v1332 = vunpack.c.h.b16 %v491
    %v1333 = vunpack.c.l.b16 %v492
    %v1334 = vunpack.c.h.b16 %v492
    %v1335 = vunpack.c.l.b16 %v493
    %v1336 = vunpack.c.h.b16 %v493
    %v1337 = vunpack.c.l.b16 %v494
    %v1338 = vunpack.c.h.b16 %v494
    %v1339 = vunpack.c.l.b16 %v495
    %v1340 = vunpack.c.h.b16 %v495
    %v1341 = vunpack.c.l.b16 %v496
    %v1342 = vunpack.c.h.b16 %v496
    %v1343 = vunpack.c.l.b16 %v497
    %v1344 = vunpack.c.h.b16 %v497
    %v1345 = vpack.c.b16 %v837, %v833
    %v1346 = vpack.c.b16 %v838, %v834
    %v1347 = vpack.c.b16 %v839, %v835
    %v1348 = vpack.c.b16 %v840, %v836
    %v1349 = vpack.c.b16 %v845, %v841
    %v1350 = vpack.c.b16 %v846, %v842
    %v1351 = vpack.c.b16 %v847, %v843
    %v1352 = vpack.c.b16 %v848, %v844
    %v1353 = vpack.c.b16 %v853, %v849
    %v1354 = vpack.c.b16 %v854, %v850
    %v1355 = vpack.c.b16 %v855, %v851
    %v1356 = vpack.c.b16 %v856, %v852
    %v1357 = vpack.c.b16 %v861, %v857
    %v1358 = vpack.c.b16 %v862, %v858
    %v1359 = vpack.c.b16 %v863, %v859
    %v1360 = vpack.c.b16 %v864, %v860
    %v1361 = vpack.c.b16 %v869, %v865
    %v1362 = vpack.c.b16 %v870, %v866
    %v1363 = vpack.c.b16 %v871, %v867
    %v1364 = vpack.c.b16 %v872, %v868
    %v1365 = vpack.c.b16 %v877, %v873
    %v1366 = vpack.c.b16 %v878, %v874
    %v1367 = vpack.c.b16 %v879, %v875
    %v1368 = vpack.c.b16 %v880, %v876
    %v1369 = vpack.c.b16 %v885, %v881
    %v1370 = vpack.c.b16 %v886, %v882
    %v1371 = vpack.c.b16 %v887, %v883
    %v1372 = vpack.c.b16 %v888, %v884
    %v1373 = vpack.c.b16 %v893, %v889
    %v1374 = vpack.c.b16 %v894, %v890
    %v1375 = vpack.c.b16 %v895, %v891
    %v1376 = vpack.c.b16 %v896, %v892
    %v1377 = vpack.c.b16 %v901, %v897
    %v1378 = vpack.c.b16 %v902, %v898
    %v1379 = vpack.c.b16 %v903, %v899
    %v1380 = vpack.c.b16 %v904, %v900
    %v1381 = vpack.c.b16 %v909, %v905
    %v1382 = vpack.c.b16 %v910, %v906
    %v1383 = vpack.c.b16 %v911, %v907
    %v1384 = vpack.c.b16 %v912, %v908
    %v1385 = vpack.c.b16 %v917, %v913
    %v1386 = vpack.c.b16 %v918, %v914
    %v1387 = vpack.c.b16 %v919, %v915
    %v1388 = vpack.c.b16 %v920, %v916
    %v1389 = vpack.c.b16 %v925, %v921
    %v1390 = vpack.c.b16 %v926, %v922
    %v1391 = vpack.c.b16 %v927, %v923
    %v1392 = vpack.c.b16 %v928, %v924
    %v1393 = vpack.c.b16 %v933, %v929
    %v1394 = vpack.c.b16 %v934, %v930
    %v1395 = vpack.c.b16 %v935, %v931
    %v1396 = vpack.c.b16 %v936, %v932
    %v1397 = vpack.c.b16 %v941, %v937
    %v1398 = vpack.c.b16 %v942, %v938
    %v1399 = vpack.c.b16 %v943, %v939
    %v1400 = vpack.c.b16 %v944, %v940
    %v1401 = vpack.c.b16 %v949, %v945
    %v1402 = vpack.c.b16 %v950, %v946
    %v1403 = vpack.c.b16 %v951, %v947
    %v1404 = vpack.c.b16 %v952, %v948
    %v1405 = vpack.c.b16 %v957, %v953
    %v1406 = vpack.c.b16 %v958, %v954
    %v1407 = vpack.c.b16 %v959, %v955
    %v1408 = vpack.c.b16 %v960, %v956
    %v1409 = vpack.c.b16 %v965, %v961
    %v1410 = vpack.c.b16 %v966, %v962
    %v1411 = vpack.c.b16 %v967, %v963
    %v1412 = vpack.c.b16 %v968, %v964
    %v1413 = vpack.c.b16 %v973, %v969
    %v1414 = vpack.c.b16 %v974, %v970
    %v1415 = vpack.c.b16 %v975, %v971
    %v1416 = vpack.c.b16 %v976, %v972
    %v1417 = vpack.c.b16 %v981, %v977
    %v1418 = vpack.c.b16 %v982, %v978
    %v1419 = vpack.c.b16 %v983, %v979
    %v1420 = vpack.c.b16 %v984, %v980
    %v1421 = vpack.c.b16 %v989, %v985
    %v1422 = vpack.c.b16 %v990, %v986
    %v1423 = vpack.c.b16 %v991, %v987
    %v1424 = vpack.c.b16 %v992, %v988
    %v1425 = vpack.c.b16 %v997, %v993
    %v1426 = vpack.c.b16 %v998, %v994
    %v1427 = vpack.c.b16 %v999, %v995
    %v1428 = vpack.c.b16 %v1000, %v996
    %v1429 = vpack.c.b16 %v1005, %v1001
    %v1430 = vpack.c.b16 %v1006, %v1002
    %v1431 = vpack.c.b16 %v1007, %v1003
    %v1432 = vpack.c.b16 %v1008, %v1004
    %v1433 = vpack.c.b16 %v1013, %v1009
    %v1434 = vpack.c.b16 %v1014, %v1010
    %v1435 = vpack.c.b16 %v1015, %v1011
    %v1436 = vpack.c.b16 %v1016, %v1012
    %v1437 = vpack.c.b16 %v1021, %v1017
    %v1438 = vpack.c.b16 %v1022, %v1018
    %v1439 = vpack.c.b16 %v1023, %v1019
    %v1440 = vpack.c.b16 %v1024, %v1020
    %v1441 = vpack.c.b16 %v1029, %v1025
    %v1442 = vpack.c.b16 %v1030, %v1026
    %v1443 = vpack.c.b16 %v1031, %v1027
    %v1444 = vpack.c.b16 %v1032, %v1028
    %v1445 = vpack.c.b16 %v1037, %v1033
    %v1446 = vpack.c.b16 %v1038, %v1034
    %v1447 = vpack.c.b16 %v1039, %v1035
    %v1448 = vpack.c.b16 %v1040, %v1036
    %v1449 = vpack.c.b16 %v1045, %v1041
    %v1450 = vpack.c.b16 %v1046, %v1042
    %v1451 = vpack.c.b16 %v1047, %v1043
    %v1452 = vpack.c.b16 %v1048, %v1044
    %v1453 = vpack.c.b16 %v1053, %v1049
    %v1454 = vpack.c.b16 %v1054, %v1050
    %v1455 = vpack.c.b16 %v1055, %v1051
    %v1456 = vpack.c.b16 %v1056, %v1052
    %v1457 = vpack.c.b16 %v1061, %v1057
    %v1458 = vpack.c.b16 %v1062, %v1058
    %v1459 = vpack.c.b16 %v1063, %v1059
    %v1460 = vpack.c.b16 %v1064, %v1060
    %v1461 = vpack.c.b16 %v1069, %v1065
    %v1462 = vpack.c.b16 %v1070, %v1066
    %v1463 = vpack.c.b16 %v1071, %v1067
    %v1464 = vpack.c.b16 %v1072, %v1068
    %v1465 = vpack.c.b16 %v1077, %v1073
    %v1466 = vpack.c.b16 %v1078, %v1074
    %v1467 = vpack.c.b16 %v1079, %v1075
    %v1468 = vpack.c.b16 %v1080, %v1076
    %v1469 = vpack.c.b16 %v1085, %v1081
    %v1470 = vpack.c.b16 %v1086, %v1082
    %v1471 = vpack.c.b16 %v1087, %v1083
    %v1472 = vpack.c.b16 %v1088, %v1084
    %v1473 = vpack.c.b16 %v1093, %v1089
    %v1474 = vpack.c.b16 %v1094, %v1090
    %v1475 = vpack.c.b16 %v1095, %v1091
    %v1476 = vpack.c.b16 %v1096, %v1092
    %v1477 = vpack.c.b16 %v1101, %v1097
    %v1478 = vpack.c.b16 %v1102, %v1098
    %v1479 = vpack.c.b16 %v1103, %v1099
    %v1480 = vpack.c.b16 %v1104, %v1100
    %v1481 = vpack.c.b16 %v1109, %v1105
    %v1482 = vpack.c.b16 %v1110, %v1106
    %v1483 = vpack.c.b16 %v1111, %v1107
    %v1484 = vpack.c.b16 %v1112, %v1108
    %v1485 = vpack.c.b16 %v1117, %v1113
    %v1486 = vpack.c.b16 %v1118, %v1114
    %v1487 = vpack.c.b16 %v1119, %v1115
    %v1488 = vpack.c.b16 %v1120, %v1116
    %v1489 = vpack.c.b16 %v1125, %v1121
    %v1490 = vpack.c.b16 %v1126, %v1122
    %v1491 = vpack.c.b16 %v1127, %v1123
    %v1492 = vpack.c.b16 %v1128, %v1124
    %v1493 = vpack.c.b16 %v1133, %v1129
    %v1494 = vpack.c.b16 %v1134, %v1130
    %v1495 = vpack.c.b16 %v1135, %v1131
    %v1496 = vpack.c.b16 %v1136, %v1132
    %v1497 = vpack.c.b16 %v1141, %v1137
    %v1498 = vpack.c.b16 %v1142, %v1138
    %v1499 = vpack.c.b16 %v1143, %v1139
    %v1500 = vpack.c.b16 %v1144, %v1140
    %v1501 = vpack.c.b16 %v1149, %v1145
    %v1502 = vpack.c.b16 %v1150, %v1146
    %v1503 = vpack.c.b16 %v1151, %v1147
    %v1504 = vpack.c.b16 %v1152, %v1148
    %v1505 = vpack.c.b16 %v1157, %v1153
    %v1506 = vpack.c.b16 %v1158, %v1154
    %v1507 = vpack.c.b16 %v1159, %v1155
    %v1508 = vpack.c.b16 %v1160, %v1156
    %v1509 = vpack.c.b16 %v1165, %v1161
    %v1510 = vpack.c.b16 %v1166, %v1162
    %v1511 = vpack.c.b16 %v1167, %v1163
    %v1512 = vpack.c.b16 %v1168, %v1164
    %v1513 = vpack.c.b16 %v1173, %v1169
    %v1514 = vpack.c.b16 %v1174, %v1170
    %v1515 = vpack.c.b16 %v1175, %v1171
    %v1516 = vpack.c.b16 %v1176, %v1172
    %v1517 = vpack.c.b16 %v1181, %v1177
    %v1518 = vpack.c.b16 %v1182, %v1178
    %v1519 = vpack.c.b16 %v1183, %v1179
    %v1520 = vpack.c.b16 %v1184, %v1180
    %v1521 = vpack.c.b16 %v1189, %v1185
    %v1522 = vpack.c.b16 %v1190, %v1186
    %v1523 = vpack.c.b16 %v1191, %v1187
    %v1524 = vpack.c.b16 %v1192, %v1188
    %v1525 = vpack.c.b16 %v1197, %v1193
    %v1526 = vpack.c.b16 %v1198, %v1194
    %v1527 = vpack.c.b16 %v1199, %v1195
    %v1528 = vpack.c.b16 %v1200, %v1196
    %v1529 = vpack.c.b16 %v1205, %v1201
    %v1530 = vpack.c.b16 %v1206, %v1202
    %v1531 = vpack.c.b16 %v1207, %v1203
    %v1532 = vpack.c.b16 %v1208, %v1204
    %v1533 = vpack.c.b16 %v1213, %v1209
    %v1534 = vpack.c.b16 %v1214, %v1210
    %v1535 = vpack.c.b16 %v1215, %v1211
    %v1536 = vpack.c.b16 %v1216, %v1212
    %v1537 = vpack.c.b16 %v1221, %v1217
    %v1538 = vpack.c.b16 %v1222, %v1218
    %v1539 = vpack.c.b16 %v1223, %v1219
    %v1540 = vpack.c.b16 %v1224, %v1220
    %v1541 = vpack.c.b16 %v1229, %v1225
    %v1542 = vpack.c.b16 %v1230, %v1226
    %v1543 = vpack.c.b16 %v1231, %v1227
    %v1544 = vpack.c.b16 %v1232, %v1228
    %v1545 = vpack.c.b16 %v1237, %v1233
    %v1546 = vpack.c.b16 %v1238, %v1234
    %v1547 = vpack.c.b16 %v1239, %v1235
    %v1548 = vpack.c.b16 %v1240, %v1236
    %v1549 = vpack.c.b16 %v1245, %v1241
    %v1550 = vpack.c.b16 %v1246, %v1242
    %v1551 = vpack.c.b16 %v1247, %v1243
    %v1552 = vpack.c.b16 %v1248, %v1244
    %v1553 = vpack.c.b16 %v1253, %v1249
    %v1554 = vpack.c.b16 %v1254, %v1250
    %v1555 = vpack.c.b16 %v1255, %v1251
    %v1556 = vpack.c.b16 %v1256, %v1252
    %v1557 = vpack.c.b16 %v1261, %v1257
    %v1558 = vpack.c.b16 %v1262, %v1258
    %v1559 = vpack.c.b16 %v1263, %v1259
    %v1560 = vpack.c.b16 %v1264, %v1260
    %v1561 = vpack.c.b16 %v1269, %v1265
    %v1562 = vpack.c.b16 %v1270, %v1266
    %v1563 = vpack.c.b16 %v1271, %v1267
    %v1564 = vpack.c.b16 %v1272, %v1268
    %v1565 = vpack.c.b16 %v1277, %v1273
    %v1566 = vpack.c.b16 %v1278, %v1274
    %v1567 = vpack.c.b16 %v1279, %v1275
    %v1568 = vpack.c.b16 %v1280, %v1276
    %v1569 = vpack.c.b16 %v1285, %v1281
    %v1570 = vpack.c.b16 %v1286, %v1282
    %v1571 = vpack.c.b16 %v1287, %v1283
    %v1572 = vpack.c.b16 %v1288, %v1284
    %v1573 = vpack.c.b16 %v1293, %v1289
    %v1574 = vpack.c.b16 %v1294, %v1290
    %v1575 = vpack.c.b16 %v1295, %v1291
    %v1576 = vpack.c.b16 %v1296, %v1292
    %v1577 = vpack.c.b16 %v1301, %v1297
    %v1578 = vpack.c.b16 %v1302, %v1298
    %v1579 = vpack.c.b16 %v1303, %v1299
    %v1580 = vpack.c.b16 %v1304, %v1300
    %v1581 = vpack.c.b16 %v1309, %v1305
    %v1582 = vpack.c.b16 %v1310, %v1306
    %v1583 = vpack.c.b16 %v1311, %v1307
    %v1584 = vpack.c.b16 %v1312, %v1308
    %v1585 = vpack.c.b16 %v1317, %v1313
    %v1586 = vpack.c.b16 %v1318, %v1314
    %v1587 = vpack.c.b16 %v1319, %v1315
    %v1588 = vpack.c.b16 %v1320, %v1316
    %v1589 = vpack.c.b16 %v1325, %v1321
    %v1590 = vpack.c.b16 %v1326, %v1322
    %v1591 = vpack.c.b16 %v1327, %v1323
    %v1592 = vpack.c.b16 %v1328, %v1324
    %v1593 = vpack.c.b16 %v1333, %v1329
    %v1594 = vpack.c.b16 %v1334, %v1330
    %v1595 = vpack.c.b16 %v1335, %v1331
    %v1596 = vpack.c.b16 %v1336, %v1332
    %v1597 = vpack.c.b16 %v1341, %v1337
    %v1598 = vpack.c.b16 %v1342, %v1338
    %v1599 = vpack.c.b16 %v1343, %v1339
    %v1600 = vpack.c.b16 %v1344, %v1340
    %1857 = vmatprep.subr.bf16.mxu0 %v1346
    %1858 = vmatpush1.bf16.msra.mxu0 %v1345
    %1859 = vmatprep.subr.bf16.mxu0 %v1350
    %1860 = vmatpush1.bf16.msra.mxu0 %v1349
    %1861 = vmatprep.subr.bf16.mxu0 %v1354
    %1862 = vmatpush1.bf16.msra.mxu0 %v1353
    %1863 = vmatprep.subr.bf16.mxu0 %v1358
    %1864 = vmatpush1.bf16.msra.mxu0 %v1357
    %1865 = vmatprep.subr.bf16.mxu0 %v1362
    %1866 = vmatpush1.bf16.msra.mxu0 %v1361
    %1867 = vmatprep.subr.bf16.mxu0 %v1366
    %1868 = vmatpush1.bf16.msra.mxu0 %v1365
    %1869 = vmatprep.subr.bf16.mxu0 %v1370
    %1870 = vmatpush1.bf16.msra.mxu0 %v1369
    %1871 = vmatprep.subr.bf16.mxu0 %v1374
    %1872 = vmatpush1.bf16.msra.mxu0 %v1373
    %1873 = vmatprep.subr.bf16.mxu0 %v1378
    %1874 = vmatpush1.bf16.msra.mxu0 %v1377
    %1875 = vmatprep.subr.bf16.mxu0 %v1382
    %1876 = vmatpush1.bf16.msra.mxu0 %v1381
    %1877 = vmatprep.subr.bf16.mxu0 %v1386
    %1878 = vmatpush1.bf16.msra.mxu0 %v1385
    %1879 = vmatprep.subr.bf16.mxu0 %v1390
    %1880 = vmatpush1.bf16.msra.mxu0 %v1389
    %1881 = vmatprep.subr.bf16.mxu0 %v1394
    %1882 = vmatpush1.bf16.msra.mxu0 %v1393
    %1883 = vmatprep.subr.bf16.mxu0 %v1398
    %1884 = vmatpush1.bf16.msra.mxu0 %v1397
    %1885 = vmatprep.subr.bf16.mxu0 %v1402
    %1886 = vmatpush1.bf16.msra.mxu0 %v1401
    %1887 = vmatprep.subr.bf16.mxu0 %v1406
    %1888 = vmatpush1.bf16.msra.mxu0 %v1405
    %1889 = vmatprep.mubr.bf16.mxu0 %v562
    %1890 = vmatmul.mubr.bf16.gmra.mrb[0].mxu0 %v561
    %v1891 = vpop.f32.mrb[0].mxu0
    %v1892 = vadd.f32 %v503, %v1891
    %v1893 = vpop.f32.mrb[0].mxu0
    %v1894 = vadd.f32 %v507, %v1893
    %v1895 = vpop.f32.mrb[0].mxu0
    %v1896 = vpop.f32.mrb[0].mxu0
    %1897 = vdwg.mxu0
    %1898 = vmatprep.subr.bf16.mxu0 %v1410
    %1899 = vmatpush1.bf16.msra.mxu0 %v1409
    %1900 = vmatprep.subr.bf16.mxu0 %v1414
    %1901 = vmatpush1.bf16.msra.mxu0 %v1413
    %1902 = vmatprep.subr.bf16.mxu0 %v1418
    %1903 = vmatpush1.bf16.msra.mxu0 %v1417
    %1904 = vmatprep.subr.bf16.mxu0 %v1422
    %1905 = vmatpush1.bf16.msra.mxu0 %v1421
    %1906 = vmatprep.subr.bf16.mxu0 %v1426
    %1907 = vmatpush1.bf16.msra.mxu0 %v1425
    %1908 = vmatprep.subr.bf16.mxu0 %v1430
    %1909 = vmatpush1.bf16.msra.mxu0 %v1429
    %1910 = vmatprep.subr.bf16.mxu0 %v1434
    %1911 = vmatpush1.bf16.msra.mxu0 %v1433
    %1912 = vmatprep.subr.bf16.mxu0 %v1438
    %1913 = vmatpush1.bf16.msra.mxu0 %v1437
    %1914 = vmatprep.subr.bf16.mxu0 %v1442
    %1915 = vmatpush1.bf16.msra.mxu0 %v1441
    %1916 = vmatprep.subr.bf16.mxu0 %v1446
    %1917 = vmatpush1.bf16.msra.mxu0 %v1445
    %1918 = vmatprep.subr.bf16.mxu0 %v1450
    %1919 = vmatpush1.bf16.msra.mxu0 %v1449
    %1920 = vmatprep.subr.bf16.mxu0 %v1454
    %1921 = vmatpush1.bf16.msra.mxu0 %v1453
    %1922 = vmatprep.subr.bf16.mxu0 %v1458
    %1923 = vmatpush1.bf16.msra.mxu0 %v1457
    %1924 = vmatprep.subr.bf16.mxu0 %v1462
    %1925 = vmatpush1.bf16.msra.mxu0 %v1461
    %1926 = vmatprep.subr.bf16.mxu0 %v1466
    %1927 = vmatpush1.bf16.msra.mxu0 %v1465
    %1928 = vmatprep.subr.bf16.mxu0 %v1470
    %1929 = vmatpush1.bf16.msra.mxu0 %v1469
    %1930 = vmatprep.mubr.bf16.mxu0 %v564
    %1931 = vmatmul.mubr.bf16.gmra.mrb[0].mxu0 %v563
    %v1932 = vpop.f32.mrb[0].mxu0
    %v1933 = vadd.f32 %v1892, %v1932
    %v1934 = vpop.f32.mrb[0].mxu0
    %v1935 = vadd.f32 %v1894, %v1934
    %v1936 = vpop.f32.mrb[0].mxu0
    %v1937 = vpop.f32.mrb[0].mxu0
    %1938 = vdwg.mxu0
    %1939 = vmatprep.subr.bf16.mxu0 %v1474
    %1940 = vmatpush1.bf16.msra.mxu0 %v1473
    %1941 = vmatprep.subr.bf16.mxu0 %v1478
    %1942 = vmatpush1.bf16.msra.mxu0 %v1477
    %1943 = vmatprep.subr.bf16.mxu0 %v1482
    %1944 = vmatpush1.bf16.msra.mxu0 %v1481
    %1945 = vmatprep.subr.bf16.mxu0 %v1486
    %1946 = vmatpush1.bf16.msra.mxu0 %v1485
    %1947 = vmatprep.subr.bf16.mxu0 %v1490
    %1948 = vmatpush1.bf16.msra.mxu0 %v1489
    %1949 = vmatprep.subr.bf16.mxu0 %v1494
    %1950 = vmatpush1.bf16.msra.mxu0 %v1493
    %1951 = vmatprep.subr.bf16.mxu0 %v1498
    %1952 = vmatpush1.bf16.msra.mxu0 %v1497
    %1953 = vmatprep.subr.bf16.mxu0 %v1502
    %1954 = vmatpush1.bf16.msra.mxu0 %v1501
    %1955 = vmatprep.subr.bf16.mxu0 %v1506
    %1956 = vmatpush1.bf16.msra.mxu0 %v1505
    %1957 = vmatprep.subr.bf16.mxu0 %v1510
    %1958 = vmatpush1.bf16.msra.mxu0 %v1509
    %1959 = vmatprep.subr.bf16.mxu0 %v1514
    %1960 = vmatpush1.bf16.msra.mxu0 %v1513
    %1961 = vmatprep.subr.bf16.mxu0 %v1518
    %1962 = vmatpush1.bf16.msra.mxu0 %v1517
    %1963 = vmatprep.subr.bf16.mxu0 %v1522
    %1964 = vmatpush1.bf16.msra.mxu0 %v1521
    %1965 = vmatprep.subr.bf16.mxu0 %v1526
    %1966 = vmatpush1.bf16.msra.mxu0 %v1525
    %1967 = vmatprep.subr.bf16.mxu0 %v1530
    %1968 = vmatpush1.bf16.msra.mxu0 %v1529
    %1969 = vmatprep.subr.bf16.mxu0 %v1534
    %1970 = vmatpush1.bf16.msra.mxu0 %v1533
    %1971 = vmatprep.mubr.bf16.mxu0 %v566
    %1972 = vmatmul.mubr.bf16.gmra.mrb[0].mxu0 %v565
    %v1973 = vpop.f32.mrb[0].mxu0
    %v1974 = vadd.f32 %v1933, %v1973
    %v1975 = vpop.f32.mrb[0].mxu0
    %v1976 = vadd.f32 %v1935, %v1975
    %v1977 = vpop.f32.mrb[0].mxu0
    %v1978 = vpop.f32.mrb[0].mxu0
    %1979 = vdwg.mxu0
    %1980 = vmatprep.subr.bf16.mxu0 %v1538
    %1981 = vmatpush1.bf16.msra.mxu0 %v1537
    %1982 = vmatprep.subr.bf16.mxu0 %v1542
    %1983 = vmatpush1.bf16.msra.mxu0 %v1541
    %1984 = vmatprep.subr.bf16.mxu0 %v1546
    %1985 = vmatpush1.bf16.msra.mxu0 %v1545
    %1986 = vmatprep.subr.bf16.mxu0 %v1550
    %1987 = vmatpush1.bf16.msra.mxu0 %v1549
    %1988 = vmatprep.subr.bf16.mxu0 %v1554
    %1989 = vmatpush1.bf16.msra.mxu0 %v1553
    %1990 = vmatprep.subr.bf16.mxu0 %v1558
    %1991 = vmatpush1.bf16.msra.mxu0 %v1557
    %1992 = vmatprep.subr.bf16.mxu0 %v1562
    %1993 = vmatpush1.bf16.msra.mxu0 %v1561
    %1994 = vmatprep.subr.bf16.mxu0 %v1566
    %1995 = vmatpush1.bf16.msra.mxu0 %v1565
    %1996 = vmatprep.subr.bf16.mxu0 %v1570
    %1997 = vmatpush1.bf16.msra.mxu0 %v1569
    %1998 = vmatprep.subr.bf16.mxu0 %v1574
    %1999 = vmatpush1.bf16.msra.mxu0 %v1573
    %2000 = vmatprep.subr.bf16.mxu0 %v1578
    %2001 = vmatpush1.bf16.msra.mxu0 %v1577
    %2002 = vmatprep.subr.bf16.mxu0 %v1582
    %2003 = vmatpush1.bf16.msra.mxu0 %v1581
    %2004 = vmatprep.subr.bf16.mxu0 %v1586
    %2005 = vmatpush1.bf16.msra.mxu0 %v1585
    %2006 = vmatprep.subr.bf16.mxu0 %v1590
    %2007 = vmatpush1.bf16.msra.mxu0 %v1589
    %2008 = vmatprep.subr.bf16.mxu0 %v1594
    %2009 = vmatpush1.bf16.msra.mxu0 %v1593
    %2010 = vmatprep.subr.bf16.mxu0 %v1598
    %2011 = vmatpush1.bf16.msra.mxu0 %v1597
    %2012 = vmatprep.mubr.bf16.mxu0 %v568
    %2013 = vmatmul.mubr.bf16.gmra.mrb[0].mxu0 %v567
    %v2014 = vpop.f32.mrb[0].mxu0
    %v2015 = vadd.f32 %v1974, %v2014
    %v2016 = vpop.f32.mrb[0].mxu0
    %v2017 = vadd.f32 %v1976, %v2016
    %v2018 = vpop.f32.mrb[0].mxu0
    %v2019 = vpop.f32.mrb[0].mxu0
    %2020 = vdwg.mxu0
    %2021 = vmatprep.subr.bf16.mxu0 %v1348
    %2022 = vmatpush1.bf16.msra.mxu0 %v1347
    %2023 = vmatprep.subr.bf16.mxu0 %v1352
    %2024 = vmatpush1.bf16.msra.mxu0 %v1351
    %2025 = vmatprep.subr.bf16.mxu0 %v1356
    %2026 = vmatpush1.bf16.msra.mxu0 %v1355
    %2027 = vmatprep.subr.bf16.mxu0 %v1360
    %2028 = vmatpush1.bf16.msra.mxu0 %v1359
    %2029 = vmatprep.subr.bf16.mxu0 %v1364
    %2030 = vmatpush1.bf16.msra.mxu0 %v1363
    %2031 = vmatprep.subr.bf16.mxu0 %v1368
    %2032 = vmatpush1.bf16.msra.mxu0 %v1367
    %2033 = vmatprep.subr.bf16.mxu0 %v1372
    %2034 = vmatpush1.bf16.msra.mxu0 %v1371
    %2035 = vmatprep.subr.bf16.mxu0 %v1376
    %2036 = vmatpush1.bf16.msra.mxu0 %v1375
    %2037 = vmatprep.subr.bf16.mxu0 %v1380
    %2038 = vmatpush1.bf16.msra.mxu0 %v1379
    %2039 = vmatprep.subr.bf16.mxu0 %v1384
    %2040 = vmatpush1.bf16.msra.mxu0 %v1383
    %2041 = vmatprep.subr.bf16.mxu0 %v1388
    %2042 = vmatpush1.bf16.msra.mxu0 %v1387
    %2043 = vmatprep.subr.bf16.mxu0 %v1392
    %2044 = vmatpush1.bf16.msra.mxu0 %v1391
    %2045 = vmatprep.subr.bf16.mxu0 %v1396
    %2046 = vmatpush1.bf16.msra.mxu0 %v1395
    %2047 = vmatprep.subr.bf16.mxu0 %v1400
    %2048 = vmatpush1.bf16.msra.mxu0 %v1399
    %2049 = vmatprep.subr.bf16.mxu0 %v1404
    %2050 = vmatpush1.bf16.msra.mxu0 %v1403
    %2051 = vmatprep.subr.bf16.mxu0 %v1408
    %2052 = vmatpush1.bf16.msra.mxu0 %v1407
    %2053 = vmatprep.mubr.bf16.mxu0 %v562
    %2054 = vmatmul.mubr.bf16.gmra.mrb[0].mxu0 %v561
    %v2055 = vpop.f32.mrb[0].mxu0
    %v2056 = vadd.f32 %v511, %v2055
    %v2057 = vpop.f32.mrb[0].mxu0
    %v2058 = vadd.f32 %v515, %v2057
    %v2059 = vpop.f32.mrb[0].mxu0
    %v2060 = vpop.f32.mrb[0].mxu0
    %2061 = vdwg.mxu0
    %2062 = vmatprep.subr.bf16.mxu0 %v1412
    %2063 = vmatpush1.bf16.msra.mxu0 %v1411
    %2064 = vmatprep.subr.bf16.mxu0 %v1416
    %2065 = vmatpush1.bf16.msra.mxu0 %v1415
    %2066 = vmatprep.subr.bf16.mxu0 %v1420
    %2067 = vmatpush1.bf16.msra.mxu0 %v1419
    %2068 = vmatprep.subr.bf16.mxu0 %v1424
    %2069 = vmatpush1.bf16.msra.mxu0 %v1423
    %2070 = vmatprep.subr.bf16.mxu0 %v1428
    %2071 = vmatpush1.bf16.msra.mxu0 %v1427
    %2072 = vmatprep.subr.bf16.mxu0 %v1432
    %2073 = vmatpush1.bf16.msra.mxu0 %v1431
    %2074 = vmatprep.subr.bf16.mxu0 %v1436
    %2075 = vmatpush1.bf16.msra.mxu0 %v1435
    %2076 = vmatprep.subr.bf16.mxu0 %v1440
    %2077 = vmatpush1.bf16.msra.mxu0 %v1439
    %2078 = vmatprep.subr.bf16.mxu0 %v1444
    %2079 = vmatpush1.bf16.msra.mxu0 %v1443
    %2080 = vmatprep.subr.bf16.mxu0 %v1448
    %2081 = vmatpush1.bf16.msra.mxu0 %v1447
    %2082 = vmatprep.subr.bf16.mxu0 %v1452
    %2083 = vmatpush1.bf16.msra.mxu0 %v1451
    %2084 = vmatprep.subr.bf16.mxu0 %v1456
    %2085 = vmatpush1.bf16.msra.mxu0 %v1455
    %2086 = vmatprep.subr.bf16.mxu0 %v1460
    %2087 = vmatpush1.bf16.msra.mxu0 %v1459
    %2088 = vmatprep.subr.bf16.mxu0 %v1464
    %2089 = vmatpush1.bf16.msra.mxu0 %v1463
    %2090 = vmatprep.subr.bf16.mxu0 %v1468
    %2091 = vmatpush1.bf16.msra.mxu0 %v1467
    %2092 = vmatprep.subr.bf16.mxu0 %v1472
    %2093 = vmatpush1.bf16.msra.mxu0 %v1471
    %2094 = vmatprep.mubr.bf16.mxu0 %v564
    %2095 = vmatmul.mubr.bf16.gmra.mrb[0].mxu0 %v563
    %v2096 = vpop.f32.mrb[0].mxu0
    %v2097 = vadd.f32 %v2056, %v2096
    %v2098 = vpop.f32.mrb[0].mxu0
    %v2099 = vadd.f32 %v2058, %v2098
    %v2100 = vpop.f32.mrb[0].mxu0
    %v2101 = vpop.f32.mrb[0].mxu0
    %2102 = vdwg.mxu0
    %2103 = vmatprep.subr.bf16.mxu0 %v1476
    %2104 = vmatpush1.bf16.msra.mxu0 %v1475
    %2105 = vmatprep.subr.bf16.mxu0 %v1480
    %2106 = vmatpush1.bf16.msra.mxu0 %v1479
    %2107 = vmatprep.subr.bf16.mxu0 %v1484
    %2108 = vmatpush1.bf16.msra.mxu0 %v1483
    %2109 = vmatprep.subr.bf16.mxu0 %v1488
    %2110 = vmatpush1.bf16.msra.mxu0 %v1487
    %2111 = vmatprep.subr.bf16.mxu0 %v1492
    %2112 = vmatpush1.bf16.msra.mxu0 %v1491
    %2113 = vmatprep.subr.bf16.mxu0 %v1496
    %2114 = vmatpush1.bf16.msra.mxu0 %v1495
    %2115 = vmatprep.subr.bf16.mxu0 %v1500
    %2116 = vmatpush1.bf16.msra.mxu0 %v1499
    %2117 = vmatprep.subr.bf16.mxu0 %v1504
    %2118 = vmatpush1.bf16.msra.mxu0 %v1503
    %2119 = vmatprep.subr.bf16.mxu0 %v1508
    %2120 = vmatpush1.bf16.msra.mxu0 %v1507
    %2121 = vmatprep.subr.bf16.mxu0 %v1512
    %2122 = vmatpush1.bf16.msra.mxu0 %v1511
    %2123 = vmatprep.subr.bf16.mxu0 %v1516
    %2124 = vmatpush1.bf16.msra.mxu0 %v1515
    %2125 = vmatprep.subr.bf16.mxu0 %v1520
    %2126 = vmatpush1.bf16.msra.mxu0 %v1519
    %2127 = vmatprep.subr.bf16.mxu0 %v1524
    %2128 = vmatpush1.bf16.msra.mxu0 %v1523
    %2129 = vmatprep.subr.bf16.mxu0 %v1528
    %2130 = vmatpush1.bf16.msra.mxu0 %v1527
    %2131 = vmatprep.subr.bf16.mxu0 %v1532
    %2132 = vmatpush1.bf16.msra.mxu0 %v1531
    %2133 = vmatprep.subr.bf16.mxu0 %v1536
    %2134 = vmatpush1.bf16.msra.mxu0 %v1535
    %2135 = vmatprep.mubr.bf16.mxu0 %v566
    %2136 = vmatmul.mubr.bf16.gmra.mrb[0].mxu0 %v565
    %v2137 = vpop.f32.mrb[0].mxu0
    %v2138 = vadd.f32 %v2097, %v2137
    %v2139 = vpop.f32.mrb[0].mxu0
    %v2140 = vadd.f32 %v2099, %v2139
    %v2141 = vpop.f32.mrb[0].mxu0
    %v2142 = vpop.f32.mrb[0].mxu0
    %2143 = vdwg.mxu0
    %2144 = vmatprep.subr.bf16.mxu0 %v1540
    %2145 = vmatpush1.bf16.msra.mxu0 %v1539
    %2146 = vmatprep.subr.bf16.mxu0 %v1544
    %2147 = vmatpush1.bf16.msra.mxu0 %v1543
    %2148 = vmatprep.subr.bf16.mxu0 %v1548
    %2149 = vmatpush1.bf16.msra.mxu0 %v1547
    %2150 = vmatprep.subr.bf16.mxu0 %v1552
    %2151 = vmatpush1.bf16.msra.mxu0 %v1551
    %2152 = vmatprep.subr.bf16.mxu0 %v1556
    %2153 = vmatpush1.bf16.msra.mxu0 %v1555
    %2154 = vmatprep.subr.bf16.mxu0 %v1560
    %2155 = vmatpush1.bf16.msra.mxu0 %v1559
    %2156 = vmatprep.subr.bf16.mxu0 %v1564
    %2157 = vmatpush1.bf16.msra.mxu0 %v1563
    %2158 = vmatprep.subr.bf16.mxu0 %v1568
    %2159 = vmatpush1.bf16.msra.mxu0 %v1567
    %2160 = vmatprep.subr.bf16.mxu0 %v1572
    %2161 = vmatpush1.bf16.msra.mxu0 %v1571
    %2162 = vmatprep.subr.bf16.mxu0 %v1576
    %2163 = vmatpush1.bf16.msra.mxu0 %v1575
    %2164 = vmatprep.subr.bf16.mxu0 %v1580
    %2165 = vmatpush1.bf16.msra.mxu0 %v1579
    %2166 = vmatprep.subr.bf16.mxu0 %v1584
    %2167 = vmatpush1.bf16.msra.mxu0 %v1583
    %2168 = vmatprep.subr.bf16.mxu0 %v1588
    %2169 = vmatpush1.bf16.msra.mxu0 %v1587
    %2170 = vmatprep.subr.bf16.mxu0 %v1592
    %2171 = vmatpush1.bf16.msra.mxu0 %v1591
    %2172 = vmatprep.subr.bf16.mxu0 %v1596
    %2173 = vmatpush1.bf16.msra.mxu0 %v1595
    %2174 = vmatprep.subr.bf16.mxu0 %v1600
    %2175 = vmatpush1.bf16.msra.mxu0 %v1599
    %2176 = vmatprep.mubr.bf16.mxu0 %v568
    %2177 = vmatmul.mubr.bf16.gmra.mrb[0].mxu0 %v567
    %v2178 = vpop.f32.mrb[0].mxu0
    %v2179 = vadd.f32 %v2138, %v2178
    %v2180 = vpop.f32.mrb[0].mxu0
    %v2181 = vadd.f32 %v2140, %v2180
    %v2182 = vpop.f32.mrb[0].mxu0
    %v2183 = vpop.f32.mrb[0].mxu0
    %2184 = vdwg.mxu0
    %v2185 = vmul.f32 %v2015, %v2015
    %v2186 = vmul.f32 %v2017, %v2017
    %v2187 = vmul.f32 %v2179, %v2179
    %v2188 = vmul.f32 %v2181, %v2181
    %vm2189 = vcmask 1041408
    %v2190 = vsel %vm2189, %v2185, 0.0
    %v2191 = vsel %vm2189, %v2186, 0.0
    %v2192 = vadd.f32 %v2190, %v2191
    %v2193 = vsel %vm2189, %v2187, 0.0
    %v2194 = vadd.f32 %v2192, %v2193
    %v2195 = vsel %vm2189, %v2188, 0.0
    %v2196 = vadd.f32 %v2194, %v2195
    %2197 = vadd.xlane.f32.xlu0 %v2196
    %v2198 = vpop.xlane.xlu0 %2197
    %v2199 = vadd.f32 %v2198, 1e-16
    %v2200 = vrsqrt.pop %v2199
    %v2201 = vmul.f32 %v2015, %v2200
    %v2202 = vmul.f32 %v2017, %v2200
    %v2203 = vmul.f32 %v2179, %v2200
    %v2204 = vmul.f32 %v2181, %v2200
    %v2209 = vcombine.low %v2201, %v2202
    %v2210 = vcombine.low %v2203, %v2204
    %v2212 = vunpack.c.l.s4 1983009808
    %v2213 = vunpack.c.0.s8 %v2212
    %v2214 = vlaneseq
    %v2215 = vshrl.u32 %v2214, 7
    %v2216 = vsub.s32 %v2213, %v2215
    %v2217 = vrot.slane %v2209, %v2216
    %v2219 = vunpack.c.l.s4 1983009808
    %v2220 = vunpack.c.0.s8 %v2219
    %v2221 = vlaneseq
    %v2222 = vshrl.u32 %v2221, 7
    %v2223 = vsub.s32 %v2220, %v2222
    %v2224 = vrot.slane %v2210, %v2223
    %v2225 = vcombine.low %v2217, %v2224
    %2227 = vst [vmem:[#allocation9] sm:$0xff] %v2225
    %v2228 = vpack.c.bf16 %v2015, %v2015
    %v2229 = vpack.c.bf16 %v2017, %v2017
    %v2230 = vpack.c.bf16 %v2179, %v2179
    %v2231 = vpack.c.bf16 %v2181, %v2181
    %v2232 = vld [vmem:[#allocation7] sm:$0xf]
    %v2233 = vld [vmem:[#allocation7 + $0x4] sm:$0xf]
    %v2234 = vld [vmem:[#allocation7 + $0x8] sm:$0xf]
    %v2235 = vld [vmem:[#allocation7 + $0xc] sm:$0xf]
    %v2236 = vld [vmem:[#allocation7 + $0x10] sm:$0xf]
    %v2237 = vld [vmem:[#allocation7 + $0x14] sm:$0xf]
    %v2238 = vld [vmem:[#allocation7 + $0x18] sm:$0xf]
    %v2239 = vld [vmem:[#allocation7 + $0x1c] sm:$0xf]
    %v2240 = vld [vmem:[#allocation7 + $0x20] sm:$0xf]
    %v2241 = vld [vmem:[#allocation7 + $0x24] sm:$0xf]
    %v2242 = vld [vmem:[#allocation7 + $0x28] sm:$0xf]
    %v2243 = vld [vmem:[#allocation7 + $0x2c] sm:$0xf]
    %v2244 = vld [vmem:[#allocation7 + $0x30] sm:$0xf]
    %v2245 = vld [vmem:[#allocation7 + $0x34] sm:$0xf]
    %v2246 = vld [vmem:[#allocation7 + $0x38] sm:$0xf]
    %v2247 = vld [vmem:[#allocation7 + $0x3c] sm:$0xf]
    %v2248 = vld [vmem:[#allocation7 + $0x40] sm:$0xf]
    %v2249 = vld [vmem:[#allocation7 + $0x44] sm:$0xf]
    %v2250 = vld [vmem:[#allocation7 + $0x48] sm:$0xf]
    %v2251 = vld [vmem:[#allocation7 + $0x4c] sm:$0xf]
    %v2252 = vld [vmem:[#allocation7 + $0x50] sm:$0xf]
    %v2253 = vld [vmem:[#allocation7 + $0x54] sm:$0xf]
    %v2254 = vld [vmem:[#allocation7 + $0x58] sm:$0xf]
    %v2255 = vld [vmem:[#allocation7 + $0x5c] sm:$0xf]
    %v2256 = vld [vmem:[#allocation7 + $0x60] sm:$0xf]
    %v2257 = vld [vmem:[#allocation7 + $0x64] sm:$0xf]
    %v2258 = vld [vmem:[#allocation7 + $0x68] sm:$0xf]
    %v2259 = vld [vmem:[#allocation7 + $0x6c] sm:$0xf]
    %v2260 = vld [vmem:[#allocation7 + $0x70] sm:$0xf]
    %v2261 = vld [vmem:[#allocation7 + $0x74] sm:$0xf]
    %v2262 = vld [vmem:[#allocation7 + $0x78] sm:$0xf]
    %v2263 = vld [vmem:[#allocation7 + $0x7c] sm:$0xf]
    %v2264 = vld [vmem:[#allocation7 + $0x80] sm:$0xf]
    %v2265 = vld [vmem:[#allocation7 + $0x84] sm:$0xf]
    %v2266 = vld [vmem:[#allocation7 + $0x88] sm:$0xf]
    %v2267 = vld [vmem:[#allocation7 + $0x8c] sm:$0xf]
    %v2268 = vld [vmem:[#allocation7 + $0x90] sm:$0xf]
    %v2269 = vld [vmem:[#allocation7 + $0x94] sm:$0xf]
    %v2270 = vld [vmem:[#allocation7 + $0x98] sm:$0xf]
    %v2271 = vld [vmem:[#allocation7 + $0x9c] sm:$0xf]
    %v2272 = vld [vmem:[#allocation7 + $0xa0] sm:$0xf]
    %v2273 = vld [vmem:[#allocation7 + $0xa4] sm:$0xf]
    %v2274 = vld [vmem:[#allocation7 + $0xa8] sm:$0xf]
    %v2275 = vld [vmem:[#allocation7 + $0xac] sm:$0xf]
    %v2276 = vld [vmem:[#allocation7 + $0xb0] sm:$0xf]
    %v2277 = vld [vmem:[#allocation7 + $0xb4] sm:$0xf]
    %v2278 = vld [vmem:[#allocation7 + $0xb8] sm:$0xf]
    %v2279 = vld [vmem:[#allocation7 + $0xbc] sm:$0xf]
    %v2280 = vld [vmem:[#allocation7 + $0xc0] sm:$0xf]
    %v2281 = vld [vmem:[#allocation7 + $0xc4] sm:$0xf]
    %v2282 = vld [vmem:[#allocation7 + $0xc8] sm:$0xf]
    %v2283 = vld [vmem:[#allocation7 + $0xcc] sm:$0xf]
    %v2284 = vld [vmem:[#allocation7 + $0xd0] sm:$0xf]
    %v2285 = vld [vmem:[#allocation7 + $0xd4] sm:$0xf]
    %v2286 = vld [vmem:[#allocation7 + $0xd8] sm:$0xf]
    %v2287 = vld [vmem:[#allocation7 + $0xdc] sm:$0xf]
    %v2288 = vld [vmem:[#allocation7 + $0xe0] sm:$0xf]
    %v2289 = vld [vmem:[#allocation7 + $0xe4] sm:$0xf]
    %v2290 = vld [vmem:[#allocation7 + $0xe8] sm:$0xf]
    %v2291 = vld [vmem:[#allocation7 + $0xec] sm:$0xf]
    %v2292 = vld [vmem:[#allocation7 + $0xf0] sm:$0xf]
    %v2293 = vld [vmem:[#allocation7 + $0xf4] sm:$0xf]
    %v2294 = vld [vmem:[#allocation7 + $0xf8] sm:$0xf]
    %v2295 = vld [vmem:[#allocation7 + $0xfc] sm:$0xf]
    %v2296 = vld [vmem:[%s4] sm:$0x1]
    %v2298 = vlaneseq
    %v2299 = vshrl.u32 %v2298, 7
    %v2300 = vsub.s32 0, %v2299
    %v2301 = vrot.slane %v2296, %v2300
    %v2367 = vunpack.c.l.b16 %v2232
    %v2368 = vunpack.c.l.b16 %v2233
    %v2369 = vunpack.c.l.b16 %v2234
    %v2370 = vunpack.c.l.b16 %v2235
    %v2371 = vunpack.c.l.b16 %v2236
    %v2372 = vunpack.c.l.b16 %v2237
    %v2373 = vunpack.c.l.b16 %v2238
    %v2374 = vunpack.c.l.b16 %v2239
    %v2375 = vunpack.c.l.b16 %v2240
    %v2376 = vunpack.c.l.b16 %v2241
    %v2377 = vunpack.c.l.b16 %v2242
    %v2378 = vunpack.c.l.b16 %v2243
    %v2379 = vunpack.c.l.b16 %v2244
    %v2380 = vunpack.c.l.b16 %v2245
    %v2381 = vunpack.c.l.b16 %v2246
    %v2382 = vunpack.c.l.b16 %v2247
    %v2383 = vunpack.c.l.b16 %v2248
    %v2384 = vunpack.c.l.b16 %v2249
    %v2385 = vunpack.c.l.b16 %v2250
    %v2386 = vunpack.c.l.b16 %v2251
    %v2387 = vunpack.c.l.b16 %v2252
    %v2388 = vunpack.c.l.b16 %v2253
    %v2389 = vunpack.c.l.b16 %v2254
    %v2390 = vunpack.c.l.b16 %v2255
    %v2391 = vunpack.c.l.b16 %v2256
    %v2392 = vunpack.c.l.b16 %v2257
    %v2393 = vunpack.c.l.b16 %v2258
    %v2394 = vunpack.c.l.b16 %v2259
    %v2395 = vunpack.c.l.b16 %v2260
    %v2396 = vunpack.c.l.b16 %v2261
    %v2397 = vunpack.c.l.b16 %v2262
    %v2398 = vunpack.c.l.b16 %v2263
    %v2399 = vunpack.c.l.b16 %v2264
    %v2400 = vunpack.c.l.b16 %v2265
    %v2401 = vunpack.c.l.b16 %v2266
    %v2402 = vunpack.c.l.b16 %v2267
    %v2403 = vunpack.c.l.b16 %v2268
    %v2404 = vunpack.c.l.b16 %v2269
    %v2405 = vunpack.c.l.b16 %v2270
    %v2406 = vunpack.c.l.b16 %v2271
    %v2407 = vunpack.c.l.b16 %v2272
    %v2408 = vunpack.c.l.b16 %v2273
    %v2409 = vunpack.c.l.b16 %v2274
    %v2410 = vunpack.c.l.b16 %v2275
    %v2411 = vunpack.c.l.b16 %v2276
    %v2412 = vunpack.c.l.b16 %v2277
    %v2413 = vunpack.c.l.b16 %v2278
    %v2414 = vunpack.c.l.b16 %v2279
    %v2415 = vunpack.c.l.b16 %v2280
    %v2416 = vunpack.c.l.b16 %v2281
    %v2417 = vunpack.c.l.b16 %v2282
    %v2418 = vunpack.c.l.b16 %v2283
    %v2419 = vunpack.c.l.b16 %v2284
    %v2420 = vunpack.c.l.b16 %v2285
    %v2421 = vunpack.c.l.b16 %v2286
    %v2422 = vunpack.c.l.b16 %v2287
    %v2423 = vunpack.c.l.b16 %v2288
    %v2424 = vunpack.c.l.b16 %v2289
    %v2425 = vunpack.c.l.b16 %v2290
    %v2426 = vunpack.c.l.b16 %v2291
    %v2427 = vunpack.c.l.b16 %v2292
    %v2428 = vunpack.c.l.b16 %v2293
    %v2429 = vunpack.c.l.b16 %v2294
    %v2430 = vunpack.c.l.b16 %v2295
    %v2431 = vpack.c.b16 %v2368, %v2367
    %v2432 = vpack.c.b16 %v2370, %v2369
    %v2433 = vpack.c.b16 %v2372, %v2371
    %v2434 = vpack.c.b16 %v2374, %v2373
    %v2435 = vpack.c.b16 %v2376, %v2375
    %v2436 = vpack.c.b16 %v2378, %v2377
    %v2437 = vpack.c.b16 %v2380, %v2379
    %v2438 = vpack.c.b16 %v2382, %v2381
    %v2439 = vpack.c.b16 %v2384, %v2383
    %v2440 = vpack.c.b16 %v2386, %v2385
    %v2441 = vpack.c.b16 %v2388, %v2387
    %v2442 = vpack.c.b16 %v2390, %v2389
    %v2443 = vpack.c.b16 %v2392, %v2391
    %v2444 = vpack.c.b16 %v2394, %v2393
    %v2445 = vpack.c.b16 %v2396, %v2395
    %v2446 = vpack.c.b16 %v2398, %v2397
    %v2447 = vpack.c.b16 %v2400, %v2399
    %v2448 = vpack.c.b16 %v2402, %v2401
    %v2449 = vpack.c.b16 %v2404, %v2403
    %v2450 = vpack.c.b16 %v2406, %v2405
    %v2451 = vpack.c.b16 %v2408, %v2407
    %v2452 = vpack.c.b16 %v2410, %v2409
    %v2453 = vpack.c.b16 %v2412, %v2411
    %v2454 = vpack.c.b16 %v2414, %v2413
    %v2455 = vpack.c.b16 %v2416, %v2415
    %v2456 = vpack.c.b16 %v2418, %v2417
    %v2457 = vpack.c.b16 %v2420, %v2419
    %v2458 = vpack.c.b16 %v2422, %v2421
    %v2459 = vpack.c.b16 %v2424, %v2423
    %v2460 = vpack.c.b16 %v2426, %v2425
    %v2461 = vpack.c.b16 %v2428, %v2427
    %v2462 = vpack.c.b16 %v2430, %v2429
    %2495 = vmatprep.subr.bf16.mxu0 0
    %2496 = vmatpush1.bf16.msra.mxu0 %v2431
    %2497 = vmatprep.subr.bf16.mxu0 0
    %2498 = vmatpush1.bf16.msra.mxu0 %v2432
    %2499 = vmatprep.subr.bf16.mxu0 0
    %2500 = vmatpush1.bf16.msra.mxu0 %v2433
    %2501 = vmatprep.subr.bf16.mxu0 0
    %2502 = vmatpush1.bf16.msra.mxu0 %v2434
    %2503 = vmatprep.subr.bf16.mxu0 0
    %2504 = vmatpush1.bf16.msra.mxu0 %v2435
    %2505 = vmatprep.subr.bf16.mxu0 0
    %2506 = vmatpush1.bf16.msra.mxu0 %v2436
    %2507 = vmatprep.subr.bf16.mxu0 0
    %2508 = vmatpush1.bf16.msra.mxu0 %v2437
    %2509 = vmatprep.subr.bf16.mxu0 0
    %2510 = vmatpush1.bf16.msra.mxu0 %v2438
    %2511 = vmatprep.subr.bf16.mxu0 0
    %2512 = vmatpush1.bf16.msra.mxu0 %v2439
    %2513 = vmatprep.subr.bf16.mxu0 0
    %2514 = vmatpush1.bf16.msra.mxu0 %v2440
    %2515 = vmatprep.subr.bf16.mxu0 0
    %2516 = vmatpush1.bf16.msra.mxu0 %v2441
    %2517 = vmatprep.subr.bf16.mxu0 0
    %2518 = vmatpush1.bf16.msra.mxu0 %v2442
    %2519 = vmatprep.subr.bf16.mxu0 0
    %2520 = vmatpush1.bf16.msra.mxu0 %v2443
    %2521 = vmatprep.subr.bf16.mxu0 0
    %2522 = vmatpush1.bf16.msra.mxu0 %v2444
    %2523 = vmatprep.subr.bf16.mxu0 0
    %2524 = vmatpush1.bf16.msra.mxu0 %v2445
    %2525 = vmatprep.subr.bf16.mxu0 0
    %2526 = vmatpush1.bf16.msra.mxu0 %v2446
    %2527 = vmatprep.mubr.bf16.mxu0 %v2229
    %2528 = vmatmul.mubr.bf16.gmra.mrb[0].mxu0 %v2228
    %v2529 = vpop.f32.mrb[0].mxu0
    %v2530 = vadd.f32 %v2301, %v2529
    %v2531 = vpop.f32.mrb[0].mxu0
    %v2532 = vpop.f32.mrb[0].mxu0
    %v2533 = vpop.f32.mrb[0].mxu0
    %2534 = vdwg.mxu0
    %2535 = vmatprep.subr.bf16.mxu0 0
    %2536 = vmatpush1.bf16.msra.mxu0 %v2447
    %2537 = vmatprep.subr.bf16.mxu0 0
    %2538 = vmatpush1.bf16.msra.mxu0 %v2448
    %2539 = vmatprep.subr.bf16.mxu0 0
    %2540 = vmatpush1.bf16.msra.mxu0 %v2449
    %2541 = vmatprep.subr.bf16.mxu0 0
    %2542 = vmatpush1.bf16.msra.mxu0 %v2450
    %2543 = vmatprep.subr.bf16.mxu0 0
    %2544 = vmatpush1.bf16.msra.mxu0 %v2451
    %2545 = vmatprep.subr.bf16.mxu0 0
    %2546 = vmatpush1.bf16.msra.mxu0 %v2452
    %2547 = vmatprep.subr.bf16.mxu0 0
    %2548 = vmatpush1.bf16.msra.mxu0 %v2453
    %2549 = vmatprep.subr.bf16.mxu0 0
    %2550 = vmatpush1.bf16.msra.mxu0 %v2454
    %2551 = vmatprep.subr.bf16.mxu0 0
    %2552 = vmatpush1.bf16.msra.mxu0 %v2455
    %2553 = vmatprep.subr.bf16.mxu0 0
    %2554 = vmatpush1.bf16.msra.mxu0 %v2456
    %2555 = vmatprep.subr.bf16.mxu0 0
    %2556 = vmatpush1.bf16.msra.mxu0 %v2457
    %2557 = vmatprep.subr.bf16.mxu0 0
    %2558 = vmatpush1.bf16.msra.mxu0 %v2458
    %2559 = vmatprep.subr.bf16.mxu0 0
    %2560 = vmatpush1.bf16.msra.mxu0 %v2459
    %2561 = vmatprep.subr.bf16.mxu0 0
    %2562 = vmatpush1.bf16.msra.mxu0 %v2460
    %2563 = vmatprep.subr.bf16.mxu0 0
    %2564 = vmatpush1.bf16.msra.mxu0 %v2461
    %2565 = vmatprep.subr.bf16.mxu0 0
    %2566 = vmatpush1.bf16.msra.mxu0 %v2462
    %2567 = vmatprep.mubr.bf16.mxu0 %v2231
    %2568 = vmatmul.mubr.bf16.gmra.mrb[0].mxu0 %v2230
    %v2569 = vpop.f32.mrb[0].mxu0
    %v2570 = vadd.f32 %v2530, %v2569
    %v2571 = vpop.f32.mrb[0].mxu0
    %v2572 = vpop.f32.mrb[0].mxu0
    %v2573 = vpop.f32.mrb[0].mxu0
    %2574 = vdwg.mxu0
    %2575 = vst [vmem:[#allocation8] sm:$0x3] %v2570
    // Predicated region
    $region34: #{tpu_custom_call.1} parent=1 // pred_check
      _
    $region35: #{tpu_custom_call.1} parent=1 // pred_check_branch
      %2577 = sbr.rel (0) target = $region37
    $region36: #{tpu_custom_call.1} parent=1 // pred_region
      %s2579 = ssub.s32 32, 32
      %2580 = vsyncadd [#allocation4], %s2579
      %s2582 = sshll.u32 [#allocation8], 4
      %s2583 = int_to_ptr.vmem [resolvable:$true] %s2582
      %2585 = dma.vmem_to_hbm [thread:$0]  %s2583, 32, %s5, [#allocation4]
    $region37: #{tpu_custom_call.1} parent=1 // pred_fallthru
      _
    // Predicated region
    $region38: #{tpu_custom_call.1} parent=1 // pred_check
      _
    $region39: #{tpu_custom_call.1} parent=1 // pred_check_branch
      %2587 = sbr.rel (0) target = $region41
    $region40: #{tpu_custom_call.1} parent=1 // pred_region
      %s2589 = ssub.s32 128, 128
      %2590 = vsyncadd [#allocation10], %s2589
      %s2592 = sshll.u32 [#allocation9], 4
      %s2593 = int_to_ptr.vmem [resolvable:$true] %s2592
      %2595 = dma.vmem_to_hbm [thread:$0]  %s2593, 128, %s6, [#allocation10]
    $region41: #{tpu_custom_call.1} parent=1 // pred_fallthru
      _
    // Predicated region
    $region42: #{tpu_custom_call.1} parent=1 // pred_check
      _
    $region43: #{tpu_custom_call.1} parent=1 // pred_check_branch
      %2597 = sbr.rel (0) target = $region45
    $region44: #{tpu_custom_call.1} parent=1 // pred_region
      %2598 = dma.done [#allocation4], 32
    $region45: #{tpu_custom_call.1} parent=1 // pred_fallthru
      _
    // Predicated region
    $region46: #{tpu_custom_call.1} parent=1 // pred_check
      _
    $region47: #{tpu_custom_call.1} parent=1 // pred_check_branch
      %2600 = sbr.rel (0) target = $region49
    $region48: #{tpu_custom_call.1} parent=1 // pred_region
      %2601 = dma.done [#allocation10], 128
    $region49: #{tpu_custom_call.1} parent=1 // pred_fallthru
      _
    %2602 = vsyncpa [#allocation3], 1
    %2603 = vsyncpa [#allocation6], 1
    %2604 = vsyncpa [#allocation4], 1
    %2605 = vsyncpa [#allocation10], 1

</llo_original>
